<compile_context>
chip_gen: v5e
topology: v5e:2x2
jax: 0.10.0
libtpu: 0.0.40
codegen_flags: <defaults>
</compile_context>

<pallas_src>
import math
import functools

import jax
import jax.numpy as jnp
from jax import lax
from jax.experimental import pallas as pl
from jax.experimental.pallas import tpu as pltpu


# ----------------------------- config -----------------------------

CFG = dict(
    vocab_size=100,
    max_position=16,
    type_vocab_size=2,
    hidden=256,        # lane-dense (multiple of 128)
    num_heads=2,
    head_dim=128,      # per-head lane slices are vreg-aligned
    intermediate=512,
    num_layers=2,
    num_labels=2,
)

LN_EPS = 1e-12          # BERT LayerNorm eps
LOGIT_PAD = 128         # lane-dense classifier output width (real columns sliced outside)


# ----------------------------- in-kernel helpers -----------------------------

def _layernorm(x, g, b, eps=LN_EPS):
    mu = jnp.mean(x, axis=-1, keepdims=True)
    var = jnp.mean((x - mu) ** 2, axis=-1, keepdims=True)
    return (x - mu) * lax.rsqrt(var + eps) * g + b


def _gelu_erf(x):
    # BERT uses the exact (erf-based) GELU.
    return 0.5 * x * (1.0 + lax.erf(x * (1.0 / math.sqrt(2.0))))


# ----------------------------- fused Pallas kernel -----------------------------

def _fused_qg_kernel(cfg, B, S,
                     emb_ref, emb_g_ref, emb_b_ref,
                     qkv_w_ref, qkv_b_ref,
                     ao_w_ref, ao_b_ref, ao_g_ref, ao_beta_ref,
                     ff1_w_ref, ff1_b_ref, ff2_w_ref, ff2_b_ref,
                     out_g_ref, out_beta_ref,
                     pool_w_ref, pool_b_ref, cls_w_ref, cls_b_ref,
                     logits_ref):
    H = cfg["hidden"]
    nH = cfg["num_heads"]
    dH = cfg["head_dim"]
    L = cfg["num_layers"]
    scale = 1.0 / math.sqrt(dH)

    # --- embedding LayerNorm (no residual: no dummy zero input stream) ---
    x = _layernorm(emb_ref[...], emb_g_ref[...], emb_b_ref[...])          # [B*S, H]

    # --- encoder layers, statically unrolled; weights stay VMEM-resident ---
    for l in range(L):
        # fused QKV projection: a single [B*S, H] @ [H, 3H] MXU pass
        qkv = jnp.dot(x, qkv_w_ref[l], preferred_element_type=jnp.float32) + qkv_b_ref[l]
        q = qkv[:, 0 * H:1 * H]
        k = qkv[:, 1 * H:2 * H]
        v = qkv[:, 2 * H:3 * H]

        # per-(batch, head) attention; heads are contiguous lane slices — no
        # transposes or HBM round-trips between projection and attention.
        ctx_rows = []
        for b in range(B):
            r0 = b * S
            heads = []
            for h in range(nH):
                c0 = h * dH
                qb = q[r0:r0 + S, c0:c0 + dH]                             # [S, dH]
                kb = k[r0:r0 + S, c0:c0 + dH]
                vb = v[r0:r0 + S, c0:c0 + dH]
                s = jnp.dot(qb, kb.T, preferred_element_type=jnp.float32) * scale
                m = jnp.max(s, axis=-1, keepdims=True)
                p = jnp.exp(s - m)
                denom = jnp.sum(p, axis=-1, keepdims=True)
                p = p * pl.reciprocal(denom, approx=True)                 # EUP divide
                heads.append(jnp.dot(p, vb, preferred_element_type=jnp.float32))
            ctx_rows.append(jnp.concatenate(heads, axis=-1))              # [S, H]
        ctx = jnp.concatenate(ctx_rows, axis=0)                           # [B*S, H]

        # attention output dense + residual + LayerNorm
        attn_out = jnp.dot(ctx, ao_w_ref[l], preferred_element_type=jnp.float32) + ao_b_ref[l]
        x = _layernorm(attn_out + x, ao_g_ref[l], ao_beta_ref[l])

        # feed-forward (erf-GELU) + residual + LayerNorm
        hmid = jnp.dot(x, ff1_w_ref[l], preferred_element_type=jnp.float32) + ff1_b_ref[l]
        hmid = _gelu_erf(hmid)
        ff_out = jnp.dot(hmid, ff2_w_ref[l], preferred_element_type=jnp.float32) + ff2_b_ref[l]
        x = _layernorm(ff_out + x, out_g_ref[l], out_beta_ref[l])

    # --- pooler (tanh dense) + classifier, same kernel, lane-dense output ---
    # Computed for every row; the [CLS] rows are selected by the wrapper.
    pooled = jnp.tanh(
        jnp.dot(x, pool_w_ref[...], preferred_element_type=jnp.float32) + pool_b_ref[...])
    logits = jnp.dot(pooled, cls_w_ref[...], preferred_element_type=jnp.float32) + cls_b_ref[...]
    logits_ref[...] = logits.astype(logits_ref.dtype)                     # [B*S, LOGIT_PAD]


# ----------------------------- parameters -----------------------------

def init_params(key, cfg):
    def nrm(k, shape, scale=0.02):
        return (scale * jax.random.normal(k, shape)).astype(jnp.float32)

    keys = iter(jax.random.split(key, 64))
    H, I, Lyr = cfg["hidden"], cfg["intermediate"], cfg["num_layers"]
    p = {
        "word_emb": nrm(next(keys), (cfg["vocab_size"], H)),
        "pos_emb": nrm(next(keys), (cfg["max_position"], H)),
        "type_emb": nrm(next(keys), (cfg["type_vocab_size"], H)),
        "emb_ln_g": jnp.ones((H,), jnp.float32),
        "emb_ln_b": jnp.zeros((H,), jnp.float32),
        # per-layer weights stacked along a leading layer axis so the fused kernel
        # loads each tensor once and indexes layers with a static leading index.
        "qkv_w": nrm(next(keys), (Lyr, H, 3 * H)),           # fused Q|K|V
        "qkv_b": jnp.zeros((Lyr, 1, 3 * H), jnp.float32),
        "ao_w": nrm(next(keys), (Lyr, H, H)),
        "ao_b": jnp.zeros((Lyr, 1, H), jnp.float32),
        "ao_ln_g": jnp.ones((Lyr, 1, H), jnp.float32),
        "ao_ln_b": jnp.zeros((Lyr, 1, H), jnp.float32),
        "ff1_w": nrm(next(keys), (Lyr, H, I)),
        "ff1_b": jnp.zeros((Lyr, 1, I), jnp.float32),
        "ff2_w": nrm(next(keys), (Lyr, I, H)),
        "ff2_b": jnp.zeros((Lyr, 1, H), jnp.float32),
        "out_ln_g": jnp.ones((Lyr, 1, H), jnp.float32),
        "out_ln_b": jnp.zeros((Lyr, 1, H), jnp.float32),
        "pooler_w": nrm(next(keys), (H, H)),
        "pooler_b": jnp.zeros((H,), jnp.float32),
        "cls_w": nrm(next(keys), (H, cfg["num_labels"])),
        "cls_b": jnp.zeros((cfg["num_labels"],), jnp.float32),
        # NOTE: the reference module declares `self.linear = nn.Linear(768, 2)` but
        # never calls it in forward(); mirrored here for fidelity, unused.
        "unused_linear_w": nrm(next(keys), (H, 2)),
        "unused_linear_b": jnp.zeros((2,), jnp.float32),
    }
    return p


# ----------------------------- forward (glue + one fused kernel) -----------------------------

def qg_generate_forward(params, input_ids, return_logits=True):
    """Mirrors QGgenerate.forward(inputs, return_logits)."""
    cfg = CFG
    B, S = input_ids.shape
    H = cfg["hidden"]
    n_labels = cfg["num_labels"]

    # --- embeddings (gathers stay in plain JAX as glue) ---
    word = jnp.take(params["word_emb"], input_ids, axis=0)                 # [B,S,H]
    pos = jnp.take(params["pos_emb"], jnp.arange(S), axis=0)[None, :, :]   # [1,S,H]
    typ = params["type_emb"][0][None, None, :]                             # token_type_ids = 0
    emb = (word + pos + typ).reshape(B * S, H).astype(jnp.float32)

    # classifier padded to a lane-dense 128-wide output; real columns sliced below.
    cls_w_pad = jnp.zeros((H, LOGIT_PAD), jnp.float32).at[:, :n_labels].set(params["cls_w"])
    cls_b_pad = jnp.zeros((1, LOGIT_PAD), jnp.float32).at[:, :n_labels].set(
        params["cls_b"].reshape(1, n_labels))

    out = pl.pallas_call(
        functools.partial(_fused_qg_kernel, cfg, B, S),
        out_shape=jax.ShapeDtypeStruct((B * S, LOGIT_PAD), jnp.float32),
        compiler_params=pltpu.CompilerParams(vmem_limit_bytes=32 * 1024 * 1024),
    )(
        emb,
        params["emb_ln_g"].reshape(1, H), params["emb_ln_b"].reshape(1, H),
        params["qkv_w"], params["qkv_b"],
        params["ao_w"], params["ao_b"], params["ao_ln_g"], params["ao_ln_b"],
        params["ff1_w"], params["ff1_b"], params["ff2_w"], params["ff2_b"],
        params["out_ln_g"], params["out_ln_b"],
        params["pooler_w"], params["pooler_b"].reshape(1, H),
        cls_w_pad, cls_b_pad,
    )

    if return_logits:
        # BERT pooler/classifier only use the [CLS] (first) token of each sequence.
        logits = out.reshape(B, S, LOGIT_PAD)[:, 0, :n_labels]             # [B, num_labels]
        return logits
    else:
        # No labels were provided to the HF model in the reference forward,
        # so `outputs.loss` is None.
        return None


# ----------------------------- main -----------------------------

if __name__ == "__main__":
    key = jax.random.PRNGKey(0)
    k_param, k_ids = jax.random.split(key)

    params = init_params(k_param, CFG)

    B, S = 2, 8
    input_ids = jax.random.randint(k_ids, (B, S), 0, CFG["vocab_size"], dtype=jnp.int32)
    inputs = {"input_ids": input_ids}

    logits = qg_generate_forward(params, inputs["input_ids"], return_logits=True)
    logits = jax.block_until_ready(logits)

    assert logits.shape == (B, CFG["num_labels"])
    assert bool(jnp.all(jnp.isfinite(logits)))
    print("KERNEL_OK")
</pallas_src>

<mosaic_0001>
module attributes {stable_mosaic.version = 11 : i64} {
  func.func @_fused_qg_kernel(%arg0: memref<16x256xf32, #tpu.memory_space<vmem>>, %arg1: memref<1x256xf32, #tpu.memory_space<vmem>>, %arg2: memref<1x256xf32, #tpu.memory_space<vmem>>, %arg3: memref<2x256x768xf32, #tpu.memory_space<vmem>>, %arg4: memref<2x1x768xf32, #tpu.memory_space<vmem>>, %arg5: memref<2x256x256xf32, #tpu.memory_space<vmem>>, %arg6: memref<2x1x256xf32, #tpu.memory_space<vmem>>, %arg7: memref<2x1x256xf32, #tpu.memory_space<vmem>>, %arg8: memref<2x1x256xf32, #tpu.memory_space<vmem>>, %arg9: memref<2x256x512xf32, #tpu.memory_space<vmem>>, %arg10: memref<2x1x512xf32, #tpu.memory_space<vmem>>, %arg11: memref<2x512x256xf32, #tpu.memory_space<vmem>>, %arg12: memref<2x1x256xf32, #tpu.memory_space<vmem>>, %arg13: memref<2x1x256xf32, #tpu.memory_space<vmem>>, %arg14: memref<2x1x256xf32, #tpu.memory_space<vmem>>, %arg15: memref<256x256xf32, #tpu.memory_space<vmem>>, %arg16: memref<1x256xf32, #tpu.memory_space<vmem>>, %arg17: memref<256x128xf32, #tpu.memory_space<vmem>>, %arg18: memref<1x128xf32, #tpu.memory_space<vmem>>, %arg19: memref<16x128xf32, #tpu.memory_space<vmem>>) attributes {dimension_semantics = [], scalar_prefetch = 0 : i64, scratch_operands = 0 : i64, tpu.core_type = #tpu.core_type<tc>} {
    %c0 = arith.constant 0 : index
    %c0_0 = arith.constant 0 : index
    %0 = vector.load %arg0[%c0, %c0_0] : memref<16x256xf32, #tpu.memory_space<vmem>>, vector<16x256xf32>
    %c0_1 = arith.constant 0 : index
    %c0_2 = arith.constant 0 : index
    %1 = vector.load %arg1[%c0_1, %c0_2] : memref<1x256xf32, #tpu.memory_space<vmem>>, vector<1x256xf32>
    %c0_3 = arith.constant 0 : index
    %c0_4 = arith.constant 0 : index
    %2 = vector.load %arg2[%c0_3, %c0_4] : memref<1x256xf32, #tpu.memory_space<vmem>>, vector<1x256xf32>
    %cst = arith.constant dense<0.000000e+00> : vector<16xf32>
    %3 = vector.multi_reduction <add>, %0, %cst [1] : vector<16x256xf32> to vector<16xf32>
    %4 = vector.shape_cast %3 : vector<16xf32> to vector<16x1xf32>
    %cst_5 = arith.constant 2.560000e+02 : f32
    %5 = vector.broadcast %cst_5 : f32 to vector<16x1xf32>
    %6 = arith.divf %4, %5 : vector<16x1xf32>
    %7 = vector.broadcast %6 : vector<16x1xf32> to vector<16x256xf32>
    %8 = arith.subf %0, %7 : vector<16x256xf32>
    %9 = arith.mulf %8, %8 : vector<16x256xf32>
    %cst_6 = arith.constant dense<0.000000e+00> : vector<16xf32>
    %10 = vector.multi_reduction <add>, %9, %cst_6 [1] : vector<16x256xf32> to vector<16xf32>
    %11 = vector.shape_cast %10 : vector<16xf32> to vector<16x1xf32>
    %cst_7 = arith.constant 2.560000e+02 : f32
    %12 = vector.broadcast %cst_7 : f32 to vector<16x1xf32>
    %13 = arith.divf %11, %12 : vector<16x1xf32>
    %14 = vector.broadcast %6 : vector<16x1xf32> to vector<16x256xf32>
    %15 = arith.subf %0, %14 : vector<16x256xf32>
    %cst_8 = arith.constant 9.99999996E-13 : f32
    %16 = vector.broadcast %cst_8 : f32 to vector<16x1xf32>
    %17 = arith.addf %13, %16 : vector<16x1xf32>
    %18 = math.rsqrt %17 : vector<16x1xf32>
    %19 = vector.broadcast %18 : vector<16x1xf32> to vector<16x256xf32>
    %20 = arith.mulf %15, %19 : vector<16x256xf32>
    %21 = vector.broadcast %1 : vector<1x256xf32> to vector<16x256xf32>
    %22 = arith.mulf %20, %21 : vector<16x256xf32>
    %23 = vector.broadcast %2 : vector<1x256xf32> to vector<16x256xf32>
    %24 = arith.addf %22, %23 : vector<16x256xf32>
    %c0_9 = arith.constant 0 : index
    %c0_10 = arith.constant 0 : index
    %c0_11 = arith.constant 0 : index
    %25 = vector.load %arg3[%c0_9, %c0_10, %c0_11] : memref<2x256x768xf32, #tpu.memory_space<vmem>>, vector<1x256x768xf32>
    %26 = vector.shape_cast %25 : vector<1x256x768xf32> to vector<256x768xf32>
    %cst_12 = arith.constant dense<0.000000e+00> : vector<16x768xf32>
    %27 = tpu.matmul %24, %26, %cst_12 {dimension_numbers = #tpu.dot_dimension_numbers<[1], [0], [0], [1], [0, 0, 1, 1], [], []>} : vector<16x256xf32>, vector<256x768xf32>, vector<16x768xf32> -> vector<16x768xf32>
    %c0_13 = arith.constant 0 : index
    %c0_14 = arith.constant 0 : index
    %c0_15 = arith.constant 0 : index
    %28 = vector.load %arg4[%c0_13, %c0_14, %c0_15] : memref<2x1x768xf32, #tpu.memory_space<vmem>>, vector<1x1x768xf32>
    %29 = vector.shape_cast %28 : vector<1x1x768xf32> to vector<1x768xf32>
    %30 = vector.broadcast %29 : vector<1x768xf32> to vector<16x768xf32>
    %31 = arith.addf %27, %30 : vector<16x768xf32>
    %32 = vector.extract_strided_slice %31 {offsets = [0, 0], sizes = [16, 256], strides = [1, 1]} : vector<16x768xf32> to vector<16x256xf32>
    %33 = vector.extract_strided_slice %31 {offsets = [0, 256], sizes = [16, 256], strides = [1, 1]} : vector<16x768xf32> to vector<16x256xf32>
    %34 = vector.extract_strided_slice %31 {offsets = [0, 512], sizes = [16, 256], strides = [1, 1]} : vector<16x768xf32> to vector<16x256xf32>
    %35 = vector.extract_strided_slice %32 {offsets = [0, 0], sizes = [8, 128], strides = [1, 1]} : vector<16x256xf32> to vector<8x128xf32>
    %36 = vector.extract_strided_slice %33 {offsets = [0, 0], sizes = [8, 128], strides = [1, 1]} : vector<16x256xf32> to vector<8x128xf32>
    %37 = vector.extract_strided_slice %34 {offsets = [0, 0], sizes = [8, 128], strides = [1, 1]} : vector<16x256xf32> to vector<8x128xf32>
    %38 = tpu.transpose %36, [1, 0] : vector<8x128xf32> -> vector<128x8xf32>
    %cst_16 = arith.constant dense<0.000000e+00> : vector<8x8xf32>
    %39 = tpu.matmul %35, %38, %cst_16 {dimension_numbers = #tpu.dot_dimension_numbers<[1], [0], [0], [1], [0, 0, 1, 1], [], []>} : vector<8x128xf32>, vector<128x8xf32>, vector<8x8xf32> -> vector<8x8xf32>
    %cst_17 = arith.constant 0.0883883461 : f32
    %40 = vector.broadcast %cst_17 : f32 to vector<8x8xf32>
    %41 = arith.mulf %39, %40 : vector<8x8xf32>
    %cst_18 = arith.constant dense<0xFF800000> : vector<8xf32>
    %42 = vector.multi_reduction <maximumf>, %41, %cst_18 [1] : vector<8x8xf32> to vector<8xf32>
    %43 = vector.shape_cast %42 : vector<8xf32> to vector<8x1xf32>
    %44 = vector.broadcast %43 : vector<8x1xf32> to vector<8x8xf32>
    %45 = arith.subf %41, %44 : vector<8x8xf32>
    %46 = math.exp %45 : vector<8x8xf32>
    %cst_19 = arith.constant dense<0.000000e+00> : vector<8xf32>
    %47 = vector.multi_reduction <add>, %46, %cst_19 [1] : vector<8x8xf32> to vector<8xf32>
    %48 = vector.shape_cast %47 : vector<8xf32> to vector<8x1xf32>
    %49 = tpu.reciprocal %48 {approx = true} : vector<8x1xf32> -> vector<8x1xf32>
    %50 = vector.broadcast %49 : vector<8x1xf32> to vector<8x8xf32>
    %51 = arith.mulf %46, %50 : vector<8x8xf32>
    %cst_20 = arith.constant dense<0.000000e+00> : vector<8x128xf32>
    %52 = tpu.matmul %51, %37, %cst_20 {dimension_numbers = #tpu.dot_dimension_numbers<[1], [0], [0], [1], [0, 0, 1, 1], [], []>} : vector<8x8xf32>, vector<8x128xf32>, vector<8x128xf32> -> vector<8x128xf32>
    %53 = vector.extract_strided_slice %32 {offsets = [0, 128], sizes = [8, 128], strides = [1, 1]} : vector<16x256xf32> to vector<8x128xf32>
    %54 = vector.extract_strided_slice %33 {offsets = [0, 128], sizes = [8, 128], strides = [1, 1]} : vector<16x256xf32> to vector<8x128xf32>
    %55 = vector.extract_strided_slice %34 {offsets = [0, 128], sizes = [8, 128], strides = [1, 1]} : vector<16x256xf32> to vector<8x128xf32>
    %56 = tpu.transpose %54, [1, 0] : vector<8x128xf32> -> vector<128x8xf32>
    %cst_21 = arith.constant dense<0.000000e+00> : vector<8x8xf32>
    %57 = tpu.matmul %53, %56, %cst_21 {dimension_numbers = #tpu.dot_dimension_numbers<[1], [0], [0], [1], [0, 0, 1, 1], [], []>} : vector<8x128xf32>, vector<128x8xf32>, vector<8x8xf32> -> vector<8x8xf32>
    %cst_22 = arith.constant 0.0883883461 : f32
    %58 = vector.broadcast %cst_22 : f32 to vector<8x8xf32>
    %59 = arith.mulf %57, %58 : vector<8x8xf32>
    %cst_23 = arith.constant dense<0xFF800000> : vector<8xf32>
    %60 = vector.multi_reduction <maximumf>, %59, %cst_23 [1] : vector<8x8xf32> to vector<8xf32>
    %61 = vector.shape_cast %60 : vector<8xf32> to vector<8x1xf32>
    %62 = vector.broadcast %61 : vector<8x1xf32> to vector<8x8xf32>
    %63 = arith.subf %59, %62 : vector<8x8xf32>
    %64 = math.exp %63 : vector<8x8xf32>
    %cst_24 = arith.constant dense<0.000000e+00> : vector<8xf32>
    %65 = vector.multi_reduction <add>, %64, %cst_24 [1] : vector<8x8xf32> to vector<8xf32>
    %66 = vector.shape_cast %65 : vector<8xf32> to vector<8x1xf32>
    %67 = tpu.reciprocal %66 {approx = true} : vector<8x1xf32> -> vector<8x1xf32>
    %68 = vector.broadcast %67 : vector<8x1xf32> to vector<8x8xf32>
    %69 = arith.mulf %64, %68 : vector<8x8xf32>
    %cst_25 = arith.constant dense<0.000000e+00> : vector<8x128xf32>
    %70 = tpu.matmul %69, %55, %cst_25 {dimension_numbers = #tpu.dot_dimension_numbers<[1], [0], [0], [1], [0, 0, 1, 1], [], []>} : vector<8x8xf32>, vector<8x128xf32>, vector<8x128xf32> -> vector<8x128xf32>
    %71 = tpu.concatenate %52, %70 in 1 : vector<8x128xf32>, vector<8x128xf32> -> vector<8x256xf32>
    %72 = vector.extract_strided_slice %32 {offsets = [8, 0], sizes = [8, 128], strides = [1, 1]} : vector<16x256xf32> to vector<8x128xf32>
    %73 = vector.extract_strided_slice %33 {offsets = [8, 0], sizes = [8, 128], strides = [1, 1]} : vector<16x256xf32> to vector<8x128xf32>
    %74 = vector.extract_strided_slice %34 {offsets = [8, 0], sizes = [8, 128], strides = [1, 1]} : vector<16x256xf32> to vector<8x128xf32>
    %75 = tpu.transpose %73, [1, 0] : vector<8x128xf32> -> vector<128x8xf32>
    %cst_26 = arith.constant dense<0.000000e+00> : vector<8x8xf32>
    %76 = tpu.matmul %72, %75, %cst_26 {dimension_numbers = #tpu.dot_dimension_numbers<[1], [0], [0], [1], [0, 0, 1, 1], [], []>} : vector<8x128xf32>, vector<128x8xf32>, vector<8x8xf32> -> vector<8x8xf32>
    %cst_27 = arith.constant 0.0883883461 : f32
    %77 = vector.broadcast %cst_27 : f32 to vector<8x8xf32>
    %78 = arith.mulf %76, %77 : vector<8x8xf32>
    %cst_28 = arith.constant dense<0xFF800000> : vector<8xf32>
    %79 = vector.multi_reduction <maximumf>, %78, %cst_28 [1] : vector<8x8xf32> to vector<8xf32>
    %80 = vector.shape_cast %79 : vector<8xf32> to vector<8x1xf32>
    %81 = vector.broadcast %80 : vector<8x1xf32> to vector<8x8xf32>
    %82 = arith.subf %78, %81 : vector<8x8xf32>
    %83 = math.exp %82 : vector<8x8xf32>
    %cst_29 = arith.constant dense<0.000000e+00> : vector<8xf32>
    %84 = vector.multi_reduction <add>, %83, %cst_29 [1] : vector<8x8xf32> to vector<8xf32>
    %85 = vector.shape_cast %84 : vector<8xf32> to vector<8x1xf32>
    %86 = tpu.reciprocal %85 {approx = true} : vector<8x1xf32> -> vector<8x1xf32>
    %87 = vector.broadcast %86 : vector<8x1xf32> to vector<8x8xf32>
    %88 = arith.mulf %83, %87 : vector<8x8xf32>
    %cst_30 = arith.constant dense<0.000000e+00> : vector<8x128xf32>
    %89 = tpu.matmul %88, %74, %cst_30 {dimension_numbers = #tpu.dot_dimension_numbers<[1], [0], [0], [1], [0, 0, 1, 1], [], []>} : vector<8x8xf32>, vector<8x128xf32>, vector<8x128xf32> -> vector<8x128xf32>
    %90 = vector.extract_strided_slice %32 {offsets = [8, 128], sizes = [8, 128], strides = [1, 1]} : vector<16x256xf32> to vector<8x128xf32>
    %91 = vector.extract_strided_slice %33 {offsets = [8, 128], sizes = [8, 128], strides = [1, 1]} : vector<16x256xf32> to vector<8x128xf32>
    %92 = vector.extract_strided_slice %34 {offsets = [8, 128], sizes = [8, 128], strides = [1, 1]} : vector<16x256xf32> to vector<8x128xf32>
    %93 = tpu.transpose %91, [1, 0] : vector<8x128xf32> -> vector<128x8xf32>
    %cst_31 = arith.constant dense<0.000000e+00> : vector<8x8xf32>
    %94 = tpu.matmul %90, %93, %cst_31 {dimension_numbers = #tpu.dot_dimension_numbers<[1], [0], [0], [1], [0, 0, 1, 1], [], []>} : vector<8x128xf32>, vector<128x8xf32>, vector<8x8xf32> -> vector<8x8xf32>
    %cst_32 = arith.constant 0.0883883461 : f32
    %95 = vector.broadcast %cst_32 : f32 to vector<8x8xf32>
    %96 = arith.mulf %94, %95 : vector<8x8xf32>
    %cst_33 = arith.constant dense<0xFF800000> : vector<8xf32>
    %97 = vector.multi_reduction <maximumf>, %96, %cst_33 [1] : vector<8x8xf32> to vector<8xf32>
    %98 = vector.shape_cast %97 : vector<8xf32> to vector<8x1xf32>
    %99 = vector.broadcast %98 : vector<8x1xf32> to vector<8x8xf32>
    %100 = arith.subf %96, %99 : vector<8x8xf32>
    %101 = math.exp %100 : vector<8x8xf32>
    %cst_34 = arith.constant dense<0.000000e+00> : vector<8xf32>
    %102 = vector.multi_reduction <add>, %101, %cst_34 [1] : vector<8x8xf32> to vector<8xf32>
    %103 = vector.shape_cast %102 : vector<8xf32> to vector<8x1xf32>
    %104 = tpu.reciprocal %103 {approx = true} : vector<8x1xf32> -> vector<8x1xf32>
    %105 = vector.broadcast %104 : vector<8x1xf32> to vector<8x8xf32>
    %106 = arith.mulf %101, %105 : vector<8x8xf32>
    %cst_35 = arith.constant dense<0.000000e+00> : vector<8x128xf32>
    %107 = tpu.matmul %106, %92, %cst_35 {dimension_numbers = #tpu.dot_dimension_numbers<[1], [0], [0], [1], [0, 0, 1, 1], [], []>} : vector<8x8xf32>, vector<8x128xf32>, vector<8x128xf32> -> vector<8x128xf32>
    %108 = tpu.concatenate %89, %107 in 1 : vector<8x128xf32>, vector<8x128xf32> -> vector<8x256xf32>
    %109 = tpu.concatenate %71, %108 in 0 : vector<8x256xf32>, vector<8x256xf32> -> vector<16x256xf32>
    %c0_36 = arith.constant 0 : index
    %c0_37 = arith.constant 0 : index
    %c0_38 = arith.constant 0 : index
    %110 = vector.load %arg5[%c0_36, %c0_37, %c0_38] : memref<2x256x256xf32, #tpu.memory_space<vmem>>, vector<1x256x256xf32>
    %111 = vector.shape_cast %110 : vector<1x256x256xf32> to vector<256x256xf32>
    %cst_39 = arith.constant dense<0.000000e+00> : vector<16x256xf32>
    %112 = tpu.matmul %109, %111, %cst_39 {dimension_numbers = #tpu.dot_dimension_numbers<[1], [0], [0], [1], [0, 0, 1, 1], [], []>} : vector<16x256xf32>, vector<256x256xf32>, vector<16x256xf32> -> vector<16x256xf32>
    %c0_40 = arith.constant 0 : index
    %c0_41 = arith.constant 0 : index
    %c0_42 = arith.constant 0 : index
    %113 = vector.load %arg6[%c0_40, %c0_41, %c0_42] : memref<2x1x256xf32, #tpu.memory_space<vmem>>, vector<1x1x256xf32>
    %114 = vector.shape_cast %113 : vector<1x1x256xf32> to vector<1x256xf32>
    %115 = vector.broadcast %114 : vector<1x256xf32> to vector<16x256xf32>
    %116 = arith.addf %112, %115 : vector<16x256xf32>
    %117 = arith.addf %116, %24 : vector<16x256xf32>
    %c0_43 = arith.constant 0 : index
    %c0_44 = arith.constant 0 : index
    %c0_45 = arith.constant 0 : index
    %118 = vector.load %arg7[%c0_43, %c0_44, %c0_45] : memref<2x1x256xf32, #tpu.memory_space<vmem>>, vector<1x1x256xf32>
    %119 = vector.shape_cast %118 : vector<1x1x256xf32> to vector<1x256xf32>
    %c0_46 = arith.constant 0 : index
    %c0_47 = arith.constant 0 : index
    %c0_48 = arith.constant 0 : index
    %120 = vector.load %arg8[%c0_46, %c0_47, %c0_48] : memref<2x1x256xf32, #tpu.memory_space<vmem>>, vector<1x1x256xf32>
    %121 = vector.shape_cast %120 : vector<1x1x256xf32> to vector<1x256xf32>
    %cst_49 = arith.constant dense<0.000000e+00> : vector<16xf32>
    %122 = vector.multi_reduction <add>, %117, %cst_49 [1] : vector<16x256xf32> to vector<16xf32>
    %123 = vector.shape_cast %122 : vector<16xf32> to vector<16x1xf32>
    %cst_50 = arith.constant 2.560000e+02 : f32
    %124 = vector.broadcast %cst_50 : f32 to vector<16x1xf32>
    %125 = arith.divf %123, %124 : vector<16x1xf32>
    %126 = vector.broadcast %125 : vector<16x1xf32> to vector<16x256xf32>
    %127 = arith.subf %117, %126 : vector<16x256xf32>
    %128 = arith.mulf %127, %127 : vector<16x256xf32>
    %cst_51 = arith.constant dense<0.000000e+00> : vector<16xf32>
    %129 = vector.multi_reduction <add>, %128, %cst_51 [1] : vector<16x256xf32> to vector<16xf32>
    %130 = vector.shape_cast %129 : vector<16xf32> to vector<16x1xf32>
    %cst_52 = arith.constant 2.560000e+02 : f32
    %131 = vector.broadcast %cst_52 : f32 to vector<16x1xf32>
    %132 = arith.divf %130, %131 : vector<16x1xf32>
    %133 = vector.broadcast %125 : vector<16x1xf32> to vector<16x256xf32>
    %134 = arith.subf %117, %133 : vector<16x256xf32>
    %cst_53 = arith.constant 9.99999996E-13 : f32
    %135 = vector.broadcast %cst_53 : f32 to vector<16x1xf32>
    %136 = arith.addf %132, %135 : vector<16x1xf32>
    %137 = math.rsqrt %136 : vector<16x1xf32>
    %138 = vector.broadcast %137 : vector<16x1xf32> to vector<16x256xf32>
    %139 = arith.mulf %134, %138 : vector<16x256xf32>
    %140 = vector.broadcast %119 : vector<1x256xf32> to vector<16x256xf32>
    %141 = arith.mulf %139, %140 : vector<16x256xf32>
    %142 = vector.broadcast %121 : vector<1x256xf32> to vector<16x256xf32>
    %143 = arith.addf %141, %142 : vector<16x256xf32>
    %c0_54 = arith.constant 0 : index
    %c0_55 = arith.constant 0 : index
    %c0_56 = arith.constant 0 : index
    %144 = vector.load %arg9[%c0_54, %c0_55, %c0_56] : memref<2x256x512xf32, #tpu.memory_space<vmem>>, vector<1x256x512xf32>
    %145 = vector.shape_cast %144 : vector<1x256x512xf32> to vector<256x512xf32>
    %cst_57 = arith.constant dense<0.000000e+00> : vector<16x512xf32>
    %146 = tpu.matmul %143, %145, %cst_57 {dimension_numbers = #tpu.dot_dimension_numbers<[1], [0], [0], [1], [0, 0, 1, 1], [], []>} : vector<16x256xf32>, vector<256x512xf32>, vector<16x512xf32> -> vector<16x512xf32>
    %c0_58 = arith.constant 0 : index
    %c0_59 = arith.constant 0 : index
    %c0_60 = arith.constant 0 : index
    %147 = vector.load %arg10[%c0_58, %c0_59, %c0_60] : memref<2x1x512xf32, #tpu.memory_space<vmem>>, vector<1x1x512xf32>
    %148 = vector.shape_cast %147 : vector<1x1x512xf32> to vector<1x512xf32>
    %149 = vector.broadcast %148 : vector<1x512xf32> to vector<16x512xf32>
    %150 = arith.addf %146, %149 : vector<16x512xf32>
    %cst_61 = arith.constant 5.000000e-01 : f32
    %151 = vector.broadcast %cst_61 : f32 to vector<16x512xf32>
    %152 = arith.mulf %151, %150 : vector<16x512xf32>
    %cst_62 = arith.constant 0.707106769 : f32
    %153 = vector.broadcast %cst_62 : f32 to vector<16x512xf32>
    %154 = arith.mulf %150, %153 : vector<16x512xf32>
    %155 = math.erf %154 : vector<16x512xf32>
    %cst_63 = arith.constant 1.000000e+00 : f32
    %156 = vector.broadcast %cst_63 : f32 to vector<16x512xf32>
    %157 = arith.addf %156, %155 : vector<16x512xf32>
    %158 = arith.mulf %152, %157 : vector<16x512xf32>
    %c0_64 = arith.constant 0 : index
    %c0_65 = arith.constant 0 : index
    %c0_66 = arith.constant 0 : index
    %159 = vector.load %arg11[%c0_64, %c0_65, %c0_66] : memref<2x512x256xf32, #tpu.memory_space<vmem>>, vector<1x512x256xf32>
    %160 = vector.shape_cast %159 : vector<1x512x256xf32> to vector<512x256xf32>
    %cst_67 = arith.constant dense<0.000000e+00> : vector<16x256xf32>
    %161 = tpu.matmul %158, %160, %cst_67 {dimension_numbers = #tpu.dot_dimension_numbers<[1], [0], [0], [1], [0, 0, 1, 1], [], []>} : vector<16x512xf32>, vector<512x256xf32>, vector<16x256xf32> -> vector<16x256xf32>
    %c0_68 = arith.constant 0 : index
    %c0_69 = arith.constant 0 : index
    %c0_70 = arith.constant 0 : index
    %162 = vector.load %arg12[%c0_68, %c0_69, %c0_70] : memref<2x1x256xf32, #tpu.memory_space<vmem>>, vector<1x1x256xf32>
    %163 = vector.shape_cast %162 : vector<1x1x256xf32> to vector<1x256xf32>
    %164 = vector.broadcast %163 : vector<1x256xf32> to vector<16x256xf32>
    %165 = arith.addf %161, %164 : vector<16x256xf32>
    %166 = arith.addf %165, %143 : vector<16x256xf32>
    %c0_71 = arith.constant 0 : index
    %c0_72 = arith.constant 0 : index
    %c0_73 = arith.constant 0 : index
    %167 = vector.load %arg13[%c0_71, %c0_72, %c0_73] : memref<2x1x256xf32, #tpu.memory_space<vmem>>, vector<1x1x256xf32>
    %168 = vector.shape_cast %167 : vector<1x1x256xf32> to vector<1x256xf32>
    %c0_74 = arith.constant 0 : index
    %c0_75 = arith.constant 0 : index
    %c0_76 = arith.constant 0 : index
    %169 = vector.load %arg14[%c0_74, %c0_75, %c0_76] : memref<2x1x256xf32, #tpu.memory_space<vmem>>, vector<1x1x256xf32>
    %170 = vector.shape_cast %169 : vector<1x1x256xf32> to vector<1x256xf32>
    %cst_77 = arith.constant dense<0.000000e+00> : vector<16xf32>
    %171 = vector.multi_reduction <add>, %166, %cst_77 [1] : vector<16x256xf32> to vector<16xf32>
    %172 = vector.shape_cast %171 : vector<16xf32> to vector<16x1xf32>
    %cst_78 = arith.constant 2.560000e+02 : f32
    %173 = vector.broadcast %cst_78 : f32 to vector<16x1xf32>
    %174 = arith.divf %172, %173 : vector<16x1xf32>
    %175 = vector.broadcast %174 : vector<16x1xf32> to vector<16x256xf32>
    %176 = arith.subf %166, %175 : vector<16x256xf32>
    %177 = arith.mulf %176, %176 : vector<16x256xf32>
    %cst_79 = arith.constant dense<0.000000e+00> : vector<16xf32>
    %178 = vector.multi_reduction <add>, %177, %cst_79 [1] : vector<16x256xf32> to vector<16xf32>
    %179 = vector.shape_cast %178 : vector<16xf32> to vector<16x1xf32>
    %cst_80 = arith.constant 2.560000e+02 : f32
    %180 = vector.broadcast %cst_80 : f32 to vector<16x1xf32>
    %181 = arith.divf %179, %180 : vector<16x1xf32>
    %182 = vector.broadcast %174 : vector<16x1xf32> to vector<16x256xf32>
    %183 = arith.subf %166, %182 : vector<16x256xf32>
    %cst_81 = arith.constant 9.99999996E-13 : f32
    %184 = vector.broadcast %cst_81 : f32 to vector<16x1xf32>
    %185 = arith.addf %181, %184 : vector<16x1xf32>
    %186 = math.rsqrt %185 : vector<16x1xf32>
    %187 = vector.broadcast %186 : vector<16x1xf32> to vector<16x256xf32>
    %188 = arith.mulf %183, %187 : vector<16x256xf32>
    %189 = vector.broadcast %168 : vector<1x256xf32> to vector<16x256xf32>
    %190 = arith.mulf %188, %189 : vector<16x256xf32>
    %191 = vector.broadcast %170 : vector<1x256xf32> to vector<16x256xf32>
    %192 = arith.addf %190, %191 : vector<16x256xf32>
    %c1 = arith.constant 1 : index
    %c0_82 = arith.constant 0 : index
    %c0_83 = arith.constant 0 : index
    %193 = vector.load %arg3[%c1, %c0_82, %c0_83] : memref<2x256x768xf32, #tpu.memory_space<vmem>>, vector<1x256x768xf32>
    %194 = vector.shape_cast %193 : vector<1x256x768xf32> to vector<256x768xf32>
    %cst_84 = arith.constant dense<0.000000e+00> : vector<16x768xf32>
    %195 = tpu.matmul %192, %194, %cst_84 {dimension_numbers = #tpu.dot_dimension_numbers<[1], [0], [0], [1], [0, 0, 1, 1], [], []>} : vector<16x256xf32>, vector<256x768xf32>, vector<16x768xf32> -> vector<16x768xf32>
    %c1_85 = arith.constant 1 : index
    %c0_86 = arith.constant 0 : index
    %c0_87 = arith.constant 0 : index
    %196 = vector.load %arg4[%c1_85, %c0_86, %c0_87] : memref<2x1x768xf32, #tpu.memory_space<vmem>>, vector<1x1x768xf32>
    %197 = vector.shape_cast %196 : vector<1x1x768xf32> to vector<1x768xf32>
    %198 = vector.broadcast %197 : vector<1x768xf32> to vector<16x768xf32>
    %199 = arith.addf %195, %198 : vector<16x768xf32>
    %200 = vector.extract_strided_slice %199 {offsets = [0, 0], sizes = [16, 256], strides = [1, 1]} : vector<16x768xf32> to vector<16x256xf32>
    %201 = vector.extract_strided_slice %199 {offsets = [0, 256], sizes = [16, 256], strides = [1, 1]} : vector<16x768xf32> to vector<16x256xf32>
    %202 = vector.extract_strided_slice %199 {offsets = [0, 512], sizes = [16, 256], strides = [1, 1]} : vector<16x768xf32> to vector<16x256xf32>
    %203 = vector.extract_strided_slice %200 {offsets = [0, 0], sizes = [8, 128], strides = [1, 1]} : vector<16x256xf32> to vector<8x128xf32>
    %204 = vector.extract_strided_slice %201 {offsets = [0, 0], sizes = [8, 128], strides = [1, 1]} : vector<16x256xf32> to vector<8x128xf32>
    %205 = vector.extract_strided_slice %202 {offsets = [0, 0], sizes = [8, 128], strides = [1, 1]} : vector<16x256xf32> to vector<8x128xf32>
    %206 = tpu.transpose %204, [1, 0] : vector<8x128xf32> -> vector<128x8xf32>
    %cst_88 = arith.constant dense<0.000000e+00> : vector<8x8xf32>
    %207 = tpu.matmul %203, %206, %cst_88 {dimension_numbers = #tpu.dot_dimension_numbers<[1], [0], [0], [1], [0, 0, 1, 1], [], []>} : vector<8x128xf32>, vector<128x8xf32>, vector<8x8xf32> -> vector<8x8xf32>
    %cst_89 = arith.constant 0.0883883461 : f32
    %208 = vector.broadcast %cst_89 : f32 to vector<8x8xf32>
    %209 = arith.mulf %207, %208 : vector<8x8xf32>
    %cst_90 = arith.constant dense<0xFF800000> : vector<8xf32>
    %210 = vector.multi_reduction <maximumf>, %209, %cst_90 [1] : vector<8x8xf32> to vector<8xf32>
    %211 = vector.shape_cast %210 : vector<8xf32> to vector<8x1xf32>
    %212 = vector.broadcast %211 : vector<8x1xf32> to vector<8x8xf32>
    %213 = arith.subf %209, %212 : vector<8x8xf32>
    %214 = math.exp %213 : vector<8x8xf32>
    %cst_91 = arith.constant dense<0.000000e+00> : vector<8xf32>
    %215 = vector.multi_reduction <add>, %214, %cst_91 [1] : vector<8x8xf32> to vector<8xf32>
    %216 = vector.shape_cast %215 : vector<8xf32> to vector<8x1xf32>
    %217 = tpu.reciprocal %216 {approx = true} : vector<8x1xf32> -> vector<8x1xf32>
    %218 = vector.broadcast %217 : vector<8x1xf32> to vector<8x8xf32>
    %219 = arith.mulf %214, %218 : vector<8x8xf32>
    %cst_92 = arith.constant dense<0.000000e+00> : vector<8x128xf32>
    %220 = tpu.matmul %219, %205, %cst_92 {dimension_numbers = #tpu.dot_dimension_numbers<[1], [0], [0], [1], [0, 0, 1, 1], [], []>} : vector<8x8xf32>, vector<8x128xf32>, vector<8x128xf32> -> vector<8x128xf32>
    %221 = vector.extract_strided_slice %200 {offsets = [0, 128], sizes = [8, 128], strides = [1, 1]} : vector<16x256xf32> to vector<8x128xf32>
    %222 = vector.extract_strided_slice %201 {offsets = [0, 128], sizes = [8, 128], strides = [1, 1]} : vector<16x256xf32> to vector<8x128xf32>
    %223 = vector.extract_strided_slice %202 {offsets = [0, 128], sizes = [8, 128], strides = [1, 1]} : vector<16x256xf32> to vector<8x128xf32>
    %224 = tpu.transpose %222, [1, 0] : vector<8x128xf32> -> vector<128x8xf32>
    %cst_93 = arith.constant dense<0.000000e+00> : vector<8x8xf32>
    %225 = tpu.matmul %221, %224, %cst_93 {dimension_numbers = #tpu.dot_dimension_numbers<[1], [0], [0], [1], [0, 0, 1, 1], [], []>} : vector<8x128xf32>, vector<128x8xf32>, vector<8x8xf32> -> vector<8x8xf32>
    %cst_94 = arith.constant 0.0883883461 : f32
    %226 = vector.broadcast %cst_94 : f32 to vector<8x8xf32>
    %227 = arith.mulf %225, %226 : vector<8x8xf32>
    %cst_95 = arith.constant dense<0xFF800000> : vector<8xf32>
    %228 = vector.multi_reduction <maximumf>, %227, %cst_95 [1] : vector<8x8xf32> to vector<8xf32>
    %229 = vector.shape_cast %228 : vector<8xf32> to vector<8x1xf32>
    %230 = vector.broadcast %229 : vector<8x1xf32> to vector<8x8xf32>
    %231 = arith.subf %227, %230 : vector<8x8xf32>
    %232 = math.exp %231 : vector<8x8xf32>
    %cst_96 = arith.constant dense<0.000000e+00> : vector<8xf32>
    %233 = vector.multi_reduction <add>, %232, %cst_96 [1] : vector<8x8xf32> to vector<8xf32>
    %234 = vector.shape_cast %233 : vector<8xf32> to vector<8x1xf32>
    %235 = tpu.reciprocal %234 {approx = true} : vector<8x1xf32> -> vector<8x1xf32>
    %236 = vector.broadcast %235 : vector<8x1xf32> to vector<8x8xf32>
    %237 = arith.mulf %232, %236 : vector<8x8xf32>
    %cst_97 = arith.constant dense<0.000000e+00> : vector<8x128xf32>
    %238 = tpu.matmul %237, %223, %cst_97 {dimension_numbers = #tpu.dot_dimension_numbers<[1], [0], [0], [1], [0, 0, 1, 1], [], []>} : vector<8x8xf32>, vector<8x128xf32>, vector<8x128xf32> -> vector<8x128xf32>
    %239 = tpu.concatenate %220, %238 in 1 : vector<8x128xf32>, vector<8x128xf32> -> vector<8x256xf32>
    %240 = vector.extract_strided_slice %200 {offsets = [8, 0], sizes = [8, 128], strides = [1, 1]} : vector<16x256xf32> to vector<8x128xf32>
    %241 = vector.extract_strided_slice %201 {offsets = [8, 0], sizes = [8, 128], strides = [1, 1]} : vector<16x256xf32> to vector<8x128xf32>
    %242 = vector.extract_strided_slice %202 {offsets = [8, 0], sizes = [8, 128], strides = [1, 1]} : vector<16x256xf32> to vector<8x128xf32>
    %243 = tpu.transpose %241, [1, 0] : vector<8x128xf32> -> vector<128x8xf32>
    %cst_98 = arith.constant dense<0.000000e+00> : vector<8x8xf32>
    %244 = tpu.matmul %240, %243, %cst_98 {dimension_numbers = #tpu.dot_dimension_numbers<[1], [0], [0], [1], [0, 0, 1, 1], [], []>} : vector<8x128xf32>, vector<128x8xf32>, vector<8x8xf32> -> vector<8x8xf32>
    %cst_99 = arith.constant 0.0883883461 : f32
    %245 = vector.broadcast %cst_99 : f32 to vector<8x8xf32>
    %246 = arith.mulf %244, %245 : vector<8x8xf32>
    %cst_100 = arith.constant dense<0xFF800000> : vector<8xf32>
    %247 = vector.multi_reduction <maximumf>, %246, %cst_100 [1] : vector<8x8xf32> to vector<8xf32>
    %248 = vector.shape_cast %247 : vector<8xf32> to vector<8x1xf32>
    %249 = vector.broadcast %248 : vector<8x1xf32> to vector<8x8xf32>
    %250 = arith.subf %246, %249 : vector<8x8xf32>
    %251 = math.exp %250 : vector<8x8xf32>
    %cst_101 = arith.constant dense<0.000000e+00> : vector<8xf32>
    %252 = vector.multi_reduction <add>, %251, %cst_101 [1] : vector<8x8xf32> to vector<8xf32>
    %253 = vector.shape_cast %252 : vector<8xf32> to vector<8x1xf32>
    %254 = tpu.reciprocal %253 {approx = true} : vector<8x1xf32> -> vector<8x1xf32>
    %255 = vector.broadcast %254 : vector<8x1xf32> to vector<8x8xf32>
    %256 = arith.mulf %251, %255 : vector<8x8xf32>
    %cst_102 = arith.constant dense<0.000000e+00> : vector<8x128xf32>
    %257 = tpu.matmul %256, %242, %cst_102 {dimension_numbers = #tpu.dot_dimension_numbers<[1], [0], [0], [1], [0, 0, 1, 1], [], []>} : vector<8x8xf32>, vector<8x128xf32>, vector<8x128xf32> -> vector<8x128xf32>
    %258 = vector.extract_strided_slice %200 {offsets = [8, 128], sizes = [8, 128], strides = [1, 1]} : vector<16x256xf32> to vector<8x128xf32>
    %259 = vector.extract_strided_slice %201 {offsets = [8, 128], sizes = [8, 128], strides = [1, 1]} : vector<16x256xf32> to vector<8x128xf32>
    %260 = vector.extract_strided_slice %202 {offsets = [8, 128], sizes = [8, 128], strides = [1, 1]} : vector<16x256xf32> to vector<8x128xf32>
    %261 = tpu.transpose %259, [1, 0] : vector<8x128xf32> -> vector<128x8xf32>
    %cst_103 = arith.constant dense<0.000000e+00> : vector<8x8xf32>
    %262 = tpu.matmul %258, %261, %cst_103 {dimension_numbers = #tpu.dot_dimension_numbers<[1], [0], [0], [1], [0, 0, 1, 1], [], []>} : vector<8x128xf32>, vector<128x8xf32>, vector<8x8xf32> -> vector<8x8xf32>
    %cst_104 = arith.constant 0.0883883461 : f32
    %263 = vector.broadcast %cst_104 : f32 to vector<8x8xf32>
    %264 = arith.mulf %262, %263 : vector<8x8xf32>
    %cst_105 = arith.constant dense<0xFF800000> : vector<8xf32>
    %265 = vector.multi_reduction <maximumf>, %264, %cst_105 [1] : vector<8x8xf32> to vector<8xf32>
    %266 = vector.shape_cast %265 : vector<8xf32> to vector<8x1xf32>
    %267 = vector.broadcast %266 : vector<8x1xf32> to vector<8x8xf32>
    %268 = arith.subf %264, %267 : vector<8x8xf32>
    %269 = math.exp %268 : vector<8x8xf32>
    %cst_106 = arith.constant dense<0.000000e+00> : vector<8xf32>
    %270 = vector.multi_reduction <add>, %269, %cst_106 [1] : vector<8x8xf32> to vector<8xf32>
    %271 = vector.shape_cast %270 : vector<8xf32> to vector<8x1xf32>
    %272 = tpu.reciprocal %271 {approx = true} : vector<8x1xf32> -> vector<8x1xf32>
    %273 = vector.broadcast %272 : vector<8x1xf32> to vector<8x8xf32>
    %274 = arith.mulf %269, %273 : vector<8x8xf32>
    %cst_107 = arith.constant dense<0.000000e+00> : vector<8x128xf32>
    %275 = tpu.matmul %274, %260, %cst_107 {dimension_numbers = #tpu.dot_dimension_numbers<[1], [0], [0], [1], [0, 0, 1, 1], [], []>} : vector<8x8xf32>, vector<8x128xf32>, vector<8x128xf32> -> vector<8x128xf32>
    %276 = tpu.concatenate %257, %275 in 1 : vector<8x128xf32>, vector<8x128xf32> -> vector<8x256xf32>
    %277 = tpu.concatenate %239, %276 in 0 : vector<8x256xf32>, vector<8x256xf32> -> vector<16x256xf32>
    %c1_108 = arith.constant 1 : index
    %c0_109 = arith.constant 0 : index
    %c0_110 = arith.constant 0 : index
    %278 = vector.load %arg5[%c1_108, %c0_109, %c0_110] : memref<2x256x256xf32, #tpu.memory_space<vmem>>, vector<1x256x256xf32>
    %279 = vector.shape_cast %278 : vector<1x256x256xf32> to vector<256x256xf32>
    %cst_111 = arith.constant dense<0.000000e+00> : vector<16x256xf32>
    %280 = tpu.matmul %277, %279, %cst_111 {dimension_numbers = #tpu.dot_dimension_numbers<[1], [0], [0], [1], [0, 0, 1, 1], [], []>} : vector<16x256xf32>, vector<256x256xf32>, vector<16x256xf32> -> vector<16x256xf32>
    %c1_112 = arith.constant 1 : index
    %c0_113 = arith.constant 0 : index
    %c0_114 = arith.constant 0 : index
    %281 = vector.load %arg6[%c1_112, %c0_113, %c0_114] : memref<2x1x256xf32, #tpu.memory_space<vmem>>, vector<1x1x256xf32>
    %282 = vector.shape_cast %281 : vector<1x1x256xf32> to vector<1x256xf32>
    %283 = vector.broadcast %282 : vector<1x256xf32> to vector<16x256xf32>
    %284 = arith.addf %280, %283 : vector<16x256xf32>
    %285 = arith.addf %284, %192 : vector<16x256xf32>
    %c1_115 = arith.constant 1 : index
    %c0_116 = arith.constant 0 : index
    %c0_117 = arith.constant 0 : index
    %286 = vector.load %arg7[%c1_115, %c0_116, %c0_117] : memref<2x1x256xf32, #tpu.memory_space<vmem>>, vector<1x1x256xf32>
    %287 = vector.shape_cast %286 : vector<1x1x256xf32> to vector<1x256xf32>
    %c1_118 = arith.constant 1 : index
    %c0_119 = arith.constant 0 : index
    %c0_120 = arith.constant 0 : index
    %288 = vector.load %arg8[%c1_118, %c0_119, %c0_120] : memref<2x1x256xf32, #tpu.memory_space<vmem>>, vector<1x1x256xf32>
    %289 = vector.shape_cast %288 : vector<1x1x256xf32> to vector<1x256xf32>
    %cst_121 = arith.constant dense<0.000000e+00> : vector<16xf32>
    %290 = vector.multi_reduction <add>, %285, %cst_121 [1] : vector<16x256xf32> to vector<16xf32>
    %291 = vector.shape_cast %290 : vector<16xf32> to vector<16x1xf32>
    %cst_122 = arith.constant 2.560000e+02 : f32
    %292 = vector.broadcast %cst_122 : f32 to vector<16x1xf32>
    %293 = arith.divf %291, %292 : vector<16x1xf32>
    %294 = vector.broadcast %293 : vector<16x1xf32> to vector<16x256xf32>
    %295 = arith.subf %285, %294 : vector<16x256xf32>
    %296 = arith.mulf %295, %295 : vector<16x256xf32>
    %cst_123 = arith.constant dense<0.000000e+00> : vector<16xf32>
    %297 = vector.multi_reduction <add>, %296, %cst_123 [1] : vector<16x256xf32> to vector<16xf32>
    %298 = vector.shape_cast %297 : vector<16xf32> to vector<16x1xf32>
    %cst_124 = arith.constant 2.560000e+02 : f32
    %299 = vector.broadcast %cst_124 : f32 to vector<16x1xf32>
    %300 = arith.divf %298, %299 : vector<16x1xf32>
    %301 = vector.broadcast %293 : vector<16x1xf32> to vector<16x256xf32>
    %302 = arith.subf %285, %301 : vector<16x256xf32>
    %cst_125 = arith.constant 9.99999996E-13 : f32
    %303 = vector.broadcast %cst_125 : f32 to vector<16x1xf32>
    %304 = arith.addf %300, %303 : vector<16x1xf32>
    %305 = math.rsqrt %304 : vector<16x1xf32>
    %306 = vector.broadcast %305 : vector<16x1xf32> to vector<16x256xf32>
    %307 = arith.mulf %302, %306 : vector<16x256xf32>
    %308 = vector.broadcast %287 : vector<1x256xf32> to vector<16x256xf32>
    %309 = arith.mulf %307, %308 : vector<16x256xf32>
    %310 = vector.broadcast %289 : vector<1x256xf32> to vector<16x256xf32>
    %311 = arith.addf %309, %310 : vector<16x256xf32>
    %c1_126 = arith.constant 1 : index
    %c0_127 = arith.constant 0 : index
    %c0_128 = arith.constant 0 : index
    %312 = vector.load %arg9[%c1_126, %c0_127, %c0_128] : memref<2x256x512xf32, #tpu.memory_space<vmem>>, vector<1x256x512xf32>
    %313 = vector.shape_cast %312 : vector<1x256x512xf32> to vector<256x512xf32>
    %cst_129 = arith.constant dense<0.000000e+00> : vector<16x512xf32>
    %314 = tpu.matmul %311, %313, %cst_129 {dimension_numbers = #tpu.dot_dimension_numbers<[1], [0], [0], [1], [0, 0, 1, 1], [], []>} : vector<16x256xf32>, vector<256x512xf32>, vector<16x512xf32> -> vector<16x512xf32>
    %c1_130 = arith.constant 1 : index
    %c0_131 = arith.constant 0 : index
    %c0_132 = arith.constant 0 : index
    %315 = vector.load %arg10[%c1_130, %c0_131, %c0_132] : memref<2x1x512xf32, #tpu.memory_space<vmem>>, vector<1x1x512xf32>
    %316 = vector.shape_cast %315 : vector<1x1x512xf32> to vector<1x512xf32>
    %317 = vector.broadcast %316 : vector<1x512xf32> to vector<16x512xf32>
    %318 = arith.addf %314, %317 : vector<16x512xf32>
    %cst_133 = arith.constant 5.000000e-01 : f32
    %319 = vector.broadcast %cst_133 : f32 to vector<16x512xf32>
    %320 = arith.mulf %319, %318 : vector<16x512xf32>
    %cst_134 = arith.constant 0.707106769 : f32
    %321 = vector.broadcast %cst_134 : f32 to vector<16x512xf32>
    %322 = arith.mulf %318, %321 : vector<16x512xf32>
    %323 = math.erf %322 : vector<16x512xf32>
    %cst_135 = arith.constant 1.000000e+00 : f32
    %324 = vector.broadcast %cst_135 : f32 to vector<16x512xf32>
    %325 = arith.addf %324, %323 : vector<16x512xf32>
    %326 = arith.mulf %320, %325 : vector<16x512xf32>
    %c1_136 = arith.constant 1 : index
    %c0_137 = arith.constant 0 : index
    %c0_138 = arith.constant 0 : index
    %327 = vector.load %arg11[%c1_136, %c0_137, %c0_138] : memref<2x512x256xf32, #tpu.memory_space<vmem>>, vector<1x512x256xf32>
    %328 = vector.shape_cast %327 : vector<1x512x256xf32> to vector<512x256xf32>
    %cst_139 = arith.constant dense<0.000000e+00> : vector<16x256xf32>
    %329 = tpu.matmul %326, %328, %cst_139 {dimension_numbers = #tpu.dot_dimension_numbers<[1], [0], [0], [1], [0, 0, 1, 1], [], []>} : vector<16x512xf32>, vector<512x256xf32>, vector<16x256xf32> -> vector<16x256xf32>
    %c1_140 = arith.constant 1 : index
    %c0_141 = arith.constant 0 : index
    %c0_142 = arith.constant 0 : index
    %330 = vector.load %arg12[%c1_140, %c0_141, %c0_142] : memref<2x1x256xf32, #tpu.memory_space<vmem>>, vector<1x1x256xf32>
    %331 = vector.shape_cast %330 : vector<1x1x256xf32> to vector<1x256xf32>
    %332 = vector.broadcast %331 : vector<1x256xf32> to vector<16x256xf32>
    %333 = arith.addf %329, %332 : vector<16x256xf32>
    %334 = arith.addf %333, %311 : vector<16x256xf32>
    %c1_143 = arith.constant 1 : index
    %c0_144 = arith.constant 0 : index
    %c0_145 = arith.constant 0 : index
    %335 = vector.load %arg13[%c1_143, %c0_144, %c0_145] : memref<2x1x256xf32, #tpu.memory_space<vmem>>, vector<1x1x256xf32>
    %336 = vector.shape_cast %335 : vector<1x1x256xf32> to vector<1x256xf32>
    %c1_146 = arith.constant 1 : index
    %c0_147 = arith.constant 0 : index
    %c0_148 = arith.constant 0 : index
    %337 = vector.load %arg14[%c1_146, %c0_147, %c0_148] : memref<2x1x256xf32, #tpu.memory_space<vmem>>, vector<1x1x256xf32>
    %338 = vector.shape_cast %337 : vector<1x1x256xf32> to vector<1x256xf32>
    %cst_149 = arith.constant dense<0.000000e+00> : vector<16xf32>
    %339 = vector.multi_reduction <add>, %334, %cst_149 [1] : vector<16x256xf32> to vector<16xf32>
    %340 = vector.shape_cast %339 : vector<16xf32> to vector<16x1xf32>
    %cst_150 = arith.constant 2.560000e+02 : f32
    %341 = vector.broadcast %cst_150 : f32 to vector<16x1xf32>
    %342 = arith.divf %340, %341 : vector<16x1xf32>
    %343 = vector.broadcast %342 : vector<16x1xf32> to vector<16x256xf32>
    %344 = arith.subf %334, %343 : vector<16x256xf32>
    %345 = arith.mulf %344, %344 : vector<16x256xf32>
    %cst_151 = arith.constant dense<0.000000e+00> : vector<16xf32>
    %346 = vector.multi_reduction <add>, %345, %cst_151 [1] : vector<16x256xf32> to vector<16xf32>
    %347 = vector.shape_cast %346 : vector<16xf32> to vector<16x1xf32>
    %cst_152 = arith.constant 2.560000e+02 : f32
    %348 = vector.broadcast %cst_152 : f32 to vector<16x1xf32>
    %349 = arith.divf %347, %348 : vector<16x1xf32>
    %350 = vector.broadcast %342 : vector<16x1xf32> to vector<16x256xf32>
    %351 = arith.subf %334, %350 : vector<16x256xf32>
    %cst_153 = arith.constant 9.99999996E-13 : f32
    %352 = vector.broadcast %cst_153 : f32 to vector<16x1xf32>
    %353 = arith.addf %349, %352 : vector<16x1xf32>
    %354 = math.rsqrt %353 : vector<16x1xf32>
    %355 = vector.broadcast %354 : vector<16x1xf32> to vector<16x256xf32>
    %356 = arith.mulf %351, %355 : vector<16x256xf32>
    %357 = vector.broadcast %336 : vector<1x256xf32> to vector<16x256xf32>
    %358 = arith.mulf %356, %357 : vector<16x256xf32>
    %359 = vector.broadcast %338 : vector<1x256xf32> to vector<16x256xf32>
    %360 = arith.addf %358, %359 : vector<16x256xf32>
    %c0_154 = arith.constant 0 : index
    %c0_155 = arith.constant 0 : index
    %361 = vector.load %arg15[%c0_154, %c0_155] : memref<256x256xf32, #tpu.memory_space<vmem>>, vector<256x256xf32>
    %cst_156 = arith.constant dense<0.000000e+00> : vector<16x256xf32>
    %362 = tpu.matmul %360, %361, %cst_156 {dimension_numbers = #tpu.dot_dimension_numbers<[1], [0], [0], [1], [0, 0, 1, 1], [], []>} : vector<16x256xf32>, vector<256x256xf32>, vector<16x256xf32> -> vector<16x256xf32>
    %c0_157 = arith.constant 0 : index
    %c0_158 = arith.constant 0 : index
    %363 = vector.load %arg16[%c0_157, %c0_158] : memref<1x256xf32, #tpu.memory_space<vmem>>, vector<1x256xf32>
    %364 = vector.broadcast %363 : vector<1x256xf32> to vector<16x256xf32>
    %365 = arith.addf %362, %364 : vector<16x256xf32>
    %366 = math.tanh %365 : vector<16x256xf32>
    %c0_159 = arith.constant 0 : index
    %c0_160 = arith.constant 0 : index
    %367 = vector.load %arg17[%c0_159, %c0_160] : memref<256x128xf32, #tpu.memory_space<vmem>>, vector<256x128xf32>
    %cst_161 = arith.constant dense<0.000000e+00> : vector<16x128xf32>
    %368 = tpu.matmul %366, %367, %cst_161 {dimension_numbers = #tpu.dot_dimension_numbers<[1], [0], [0], [1], [0, 0, 1, 1], [], []>} : vector<16x256xf32>, vector<256x128xf32>, vector<16x128xf32> -> vector<16x128xf32>
    %c0_162 = arith.constant 0 : index
    %c0_163 = arith.constant 0 : index
    %369 = vector.load %arg18[%c0_162, %c0_163] : memref<1x128xf32, #tpu.memory_space<vmem>>, vector<1x128xf32>
    %370 = vector.broadcast %369 : vector<1x128xf32> to vector<16x128xf32>
    %371 = arith.addf %368, %370 : vector<16x128xf32>
    %c0_164 = arith.constant 0 : index
    %c0_165 = arith.constant 0 : index
    %372 = vector.load %arg19[%c0_164, %c0_165] : memref<16x128xf32, #tpu.memory_space<vmem>>, vector<16x128xf32>
    tpu.vector_store %arg19[%c0_164, %c0_165], %371 {strides = array<i32>} : memref<16x128xf32, #tpu.memory_space<vmem>>, vector<16x128xf32>,
    return
  }
}

</mosaic_0001>

<llo_original>
// kernel: tpu_custom_call.1
$region0: #{tpu_custom_call.1}
  #allocation0 [shape = 'u32[]', space=smem, size = 0x4, offset = 0x4, fixed_abs, tag = 'smem constant byte address 0x4 - core index']
  #allocation1 [shape = 'u32[72,128]{1,0:T(1,128)}', space=vmem, size = 0x9000, scoped, tag = 'internal scratch']
  %s0 = inlined_call_operand.hbm [shape: f32[16,256], index: 0, kind: input, shape index: {}]
  %s1 = inlined_call_operand.hbm [shape: f32[1,256], index: 1, kind: input, shape index: {}]
  %s2 = inlined_call_operand.hbm [shape: f32[1,256], index: 2, kind: input, shape index: {}]
  %s3 = inlined_call_operand.hbm [shape: f32[2,256,768], index: 3, kind: input, shape index: {}]
  %s4 = inlined_call_operand.hbm [shape: f32[2,1,768], index: 4, kind: input, shape index: {}]
  %s5 = inlined_call_operand.hbm [shape: f32[2,256,256], index: 5, kind: input, shape index: {}]
  %s6 = inlined_call_operand.hbm [shape: f32[2,1,256], index: 6, kind: input, shape index: {}]
  %s7 = inlined_call_operand.hbm [shape: f32[2,1,256], index: 7, kind: input, shape index: {}]
  %s8 = inlined_call_operand.hbm [shape: f32[2,1,256], index: 8, kind: input, shape index: {}]
  %s9 = inlined_call_operand.hbm [shape: f32[2,256,512], index: 9, kind: input, shape index: {}]
  %s10 = inlined_call_operand.hbm [shape: f32[2,1,512], index: 10, kind: input, shape index: {}]
  %s11 = inlined_call_operand.hbm [shape: f32[2,512,256], index: 11, kind: input, shape index: {}]
  %s12 = inlined_call_operand.hbm [shape: f32[2,1,256], index: 12, kind: input, shape index: {}]
  %s13 = inlined_call_operand.hbm [shape: f32[2,1,256], index: 13, kind: input, shape index: {}]
  %s14 = inlined_call_operand.hbm [shape: f32[2,1,256], index: 14, kind: input, shape index: {}]
  %s15 = inlined_call_operand.hbm [shape: f32[256,256], index: 15, kind: input, shape index: {}]
  %s16 = inlined_call_operand.hbm [shape: f32[1,256], index: 16, kind: input, shape index: {}]
  %s17 = inlined_call_operand.hbm [shape: f32[256,128], index: 17, kind: input, shape index: {}]
  %s18 = inlined_call_operand.hbm [shape: f32[1,128], index: 18, kind: input, shape index: {}]
  %s19 = inlined_call_operand.hbm [shape: f32[16,128], index: 19, kind: output, shape index: {}]
  %s20 = sld [smem:[#allocation0]]
  $region162: #{tpu_custom_call.1} parent=0
    _
  %s22 = ssub.s32 1, %s20
  %s23 = scalar_select 0, %s22, %s20
  $region1: #{tpu_custom_call.1} parent=0
    #allocation2 [shape = 'u8[16384]{0}', space=vmem, size = 0x4000, scoped, tag = 'input window, operand 0, single buffered']
    #allocation3 [shape = 's32[1]{0}', space=sflag, size = 0x4, scoped, tag = 'scoped memory for tpu_custom_call.1']
    #allocation4 [shape = 's32[1]{0}', space=sflag, size = 0x4, scoped, tag = 'scoped memory for tpu_custom_call.1']
    #allocation5 [shape = 'u8[1024]{0}', space=vmem, size = 0x400, scoped, tag = 'input window, operand 1, single buffered']
    #allocation6 [shape = 's32[1]{0}', space=sflag, size = 0x4, scoped, tag = 'scoped memory for tpu_custom_call.1']
    #allocation7 [shape = 'u8[1024]{0}', space=vmem, size = 0x400, scoped, tag = 'input window, operand 2, single buffered']
    #allocation8 [shape = 'u8[1572864]{0}', space=vmem, size = 0x180000, scoped, tag = 'input window, operand 3, single buffered']
    #allocation9 [shape = 's32[1]{0}', space=sflag, size = 0x4, scoped, tag = 'scoped memory for tpu_custom_call.1']
    #allocation10 [shape = 'u8[6144]{0}', space=vmem, size = 0x1800, scoped, tag = 'input window, operand 4, single buffered']
    #allocation11 [shape = 'u8[524288]{0}', space=vmem, size = 0x80000, scoped, tag = 'input window, operand 5, single buffered']
    #allocation12 [shape = 's32[1]{0}', space=sflag, size = 0x4, scoped, tag = 'scoped memory for tpu_custom_call.1']
    #allocation13 [shape = 'u8[2048]{0}', space=vmem, size = 0x800, scoped, tag = 'input window, operand 6, single buffered']
    #allocation14 [shape = 'u8[2048]{0}', space=vmem, size = 0x800, scoped, tag = 'input window, operand 7, single buffered']
    #allocation15 [shape = 's32[1]{0}', space=sflag, size = 0x4, scoped, tag = 'scoped memory for tpu_custom_call.1']
    #allocation16 [shape = 'u8[2048]{0}', space=vmem, size = 0x800, scoped, tag = 'input window, operand 8, single buffered']
    #allocation17 [shape = 'u8[1048576]{0}', space=vmem, size = 0x100000, scoped, tag = 'input window, operand 9, single buffered']
    #allocation18 [shape = 's32[1]{0}', space=sflag, size = 0x4, scoped, tag = 'scoped memory for tpu_custom_call.1']
    #allocation19 [shape = 'u8[4096]{0}', space=vmem, size = 0x1000, scoped, tag = 'input window, operand 10, single buffered']
    #allocation20 [shape = 'u8[1048576]{0}', space=vmem, size = 0x100000, scoped, tag = 'input window, operand 11, single buffered']
    #allocation21 [shape = 's32[1]{0}', space=sflag, size = 0x4, scoped, tag = 'scoped memory for tpu_custom_call.1']
    #allocation22 [shape = 'u8[2048]{0}', space=vmem, size = 0x800, scoped, tag = 'input window, operand 12, single buffered']
    #allocation23 [shape = 'u8[2048]{0}', space=vmem, size = 0x800, scoped, tag = 'input window, operand 13, single buffered']
    #allocation24 [shape = 's32[1]{0}', space=sflag, size = 0x4, scoped, tag = 'scoped memory for tpu_custom_call.1']
    #allocation25 [shape = 'u8[2048]{0}', space=vmem, size = 0x800, scoped, tag = 'input window, operand 14, single buffered']
    #allocation26 [shape = 'u8[262144]{0}', space=vmem, size = 0x40000, scoped, tag = 'input window, operand 15, single buffered']
    #allocation27 [shape = 's32[1]{0}', space=sflag, size = 0x4, scoped, tag = 'scoped memory for tpu_custom_call.1']
    #allocation28 [shape = 'u8[1024]{0}', space=vmem, size = 0x400, scoped, tag = 'input window, operand 16, single buffered']
    #allocation29 [shape = 'u8[131072]{0}', space=vmem, size = 0x20000, scoped, tag = 'input window, operand 17, single buffered']
    #allocation30 [shape = 's32[1]{0}', space=sflag, size = 0x4, scoped, tag = 'scoped memory for tpu_custom_call.1']
    #allocation31 [shape = 'u8[512]{0}', space=vmem, size = 0x400, scoped, tag = 'input window, operand 18, single buffered']
    #allocation32 [shape = 'u8[8192]{0}', space=vmem, size = 0x2000, scoped, tag = 'output window, operand 0, single buffered']
    %24 = vsyncpa [#allocation3], 0
    %25 = vsyncpa [#allocation6], 0
    %26 = vsyncpa [#allocation9], 0
    %27 = vsyncpa [#allocation12], 0
    %28 = vsyncpa [#allocation15], 0
    %29 = vsyncpa [#allocation18], 0
    %30 = vsyncpa [#allocation21], 0
    %31 = vsyncpa [#allocation24], 0
    %32 = vsyncpa [#allocation27], 0
    %33 = vsyncpa [#allocation30], 0
    %34 = vsyncpa [#allocation4], 0
    // Predicated region
    $region2: #{tpu_custom_call.1} parent=1 // pred_check
      _
    $region3: #{tpu_custom_call.1} parent=1 // pred_check_branch
      %36 = sbr.rel (0) target = $region5
    $region4: #{tpu_custom_call.1} parent=1 // pred_region
      %38 = vsyncadd [#allocation3], 0
      %s39 = sshll.u32 %s0, 4
      %s40 = int_to_ptr.hbm [resolvable:$true] %s39
      %s41 = sshll.u32 [#allocation2], 4
      %s42 = int_to_ptr.vmem [resolvable:$true] %s41
      %47 = dma.hbm_to_vmem [thread:$0]  %s40, 512, %s42, [#allocation3], 256, 256, 16
    $region5: #{tpu_custom_call.1} parent=1 // pred_fallthru
      _
    // Predicated region
    $region6: #{tpu_custom_call.1} parent=1 // pred_check
      _
    $region7: #{tpu_custom_call.1} parent=1 // pred_check_branch
      %49 = sbr.rel (0) target = $region9
    $region8: #{tpu_custom_call.1} parent=1 // pred_region
      %51 = vsyncadd [#allocation6], 0
      %s53 = sshll.u32 %s1, 4
      %s54 = int_to_ptr.hbm [resolvable:$true] %s53
      %s55 = sshll.u32 [#allocation5], 4
      %s56 = int_to_ptr.vmem [resolvable:$true] %s55
      %58 = dma.hbm_to_vmem [thread:$0]  %s54, 32, %s56, [#allocation6]
    $region9: #{tpu_custom_call.1} parent=1 // pred_fallthru
      _
    // Predicated region
    $region10: #{tpu_custom_call.1} parent=1 // pred_check
      _
    $region11: #{tpu_custom_call.1} parent=1 // pred_check_branch
      %60 = sbr.rel (0) target = $region13
    $region12: #{tpu_custom_call.1} parent=1 // pred_region
      %62 = vsyncadd [#allocation6], 0
      %s64 = sshll.u32 %s2, 4
      %s65 = int_to_ptr.hbm [resolvable:$true] %s64
      %s66 = sshll.u32 [#allocation7], 4
      %s67 = int_to_ptr.vmem [resolvable:$true] %s66
      %69 = dma.hbm_to_vmem [thread:$0]  %s65, 32, %s67, [#allocation6]
    $region13: #{tpu_custom_call.1} parent=1 // pred_fallthru
      _
    // Predicated region
    $region14: #{tpu_custom_call.1} parent=1 // pred_check
      _
    $region15: #{tpu_custom_call.1} parent=1 // pred_check_branch
      %71 = sbr.rel (0) target = $region17
    $region16: #{tpu_custom_call.1} parent=1 // pred_region
      %73 = vsyncadd [#allocation9], 0
      %s74 = sshll.u32 %s3, 4
      %s75 = int_to_ptr.hbm [resolvable:$true] %s74
      %s76 = sshll.u32 [#allocation8], 4
      %s77 = int_to_ptr.vmem [resolvable:$true] %s76
      %82 = dma.hbm_to_vmem [thread:$0]  %s75, 49152, %s77, [#allocation9], 768, 768, 48
    $region17: #{tpu_custom_call.1} parent=1 // pred_fallthru
      _
    // Predicated region
    $region18: #{tpu_custom_call.1} parent=1 // pred_check
      _
    $region19: #{tpu_custom_call.1} parent=1 // pred_check_branch
      %84 = sbr.rel (0) target = $region21
    $region20: #{tpu_custom_call.1} parent=1 // pred_region
      %86 = vsyncadd [#allocation9], 0
      %s87 = sshll.u32 %s4, 4
      %s88 = int_to_ptr.hbm [resolvable:$true] %s87
      %s89 = sshll.u32 [#allocation10], 4
      %s90 = int_to_ptr.vmem [resolvable:$true] %s89
      %95 = dma.hbm_to_vmem [thread:$0]  %s88, 192, %s90, [#allocation9], 96, 96, 6
    $region21: #{tpu_custom_call.1} parent=1 // pred_fallthru
      _
    // Predicated region
    $region22: #{tpu_custom_call.1} parent=1 // pred_check
      _
    $region23: #{tpu_custom_call.1} parent=1 // pred_check_branch
      %97 = sbr.rel (0) target = $region25
    $region24: #{tpu_custom_call.1} parent=1 // pred_region
      %99 = vsyncadd [#allocation12], 0
      %s100 = sshll.u32 %s5, 4
      %s101 = int_to_ptr.hbm [resolvable:$true] %s100
      %s102 = sshll.u32 [#allocation11], 4
      %s103 = int_to_ptr.vmem [resolvable:$true] %s102
      %108 = dma.hbm_to_vmem [thread:$0]  %s101, 16384, %s103, [#allocation12], 256, 256, 16
    $region25: #{tpu_custom_call.1} parent=1 // pred_fallthru
      _
    // Predicated region
    $region26: #{tpu_custom_call.1} parent=1 // pred_check
      _
    $region27: #{tpu_custom_call.1} parent=1 // pred_check_branch
      %110 = sbr.rel (0) target = $region29
    $region28: #{tpu_custom_call.1} parent=1 // pred_region
      %112 = vsyncadd [#allocation12], 0
      %s113 = sshll.u32 %s6, 4
      %s114 = int_to_ptr.hbm [resolvable:$true] %s113
      %s115 = sshll.u32 [#allocation13], 4
      %s116 = int_to_ptr.vmem [resolvable:$true] %s115
      %121 = dma.hbm_to_vmem [thread:$0]  %s114, 64, %s116, [#allocation12], 32, 32, 2
    $region29: #{tpu_custom_call.1} parent=1 // pred_fallthru
      _
    // Predicated region
    $region30: #{tpu_custom_call.1} parent=1 // pred_check
      _
    $region31: #{tpu_custom_call.1} parent=1 // pred_check_branch
      %123 = sbr.rel (0) target = $region33
    $region32: #{tpu_custom_call.1} parent=1 // pred_region
      %125 = vsyncadd [#allocation15], 0
      %s126 = sshll.u32 %s7, 4
      %s127 = int_to_ptr.hbm [resolvable:$true] %s126
      %s128 = sshll.u32 [#allocation14], 4
      %s129 = int_to_ptr.vmem [resolvable:$true] %s128
      %134 = dma.hbm_to_vmem [thread:$0]  %s127, 64, %s129, [#allocation15], 32, 32, 2
    $region33: #{tpu_custom_call.1} parent=1 // pred_fallthru
      _
    // Predicated region
    $region34: #{tpu_custom_call.1} parent=1 // pred_check
      _
    $region35: #{tpu_custom_call.1} parent=1 // pred_check_branch
      %136 = sbr.rel (0) target = $region37
    $region36: #{tpu_custom_call.1} parent=1 // pred_region
      %138 = vsyncadd [#allocation15], 0
      %s139 = sshll.u32 %s8, 4
      %s140 = int_to_ptr.hbm [resolvable:$true] %s139
      %s141 = sshll.u32 [#allocation16], 4
      %s142 = int_to_ptr.vmem [resolvable:$true] %s141
      %147 = dma.hbm_to_vmem [thread:$0]  %s140, 64, %s142, [#allocation15], 32, 32, 2
    $region37: #{tpu_custom_call.1} parent=1 // pred_fallthru
      _
    // Predicated region
    $region38: #{tpu_custom_call.1} parent=1 // pred_check
      _
    $region39: #{tpu_custom_call.1} parent=1 // pred_check_branch
      %149 = sbr.rel (0) target = $region41
    $region40: #{tpu_custom_call.1} parent=1 // pred_region
      %151 = vsyncadd [#allocation18], 0
      %s152 = sshll.u32 %s9, 4
      %s153 = int_to_ptr.hbm [resolvable:$true] %s152
      %s154 = sshll.u32 [#allocation17], 4
      %s155 = int_to_ptr.vmem [resolvable:$true] %s154
      %160 = dma.hbm_to_vmem [thread:$0]  %s153, 32768, %s155, [#allocation18], 512, 512, 32
    $region41: #{tpu_custom_call.1} parent=1 // pred_fallthru
      _
    // Predicated region
    $region42: #{tpu_custom_call.1} parent=1 // pred_check
      _
    $region43: #{tpu_custom_call.1} parent=1 // pred_check_branch
      %162 = sbr.rel (0) target = $region45
    $region44: #{tpu_custom_call.1} parent=1 // pred_region
      %164 = vsyncadd [#allocation18], 0
      %s165 = sshll.u32 %s10, 4
      %s166 = int_to_ptr.hbm [resolvable:$true] %s165
      %s167 = sshll.u32 [#allocation19], 4
      %s168 = int_to_ptr.vmem [resolvable:$true] %s167
      %173 = dma.hbm_to_vmem [thread:$0]  %s166, 128, %s168, [#allocation18], 64, 64, 4
    $region45: #{tpu_custom_call.1} parent=1 // pred_fallthru
      _
    // Predicated region
    $region46: #{tpu_custom_call.1} parent=1 // pred_check
      _
    $region47: #{tpu_custom_call.1} parent=1 // pred_check_branch
      %175 = sbr.rel (0) target = $region49
    $region48: #{tpu_custom_call.1} parent=1 // pred_region
      %177 = vsyncadd [#allocation21], 0
      %s178 = sshll.u32 %s11, 4
      %s179 = int_to_ptr.hbm [resolvable:$true] %s178
      %s180 = sshll.u32 [#allocation20], 4
      %s181 = int_to_ptr.vmem [resolvable:$true] %s180
      %186 = dma.hbm_to_vmem [thread:$0]  %s179, 32768, %s181, [#allocation21], 256, 256, 16
    $region49: #{tpu_custom_call.1} parent=1 // pred_fallthru
      _
    // Predicated region
    $region50: #{tpu_custom_call.1} parent=1 // pred_check
      _
    $region51: #{tpu_custom_call.1} parent=1 // pred_check_branch
      %188 = sbr.rel (0) target = $region53
    $region52: #{tpu_custom_call.1} parent=1 // pred_region
      %190 = vsyncadd [#allocation21], 0
      %s191 = sshll.u32 %s12, 4
      %s192 = int_to_ptr.hbm [resolvable:$true] %s191
      %s193 = sshll.u32 [#allocation22], 4
      %s194 = int_to_ptr.vmem [resolvable:$true] %s193
      %199 = dma.hbm_to_vmem [thread:$0]  %s192, 64, %s194, [#allocation21], 32, 32, 2
    $region53: #{tpu_custom_call.1} parent=1 // pred_fallthru
      _
    // Predicated region
    $region54: #{tpu_custom_call.1} parent=1 // pred_check
      _
    $region55: #{tpu_custom_call.1} parent=1 // pred_check_branch
      %201 = sbr.rel (0) target = $region57
    $region56: #{tpu_custom_call.1} parent=1 // pred_region
      %203 = vsyncadd [#allocation24], 0
      %s204 = sshll.u32 %s13, 4
      %s205 = int_to_ptr.hbm [resolvable:$true] %s204
      %s206 = sshll.u32 [#allocation23], 4
      %s207 = int_to_ptr.vmem [resolvable:$true] %s206
      %212 = dma.hbm_to_vmem [thread:$0]  %s205, 64, %s207, [#allocation24], 32, 32, 2
    $region57: #{tpu_custom_call.1} parent=1 // pred_fallthru
      _
    // Predicated region
    $region58: #{tpu_custom_call.1} parent=1 // pred_check
      _
    $region59: #{tpu_custom_call.1} parent=1 // pred_check_branch
      %214 = sbr.rel (0) target = $region61
    $region60: #{tpu_custom_call.1} parent=1 // pred_region
      %216 = vsyncadd [#allocation24], 0
      %s217 = sshll.u32 %s14, 4
      %s218 = int_to_ptr.hbm [resolvable:$true] %s217
      %s219 = sshll.u32 [#allocation25], 4
      %s220 = int_to_ptr.vmem [resolvable:$true] %s219
      %225 = dma.hbm_to_vmem [thread:$0]  %s218, 64, %s220, [#allocation24], 32, 32, 2
    $region61: #{tpu_custom_call.1} parent=1 // pred_fallthru
      _
    // Predicated region
    $region62: #{tpu_custom_call.1} parent=1 // pred_check
      _
    $region63: #{tpu_custom_call.1} parent=1 // pred_check_branch
      %227 = sbr.rel (0) target = $region65
    $region64: #{tpu_custom_call.1} parent=1 // pred_region
      %229 = vsyncadd [#allocation27], 0
      %s230 = sshll.u32 %s15, 4
      %s231 = int_to_ptr.hbm [resolvable:$true] %s230
      %s232 = sshll.u32 [#allocation26], 4
      %s233 = int_to_ptr.vmem [resolvable:$true] %s232
      %238 = dma.hbm_to_vmem [thread:$0]  %s231, 8192, %s233, [#allocation27], 256, 256, 16
    $region65: #{tpu_custom_call.1} parent=1 // pred_fallthru
      _
    // Predicated region
    $region66: #{tpu_custom_call.1} parent=1 // pred_check
      _
    $region67: #{tpu_custom_call.1} parent=1 // pred_check_branch
      %240 = sbr.rel (0) target = $region69
    $region68: #{tpu_custom_call.1} parent=1 // pred_region
      %242 = vsyncadd [#allocation27], 0
      %s244 = sshll.u32 %s16, 4
      %s245 = int_to_ptr.hbm [resolvable:$true] %s244
      %s246 = sshll.u32 [#allocation28], 4
      %s247 = int_to_ptr.vmem [resolvable:$true] %s246
      %249 = dma.hbm_to_vmem [thread:$0]  %s245, 32, %s247, [#allocation27]
    $region69: #{tpu_custom_call.1} parent=1 // pred_fallthru
      _
    // Predicated region
    $region70: #{tpu_custom_call.1} parent=1 // pred_check
      _
    $region71: #{tpu_custom_call.1} parent=1 // pred_check_branch
      %251 = sbr.rel (0) target = $region73
    $region72: #{tpu_custom_call.1} parent=1 // pred_region
      %253 = vsyncadd [#allocation30], 0
      %s254 = sshll.u32 %s17, 4
      %s255 = int_to_ptr.hbm [resolvable:$true] %s254
      %s256 = sshll.u32 [#allocation29], 4
      %s257 = int_to_ptr.vmem [resolvable:$true] %s256
      %262 = dma.hbm_to_vmem [thread:$0]  %s255, 4096, %s257, [#allocation30], 128, 128, 8
    $region73: #{tpu_custom_call.1} parent=1 // pred_fallthru
      _
    // Predicated region
    $region74: #{tpu_custom_call.1} parent=1 // pred_check
      _
    $region75: #{tpu_custom_call.1} parent=1 // pred_check_branch
      %264 = sbr.rel (0) target = $region77
    $region76: #{tpu_custom_call.1} parent=1 // pred_region
      %266 = vsyncadd [#allocation30], 0
      %s268 = sshll.u32 %s18, 4
      %s269 = int_to_ptr.hbm [resolvable:$true] %s268
      %s270 = sshll.u32 [#allocation31], 4
      %s271 = int_to_ptr.vmem [resolvable:$true] %s270
      %273 = dma.hbm_to_vmem [thread:$0]  %s269, 16, %s271, [#allocation30]
    $region77: #{tpu_custom_call.1} parent=1 // pred_fallthru
      _
    // Predicated region
    $region78: #{tpu_custom_call.1} parent=1 // pred_check
      _
    $region79: #{tpu_custom_call.1} parent=1 // pred_check_branch
      %275 = sbr.rel (0) target = $region81
    $region80: #{tpu_custom_call.1} parent=1 // pred_region
      %277 = dma.done [#allocation3], 512
    $region81: #{tpu_custom_call.1} parent=1 // pred_fallthru
      _
    // Predicated region
    $region82: #{tpu_custom_call.1} parent=1 // pred_check
      _
    $region83: #{tpu_custom_call.1} parent=1 // pred_check_branch
      %279 = sbr.rel (0) target = $region85
    $region84: #{tpu_custom_call.1} parent=1 // pred_region
      %281 = dma.done [#allocation6], 32
    $region85: #{tpu_custom_call.1} parent=1 // pred_fallthru
      _
    // Predicated region
    $region86: #{tpu_custom_call.1} parent=1 // pred_check
      _
    $region87: #{tpu_custom_call.1} parent=1 // pred_check_branch
      %283 = sbr.rel (0) target = $region89
    $region88: #{tpu_custom_call.1} parent=1 // pred_region
      %285 = dma.done [#allocation6], 32
    $region89: #{tpu_custom_call.1} parent=1 // pred_fallthru
      _
    // Predicated region
    $region90: #{tpu_custom_call.1} parent=1 // pred_check
      _
    $region91: #{tpu_custom_call.1} parent=1 // pred_check_branch
      %287 = sbr.rel (0) target = $region93
    $region92: #{tpu_custom_call.1} parent=1 // pred_region
      %289 = dma.done [#allocation9], 49152
    $region93: #{tpu_custom_call.1} parent=1 // pred_fallthru
      _
    // Predicated region
    $region94: #{tpu_custom_call.1} parent=1 // pred_check
      _
    $region95: #{tpu_custom_call.1} parent=1 // pred_check_branch
      %291 = sbr.rel (0) target = $region97
    $region96: #{tpu_custom_call.1} parent=1 // pred_region
      %293 = dma.done [#allocation9], 192
    $region97: #{tpu_custom_call.1} parent=1 // pred_fallthru
      _
    // Predicated region
    $region98: #{tpu_custom_call.1} parent=1 // pred_check
      _
    $region99: #{tpu_custom_call.1} parent=1 // pred_check_branch
      %295 = sbr.rel (0) target = $region101
    $region100: #{tpu_custom_call.1} parent=1 // pred_region
      %297 = dma.done [#allocation12], 16384
    $region101: #{tpu_custom_call.1} parent=1 // pred_fallthru
      _
    // Predicated region
    $region102: #{tpu_custom_call.1} parent=1 // pred_check
      _
    $region103: #{tpu_custom_call.1} parent=1 // pred_check_branch
      %299 = sbr.rel (0) target = $region105
    $region104: #{tpu_custom_call.1} parent=1 // pred_region
      %301 = dma.done [#allocation12], 64
    $region105: #{tpu_custom_call.1} parent=1 // pred_fallthru
      _
    // Predicated region
    $region106: #{tpu_custom_call.1} parent=1 // pred_check
      _
    $region107: #{tpu_custom_call.1} parent=1 // pred_check_branch
      %303 = sbr.rel (0) target = $region109
    $region108: #{tpu_custom_call.1} parent=1 // pred_region
      %305 = dma.done [#allocation15], 64
    $region109: #{tpu_custom_call.1} parent=1 // pred_fallthru
      _
    // Predicated region
    $region110: #{tpu_custom_call.1} parent=1 // pred_check
      _
    $region111: #{tpu_custom_call.1} parent=1 // pred_check_branch
      %307 = sbr.rel (0) target = $region113
    $region112: #{tpu_custom_call.1} parent=1 // pred_region
      %309 = dma.done [#allocation15], 64
    $region113: #{tpu_custom_call.1} parent=1 // pred_fallthru
      _
    // Predicated region
    $region114: #{tpu_custom_call.1} parent=1 // pred_check
      _
    $region115: #{tpu_custom_call.1} parent=1 // pred_check_branch
      %311 = sbr.rel (0) target = $region117
    $region116: #{tpu_custom_call.1} parent=1 // pred_region
      %313 = dma.done [#allocation18], 32768
    $region117: #{tpu_custom_call.1} parent=1 // pred_fallthru
      _
    // Predicated region
    $region118: #{tpu_custom_call.1} parent=1 // pred_check
      _
    $region119: #{tpu_custom_call.1} parent=1 // pred_check_branch
      %315 = sbr.rel (0) target = $region121
    $region120: #{tpu_custom_call.1} parent=1 // pred_region
      %317 = dma.done [#allocation18], 128
    $region121: #{tpu_custom_call.1} parent=1 // pred_fallthru
      _
    // Predicated region
    $region122: #{tpu_custom_call.1} parent=1 // pred_check
      _
    $region123: #{tpu_custom_call.1} parent=1 // pred_check_branch
      %319 = sbr.rel (0) target = $region125
    $region124: #{tpu_custom_call.1} parent=1 // pred_region
      %321 = dma.done [#allocation21], 32768
    $region125: #{tpu_custom_call.1} parent=1 // pred_fallthru
      _
    // Predicated region
    $region126: #{tpu_custom_call.1} parent=1 // pred_check
      _
    $region127: #{tpu_custom_call.1} parent=1 // pred_check_branch
      %323 = sbr.rel (0) target = $region129
    $region128: #{tpu_custom_call.1} parent=1 // pred_region
      %325 = dma.done [#allocation21], 64
    $region129: #{tpu_custom_call.1} parent=1 // pred_fallthru
      _
    // Predicated region
    $region130: #{tpu_custom_call.1} parent=1 // pred_check
      _
    $region131: #{tpu_custom_call.1} parent=1 // pred_check_branch
      %327 = sbr.rel (0) target = $region133
    $region132: #{tpu_custom_call.1} parent=1 // pred_region
      %329 = dma.done [#allocation24], 64
    $region133: #{tpu_custom_call.1} parent=1 // pred_fallthru
      _
    // Predicated region
    $region134: #{tpu_custom_call.1} parent=1 // pred_check
      _
    $region135: #{tpu_custom_call.1} parent=1 // pred_check_branch
      %331 = sbr.rel (0) target = $region137
    $region136: #{tpu_custom_call.1} parent=1 // pred_region
      %333 = dma.done [#allocation24], 64
    $region137: #{tpu_custom_call.1} parent=1 // pred_fallthru
      _
    // Predicated region
    $region138: #{tpu_custom_call.1} parent=1 // pred_check
      _
    $region139: #{tpu_custom_call.1} parent=1 // pred_check_branch
      %335 = sbr.rel (0) target = $region141
    $region140: #{tpu_custom_call.1} parent=1 // pred_region
      %337 = dma.done [#allocation27], 8192
    $region141: #{tpu_custom_call.1} parent=1 // pred_fallthru
      _
    // Predicated region
    $region142: #{tpu_custom_call.1} parent=1 // pred_check
      _
    $region143: #{tpu_custom_call.1} parent=1 // pred_check_branch
      %339 = sbr.rel (0) target = $region145
    $region144: #{tpu_custom_call.1} parent=1 // pred_region
      %341 = dma.done [#allocation27], 32
    $region145: #{tpu_custom_call.1} parent=1 // pred_fallthru
      _
    // Predicated region
    $region146: #{tpu_custom_call.1} parent=1 // pred_check
      _
    $region147: #{tpu_custom_call.1} parent=1 // pred_check_branch
      %343 = sbr.rel (0) target = $region149
    $region148: #{tpu_custom_call.1} parent=1 // pred_region
      %345 = dma.done [#allocation30], 4096
    $region149: #{tpu_custom_call.1} parent=1 // pred_fallthru
      _
    // Predicated region
    $region150: #{tpu_custom_call.1} parent=1 // pred_check
      _
    $region151: #{tpu_custom_call.1} parent=1 // pred_check_branch
      %347 = sbr.rel (0) target = $region153
    $region152: #{tpu_custom_call.1} parent=1 // pred_region
      %349 = dma.done [#allocation30], 16
    $region153: #{tpu_custom_call.1} parent=1 // pred_fallthru
      _
    %v350 = vld [vmem:[#allocation2] sm:$0xff]
    %v351 = vld [vmem:[#allocation2 + $0x8] sm:$0xff]
    %v352 = vld [vmem:[#allocation2 + $0x10] sm:$0xff]
    %v353 = vld [vmem:[#allocation2 + $0x18] sm:$0xff]
    %v354 = vld [vmem:[#allocation5] sm:$0x3]
    %v355 = vld [vmem:[#allocation7] sm:$0x3]
    %v356 = vadd.f32 %v350, %v351
    %357 = vadd.xlane.f32.xlu0 %v356
    %v358 = vpop.xlane.xlu0 %357
    %v359 = vadd.f32 %v352, %v353
    %360 = vadd.xlane.f32.xlu0 %v359
    %v361 = vpop.xlane.xlu0 %360
    %v362 = vrcp.pop 256.0
    %v363 = vmul.f32 256.0, %v362
    %v364 = vsub.f32 1.0, %v363
    %v365 = vmul.f32 %v362, %v364
    %v366 = vadd.f32 %v362, %v365
    %vm367 = vweird.f32 %v362
    %v368 = vsel %vm367, %v362, %v366
    %v369 = vmul.f32 %v358, %v368
    %v370 = vmul.f32 %v361, %v368
    %v371 = vsub.f32 %v350, %v369
    %v372 = vsub.f32 %v351, %v369
    %v373 = vsub.f32 %v352, %v370
    %v374 = vsub.f32 %v353, %v370
    %v375 = vmul.f32 %v371, %v371
    %v376 = vmul.f32 %v372, %v372
    %v377 = vmul.f32 %v373, %v373
    %v378 = vmul.f32 %v374, %v374
    %v379 = vadd.f32 %v375, %v376
    %380 = vadd.xlane.f32.xlu0 %v379
    %v381 = vpop.xlane.xlu0 %380
    %v382 = vadd.f32 %v377, %v378
    %383 = vadd.xlane.f32.xlu0 %v382
    %v384 = vpop.xlane.xlu0 %383
    %v385 = vmul.f32 %v381, %v368
    %v386 = vmul.f32 %v384, %v368
    %v387 = vadd.f32 %v385, 1e-12
    %v388 = vadd.f32 %v386, 1e-12
    %v389 = vrsqrt.pop %v387
    %v390 = vmul.f32 %v389, %v387
    %v391 = vmul.f32 %v390, %v389
    %v392 = vmul.f32 0.5, %v391
    %v393 = vsub.f32 1.5, %v392
    %v394 = vmul.f32 %v389, %v393
    %vm395 = vweird.f32 %v387
    %vm396 = vweird.f32 %v389
    %vm397 = vmor %vm395, %vm396
    %v398 = vsel %vm397, %v389, %v394
    %v399 = vrsqrt.pop %v388
    %v400 = vmul.f32 %v399, %v388
    %v401 = vmul.f32 %v400, %v399
    %v402 = vmul.f32 0.5, %v401
    %v403 = vsub.f32 1.5, %v402
    %v404 = vmul.f32 %v399, %v403
    %vm405 = vweird.f32 %v388
    %vm406 = vweird.f32 %v399
    %vm407 = vmor %vm405, %vm406
    %v408 = vsel %vm407, %v399, %v404
    %v409 = vmul.f32 %v371, %v398
    %v410 = vmul.f32 %v372, %v398
    %v411 = vmul.f32 %v373, %v408
    %v412 = vmul.f32 %v374, %v408
    %v414 = vperm.slane %v354, 0
    %v415 = vperm.slane %v354, 1
    %v418 = vmul.f32 %v409, %v414
    %v419 = vmul.f32 %v410, %v415
    %v420 = vmul.f32 %v411, %v414
    %v421 = vmul.f32 %v412, %v415
    %v423 = vperm.slane %v355, 0
    %v424 = vperm.slane %v355, 1
    %v427 = vadd.f32 %v418, %v423
    %v428 = vadd.f32 %v419, %v424
    %v429 = vadd.f32 %v420, %v423
    %v430 = vadd.f32 %v421, %v424
    %v431 = vld [vmem:[#allocation8] sm:$0xff]
    %v432 = vld [vmem:[#allocation8 + $0x8] sm:$0xff]
    %v433 = vld [vmem:[#allocation8 + $0x10] sm:$0xff]
    %v434 = vld [vmem:[#allocation8 + $0x18] sm:$0xff]
    %v435 = vld [vmem:[#allocation8 + $0x20] sm:$0xff]
    %v436 = vld [vmem:[#allocation8 + $0x28] sm:$0xff]
    %v437 = vld [vmem:[#allocation8 + $0x30] sm:$0xff]
    %v438 = vld [vmem:[#allocation8 + $0x38] sm:$0xff]
    %v439 = vld [vmem:[#allocation8 + $0x40] sm:$0xff]
    %v440 = vld [vmem:[#allocation8 + $0x48] sm:$0xff]
    %v441 = vld [vmem:[#allocation8 + $0x50] sm:$0xff]
    %v442 = vld [vmem:[#allocation8 + $0x58] sm:$0xff]
    %v443 = vld [vmem:[#allocation8 + $0x60] sm:$0xff]
    %v444 = vld [vmem:[#allocation8 + $0x68] sm:$0xff]
    %v445 = vld [vmem:[#allocation8 + $0x70] sm:$0xff]
    %v446 = vld [vmem:[#allocation8 + $0x78] sm:$0xff]
    %v447 = vld [vmem:[#allocation8 + $0x80] sm:$0xff]
    %v448 = vld [vmem:[#allocation8 + $0x88] sm:$0xff]
    %v449 = vld [vmem:[#allocation8 + $0x90] sm:$0xff]
    %v450 = vld [vmem:[#allocation8 + $0x98] sm:$0xff]
    %v451 = vld [vmem:[#allocation8 + $0xa0] sm:$0xff]
    %v452 = vld [vmem:[#allocation8 + $0xa8] sm:$0xff]
    %v453 = vld [vmem:[#allocation8 + $0xb0] sm:$0xff]
    %v454 = vld [vmem:[#allocation8 + $0xb8] sm:$0xff]
    %v455 = vld [vmem:[#allocation8 + $0xc0] sm:$0xff]
    %v456 = vld [vmem:[#allocation8 + $0xc8] sm:$0xff]
    %v457 = vld [vmem:[#allocation8 + $0xd0] sm:$0xff]
    %v458 = vld [vmem:[#allocation8 + $0xd8] sm:$0xff]
    %v459 = vld [vmem:[#allocation8 + $0xe0] sm:$0xff]
    %v460 = vld [vmem:[#allocation8 + $0xe8] sm:$0xff]
    %v461 = vld [vmem:[#allocation8 + $0xf0] sm:$0xff]
    %v462 = vld [vmem:[#allocation8 + $0xf8] sm:$0xff]
    %v463 = vld [vmem:[#allocation8 + $0x100] sm:$0xff]
    %v464 = vld [vmem:[#allocation8 + $0x108] sm:$0xff]
    %v465 = vld [vmem:[#allocation8 + $0x110] sm:$0xff]
    %v466 = vld [vmem:[#allocation8 + $0x118] sm:$0xff]
    %v467 = vld [vmem:[#allocation8 + $0x120] sm:$0xff]
    %v468 = vld [vmem:[#allocation8 + $0x128] sm:$0xff]
    %v469 = vld [vmem:[#allocation8 + $0x130] sm:$0xff]
    %v470 = vld [vmem:[#allocation8 + $0x138] sm:$0xff]
    %v471 = vld [vmem:[#allocation8 + $0x140] sm:$0xff]
    %v472 = vld [vmem:[#allocation8 + $0x148] sm:$0xff]
    %v473 = vld [vmem:[#allocation8 + $0x150] sm:$0xff]
    %v474 = vld [vmem:[#allocation8 + $0x158] sm:$0xff]
    %v475 = vld [vmem:[#allocation8 + $0x160] sm:$0xff]
    %v476 = vld [vmem:[#allocation8 + $0x168] sm:$0xff]
    %v477 = vld [vmem:[#allocation8 + $0x170] sm:$0xff]
    %v478 = vld [vmem:[#allocation8 + $0x178] sm:$0xff]
    %v479 = vld [vmem:[#allocation8 + $0x180] sm:$0xff]
    %v480 = vld [vmem:[#allocation8 + $0x188] sm:$0xff]
    %v481 = vld [vmem:[#allocation8 + $0x190] sm:$0xff]
    %v482 = vld [vmem:[#allocation8 + $0x198] sm:$0xff]
    %v483 = vld [vmem:[#allocation8 + $0x1a0] sm:$0xff]
    %v484 = vld [vmem:[#allocation8 + $0x1a8] sm:$0xff]
    %v485 = vld [vmem:[#allocation8 + $0x1b0] sm:$0xff]
    %v486 = vld [vmem:[#allocation8 + $0x1b8] sm:$0xff]
    %v487 = vld [vmem:[#allocation8 + $0x1c0] sm:$0xff]
    %v488 = vld [vmem:[#allocation8 + $0x1c8] sm:$0xff]
    %v489 = vld [vmem:[#allocation8 + $0x1d0] sm:$0xff]
    %v490 = vld [vmem:[#allocation8 + $0x1d8] sm:$0xff]
    %v491 = vld [vmem:[#allocation8 + $0x1e0] sm:$0xff]
    %v492 = vld [vmem:[#allocation8 + $0x1e8] sm:$0xff]
    %v493 = vld [vmem:[#allocation8 + $0x1f0] sm:$0xff]
    %v494 = vld [vmem:[#allocation8 + $0x1f8] sm:$0xff]
    %v495 = vld [vmem:[#allocation8 + $0x200] sm:$0xff]
    %v496 = vld [vmem:[#allocation8 + $0x208] sm:$0xff]
    %v497 = vld [vmem:[#allocation8 + $0x210] sm:$0xff]
    %v498 = vld [vmem:[#allocation8 + $0x218] sm:$0xff]
    %v499 = vld [vmem:[#allocation8 + $0x220] sm:$0xff]
    %v500 = vld [vmem:[#allocation8 + $0x228] sm:$0xff]
    %v501 = vld [vmem:[#allocation8 + $0x230] sm:$0xff]
    %v502 = vld [vmem:[#allocation8 + $0x238] sm:$0xff]
    %v503 = vld [vmem:[#allocation8 + $0x240] sm:$0xff]
    %v504 = vld [vmem:[#allocation8 + $0x248] sm:$0xff]
    %v505 = vld [vmem:[#allocation8 + $0x250] sm:$0xff]
    %v506 = vld [vmem:[#allocation8 + $0x258] sm:$0xff]
    %v507 = vld [vmem:[#allocation8 + $0x260] sm:$0xff]
    %v508 = vld [vmem:[#allocation8 + $0x268] sm:$0xff]
    %v509 = vld [vmem:[#allocation8 + $0x270] sm:$0xff]
    %v510 = vld [vmem:[#allocation8 + $0x278] sm:$0xff]
    %v511 = vld [vmem:[#allocation8 + $0x280] sm:$0xff]
    %v512 = vld [vmem:[#allocation8 + $0x288] sm:$0xff]
    %v513 = vld [vmem:[#allocation8 + $0x290] sm:$0xff]
    %v514 = vld [vmem:[#allocation8 + $0x298] sm:$0xff]
    %v515 = vld [vmem:[#allocation8 + $0x2a0] sm:$0xff]
    %v516 = vld [vmem:[#allocation8 + $0x2a8] sm:$0xff]
    %v517 = vld [vmem:[#allocation8 + $0x2b0] sm:$0xff]
    %v518 = vld [vmem:[#allocation8 + $0x2b8] sm:$0xff]
    %v519 = vld [vmem:[#allocation8 + $0x2c0] sm:$0xff]
    %v520 = vld [vmem:[#allocation8 + $0x2c8] sm:$0xff]
    %v521 = vld [vmem:[#allocation8 + $0x2d0] sm:$0xff]
    %v522 = vld [vmem:[#allocation8 + $0x2d8] sm:$0xff]
    %v523 = vld [vmem:[#allocation8 + $0x2e0] sm:$0xff]
    %v524 = vld [vmem:[#allocation8 + $0x2e8] sm:$0xff]
    %v525 = vld [vmem:[#allocation8 + $0x2f0] sm:$0xff]
    %v526 = vld [vmem:[#allocation8 + $0x2f8] sm:$0xff]
    %v527 = vld [vmem:[#allocation8 + $0x300] sm:$0xff]
    %v528 = vld [vmem:[#allocation8 + $0x308] sm:$0xff]
    %v529 = vld [vmem:[#allocation8 + $0x310] sm:$0xff]
    %v530 = vld [vmem:[#allocation8 + $0x318] sm:$0xff]
    %v531 = vld [vmem:[#allocation8 + $0x320] sm:$0xff]
    %v532 = vld [vmem:[#allocation8 + $0x328] sm:$0xff]
    %v533 = vld [vmem:[#allocation8 + $0x330] sm:$0xff]
    %v534 = vld [vmem:[#allocation8 + $0x338] sm:$0xff]
    %v535 = vld [vmem:[#allocation8 + $0x340] sm:$0xff]
    %v536 = vld [vmem:[#allocation8 + $0x348] sm:$0xff]
    %v537 = vld [vmem:[#allocation8 + $0x350] sm:$0xff]
    %v538 = vld [vmem:[#allocation8 + $0x358] sm:$0xff]
    %v539 = vld [vmem:[#allocation8 + $0x360] sm:$0xff]
    %v540 = vld [vmem:[#allocation8 + $0x368] sm:$0xff]
    %v541 = vld [vmem:[#allocation8 + $0x370] sm:$0xff]
    %v542 = vld [vmem:[#allocation8 + $0x378] sm:$0xff]
    %v543 = vld [vmem:[#allocation8 + $0x380] sm:$0xff]
    %v544 = vld [vmem:[#allocation8 + $0x388] sm:$0xff]
    %v545 = vld [vmem:[#allocation8 + $0x390] sm:$0xff]
    %v546 = vld [vmem:[#allocation8 + $0x398] sm:$0xff]
    %v547 = vld [vmem:[#allocation8 + $0x3a0] sm:$0xff]
    %v548 = vld [vmem:[#allocation8 + $0x3a8] sm:$0xff]
    %v549 = vld [vmem:[#allocation8 + $0x3b0] sm:$0xff]
    %v550 = vld [vmem:[#allocation8 + $0x3b8] sm:$0xff]
    %v551 = vld [vmem:[#allocation8 + $0x3c0] sm:$0xff]
    %v552 = vld [vmem:[#allocation8 + $0x3c8] sm:$0xff]
    %v553 = vld [vmem:[#allocation8 + $0x3d0] sm:$0xff]
    %v554 = vld [vmem:[#allocation8 + $0x3d8] sm:$0xff]
    %v555 = vld [vmem:[#allocation8 + $0x3e0] sm:$0xff]
    %v556 = vld [vmem:[#allocation8 + $0x3e8] sm:$0xff]
    %v557 = vld [vmem:[#allocation8 + $0x3f0] sm:$0xff]
    %v558 = vld [vmem:[#allocation8 + $0x3f8] sm:$0xff]
    %v559 = vld [vmem:[#allocation8 + $0x400] sm:$0xff]
    %v560 = vld [vmem:[#allocation8 + $0x408] sm:$0xff]
    %v561 = vld [vmem:[#allocation8 + $0x410] sm:$0xff]
    %v562 = vld [vmem:[#allocation8 + $0x418] sm:$0xff]
    %v563 = vld [vmem:[#allocation8 + $0x420] sm:$0xff]
    %v564 = vld [vmem:[#allocation8 + $0x428] sm:$0xff]
    %v565 = vld [vmem:[#allocation8 + $0x430] sm:$0xff]
    %v566 = vld [vmem:[#allocation8 + $0x438] sm:$0xff]
    %v567 = vld [vmem:[#allocation8 + $0x440] sm:$0xff]
    %v568 = vld [vmem:[#allocation8 + $0x448] sm:$0xff]
    %v569 = vld [vmem:[#allocation8 + $0x450] sm:$0xff]
    %v570 = vld [vmem:[#allocation8 + $0x458] sm:$0xff]
    %v571 = vld [vmem:[#allocation8 + $0x460] sm:$0xff]
    %v572 = vld [vmem:[#allocation8 + $0x468] sm:$0xff]
    %v573 = vld [vmem:[#allocation8 + $0x470] sm:$0xff]
    %v574 = vld [vmem:[#allocation8 + $0x478] sm:$0xff]
    %v575 = vld [vmem:[#allocation8 + $0x480] sm:$0xff]
    %v576 = vld [vmem:[#allocation8 + $0x488] sm:$0xff]
    %v577 = vld [vmem:[#allocation8 + $0x490] sm:$0xff]
    %v578 = vld [vmem:[#allocation8 + $0x498] sm:$0xff]
    %v579 = vld [vmem:[#allocation8 + $0x4a0] sm:$0xff]
    %v580 = vld [vmem:[#allocation8 + $0x4a8] sm:$0xff]
    %v581 = vld [vmem:[#allocation8 + $0x4b0] sm:$0xff]
    %v582 = vld [vmem:[#allocation8 + $0x4b8] sm:$0xff]
    %v583 = vld [vmem:[#allocation8 + $0x4c0] sm:$0xff]
    %v584 = vld [vmem:[#allocation8 + $0x4c8] sm:$0xff]
    %v585 = vld [vmem:[#allocation8 + $0x4d0] sm:$0xff]
    %v586 = vld [vmem:[#allocation8 + $0x4d8] sm:$0xff]
    %v587 = vld [vmem:[#allocation8 + $0x4e0] sm:$0xff]
    %v588 = vld [vmem:[#allocation8 + $0x4e8] sm:$0xff]
    %v589 = vld [vmem:[#allocation8 + $0x4f0] sm:$0xff]
    %v590 = vld [vmem:[#allocation8 + $0x4f8] sm:$0xff]
    %v591 = vld [vmem:[#allocation8 + $0x500] sm:$0xff]
    %v592 = vld [vmem:[#allocation8 + $0x508] sm:$0xff]
    %v593 = vld [vmem:[#allocation8 + $0x510] sm:$0xff]
    %v594 = vld [vmem:[#allocation8 + $0x518] sm:$0xff]
    %v595 = vld [vmem:[#allocation8 + $0x520] sm:$0xff]
    %v596 = vld [vmem:[#allocation8 + $0x528] sm:$0xff]
    %v597 = vld [vmem:[#allocation8 + $0x530] sm:$0xff]
    %v598 = vld [vmem:[#allocation8 + $0x538] sm:$0xff]
    %v599 = vld [vmem:[#allocation8 + $0x540] sm:$0xff]
    %v600 = vld [vmem:[#allocation8 + $0x548] sm:$0xff]
    %v601 = vld [vmem:[#allocation8 + $0x550] sm:$0xff]
    %v602 = vld [vmem:[#allocation8 + $0x558] sm:$0xff]
    %v603 = vld [vmem:[#allocation8 + $0x560] sm:$0xff]
    %v604 = vld [vmem:[#allocation8 + $0x568] sm:$0xff]
    %v605 = vld [vmem:[#allocation8 + $0x570] sm:$0xff]
    %v606 = vld [vmem:[#allocation8 + $0x578] sm:$0xff]
    %v607 = vld [vmem:[#allocation8 + $0x580] sm:$0xff]
    %v608 = vld [vmem:[#allocation8 + $0x588] sm:$0xff]
    %v609 = vld [vmem:[#allocation8 + $0x590] sm:$0xff]
    %v610 = vld [vmem:[#allocation8 + $0x598] sm:$0xff]
    %v611 = vld [vmem:[#allocation8 + $0x5a0] sm:$0xff]
    %v612 = vld [vmem:[#allocation8 + $0x5a8] sm:$0xff]
    %v613 = vld [vmem:[#allocation8 + $0x5b0] sm:$0xff]
    %v614 = vld [vmem:[#allocation8 + $0x5b8] sm:$0xff]
    %v615 = vld [vmem:[#allocation8 + $0x5c0] sm:$0xff]
    %v616 = vld [vmem:[#allocation8 + $0x5c8] sm:$0xff]
    %v617 = vld [vmem:[#allocation8 + $0x5d0] sm:$0xff]
    %v618 = vld [vmem:[#allocation8 + $0x5d8] sm:$0xff]
    %v619 = vld [vmem:[#allocation8 + $0x5e0] sm:$0xff]
    %v620 = vld [vmem:[#allocation8 + $0x5e8] sm:$0xff]
    %v621 = vld [vmem:[#allocation8 + $0x5f0] sm:$0xff]
    %v622 = vld [vmem:[#allocation8 + $0x5f8] sm:$0xff]
    %v623 = vld [vmem:[#allocation10] sm:$0x3f]
    %v625 = vperm.slane %v623, 0
    %v626 = vperm.slane %v623, 1
    %v627 = vperm.slane %v623, 2
    %v628 = vperm.slane %v623, 3
    %v629 = vperm.slane %v623, 4
    %v630 = vperm.slane %v623, 5
    %637 = vmatpush.msra.mxu0 %v521
    %638 = vmatpush.msra.mxu0 %v515
    %639 = vmatpush.msra.mxu0 %v509
    %640 = vmatpush.msra.mxu0 %v503
    %641 = vmatpush.msra.mxu0 %v497
    %642 = vmatpush.msra.mxu0 %v491
    %643 = vmatpush.msra.mxu0 %v485
    %644 = vmatpush.msra.mxu0 %v479
    %645 = vmatpush.msra.mxu0 %v473
    %646 = vmatpush.msra.mxu0 %v467
    %647 = vmatpush.msra.mxu0 %v461
    %648 = vmatpush.msra.mxu0 %v455
    %649 = vmatpush.msra.mxu0 %v449
    %650 = vmatpush.msra.mxu0 %v443
    %651 = vmatpush.msra.mxu0 %v437
    %652 = vmatpush.msra.mxu0 %v431
    %653 = vmatmul.f32.gmra.mxu0 %v427
    %v654 = vpop.f32.mrf.mxu0
    %v655 = vadd.f32 %v625, %v654
    %656 = vmatmul.f32.gmra.mxu0 %v429
    %v657 = vpop.f32.mrf.mxu0
    %v658 = vadd.f32 %v625, %v657
    %659 = vdwg.mxu0
    %660 = vmatpush.msra.mxu0 %v617
    %661 = vmatpush.msra.mxu0 %v611
    %662 = vmatpush.msra.mxu0 %v605
    %663 = vmatpush.msra.mxu0 %v599
    %664 = vmatpush.msra.mxu0 %v593
    %665 = vmatpush.msra.mxu0 %v587
    %666 = vmatpush.msra.mxu0 %v581
    %667 = vmatpush.msra.mxu0 %v575
    %668 = vmatpush.msra.mxu0 %v569
    %669 = vmatpush.msra.mxu0 %v563
    %670 = vmatpush.msra.mxu0 %v557
    %671 = vmatpush.msra.mxu0 %v551
    %672 = vmatpush.msra.mxu0 %v545
    %673 = vmatpush.msra.mxu0 %v539
    %674 = vmatpush.msra.mxu0 %v533
    %675 = vmatpush.msra.mxu0 %v527
    %676 = vmatmul.f32.gmra.mxu0 %v428
    %v677 = vpop.f32.mrf.mxu0
    %v678 = vadd.f32 %v655, %v677
    %679 = vmatmul.f32.gmra.mxu0 %v430
    %v680 = vpop.f32.mrf.mxu0
    %v681 = vadd.f32 %v658, %v680
    %682 = vdwg.mxu0
    %683 = vmatpush.msra.mxu0 %v522
    %684 = vmatpush.msra.mxu0 %v516
    %685 = vmatpush.msra.mxu0 %v510
    %686 = vmatpush.msra.mxu0 %v504
    %687 = vmatpush.msra.mxu0 %v498
    %688 = vmatpush.msra.mxu0 %v492
    %689 = vmatpush.msra.mxu0 %v486
    %690 = vmatpush.msra.mxu0 %v480
    %691 = vmatpush.msra.mxu0 %v474
    %692 = vmatpush.msra.mxu0 %v468
    %693 = vmatpush.msra.mxu0 %v462
    %694 = vmatpush.msra.mxu0 %v456
    %695 = vmatpush.msra.mxu0 %v450
    %696 = vmatpush.msra.mxu0 %v444
    %697 = vmatpush.msra.mxu0 %v438
    %698 = vmatpush.msra.mxu0 %v432
    %699 = vmatmul.f32.gmra.mxu0 %v427
    %v700 = vpop.f32.mrf.mxu0
    %v701 = vadd.f32 %v626, %v700
    %702 = vmatmul.f32.gmra.mxu0 %v429
    %v703 = vpop.f32.mrf.mxu0
    %v704 = vadd.f32 %v626, %v703
    %705 = vdwg.mxu0
    %706 = vmatpush.msra.mxu0 %v618
    %707 = vmatpush.msra.mxu0 %v612
    %708 = vmatpush.msra.mxu0 %v606
    %709 = vmatpush.msra.mxu0 %v600
    %710 = vmatpush.msra.mxu0 %v594
    %711 = vmatpush.msra.mxu0 %v588
    %712 = vmatpush.msra.mxu0 %v582
    %713 = vmatpush.msra.mxu0 %v576
    %714 = vmatpush.msra.mxu0 %v570
    %715 = vmatpush.msra.mxu0 %v564
    %716 = vmatpush.msra.mxu0 %v558
    %717 = vmatpush.msra.mxu0 %v552
    %718 = vmatpush.msra.mxu0 %v546
    %719 = vmatpush.msra.mxu0 %v540
    %720 = vmatpush.msra.mxu0 %v534
    %721 = vmatpush.msra.mxu0 %v528
    %722 = vmatmul.f32.gmra.mxu0 %v428
    %v723 = vpop.f32.mrf.mxu0
    %v724 = vadd.f32 %v701, %v723
    %725 = vmatmul.f32.gmra.mxu0 %v430
    %v726 = vpop.f32.mrf.mxu0
    %v727 = vadd.f32 %v704, %v726
    %728 = vdwg.mxu0
    %729 = vmatpush.msra.mxu0 %v523
    %730 = vmatpush.msra.mxu0 %v517
    %731 = vmatpush.msra.mxu0 %v511
    %732 = vmatpush.msra.mxu0 %v505
    %733 = vmatpush.msra.mxu0 %v499
    %734 = vmatpush.msra.mxu0 %v493
    %735 = vmatpush.msra.mxu0 %v487
    %736 = vmatpush.msra.mxu0 %v481
    %737 = vmatpush.msra.mxu0 %v475
    %738 = vmatpush.msra.mxu0 %v469
    %739 = vmatpush.msra.mxu0 %v463
    %740 = vmatpush.msra.mxu0 %v457
    %741 = vmatpush.msra.mxu0 %v451
    %742 = vmatpush.msra.mxu0 %v445
    %743 = vmatpush.msra.mxu0 %v439
    %744 = vmatpush.msra.mxu0 %v433
    %745 = vmatmul.f32.gmra.mxu0 %v427
    %v746 = vpop.f32.mrf.mxu0
    %v747 = vadd.f32 %v627, %v746
    %748 = vmatmul.f32.gmra.mxu0 %v429
    %v749 = vpop.f32.mrf.mxu0
    %v750 = vadd.f32 %v627, %v749
    %751 = vdwg.mxu0
    %752 = vmatpush.msra.mxu0 %v619
    %753 = vmatpush.msra.mxu0 %v613
    %754 = vmatpush.msra.mxu0 %v607
    %755 = vmatpush.msra.mxu0 %v601
    %756 = vmatpush.msra.mxu0 %v595
    %757 = vmatpush.msra.mxu0 %v589
    %758 = vmatpush.msra.mxu0 %v583
    %759 = vmatpush.msra.mxu0 %v577
    %760 = vmatpush.msra.mxu0 %v571
    %761 = vmatpush.msra.mxu0 %v565
    %762 = vmatpush.msra.mxu0 %v559
    %763 = vmatpush.msra.mxu0 %v553
    %764 = vmatpush.msra.mxu0 %v547
    %765 = vmatpush.msra.mxu0 %v541
    %766 = vmatpush.msra.mxu0 %v535
    %767 = vmatpush.msra.mxu0 %v529
    %768 = vmatmul.f32.gmra.mxu0 %v428
    %v769 = vpop.f32.mrf.mxu0
    %v770 = vadd.f32 %v747, %v769
    %771 = vmatmul.f32.gmra.mxu0 %v430
    %v772 = vpop.f32.mrf.mxu0
    %v773 = vadd.f32 %v750, %v772
    %774 = vdwg.mxu0
    %775 = vmatpush.msra.mxu0 %v524
    %776 = vmatpush.msra.mxu0 %v518
    %777 = vmatpush.msra.mxu0 %v512
    %778 = vmatpush.msra.mxu0 %v506
    %779 = vmatpush.msra.mxu0 %v500
    %780 = vmatpush.msra.mxu0 %v494
    %781 = vmatpush.msra.mxu0 %v488
    %782 = vmatpush.msra.mxu0 %v482
    %783 = vmatpush.msra.mxu0 %v476
    %784 = vmatpush.msra.mxu0 %v470
    %785 = vmatpush.msra.mxu0 %v464
    %786 = vmatpush.msra.mxu0 %v458
    %787 = vmatpush.msra.mxu0 %v452
    %788 = vmatpush.msra.mxu0 %v446
    %789 = vmatpush.msra.mxu0 %v440
    %790 = vmatpush.msra.mxu0 %v434
    %791 = vmatmul.f32.gmra.mxu0 %v427
    %v792 = vpop.f32.mrf.mxu0
    %v793 = vadd.f32 %v628, %v792
    %794 = vmatmul.f32.gmra.mxu0 %v429
    %v795 = vpop.f32.mrf.mxu0
    %v796 = vadd.f32 %v628, %v795
    %797 = vdwg.mxu0
    %798 = vmatpush.msra.mxu0 %v620
    %799 = vmatpush.msra.mxu0 %v614
    %800 = vmatpush.msra.mxu0 %v608
    %801 = vmatpush.msra.mxu0 %v602
    %802 = vmatpush.msra.mxu0 %v596
    %803 = vmatpush.msra.mxu0 %v590
    %804 = vmatpush.msra.mxu0 %v584
    %805 = vmatpush.msra.mxu0 %v578
    %806 = vmatpush.msra.mxu0 %v572
    %807 = vmatpush.msra.mxu0 %v566
    %808 = vmatpush.msra.mxu0 %v560
    %809 = vmatpush.msra.mxu0 %v554
    %810 = vmatpush.msra.mxu0 %v548
    %811 = vmatpush.msra.mxu0 %v542
    %812 = vmatpush.msra.mxu0 %v536
    %813 = vmatpush.msra.mxu0 %v530
    %814 = vmatmul.f32.gmra.mxu0 %v428
    %v815 = vpop.f32.mrf.mxu0
    %v816 = vadd.f32 %v793, %v815
    %817 = vmatmul.f32.gmra.mxu0 %v430
    %v818 = vpop.f32.mrf.mxu0
    %v819 = vadd.f32 %v796, %v818
    %820 = vdwg.mxu0
    %821 = vmatpush.msra.mxu0 %v525
    %822 = vmatpush.msra.mxu0 %v519
    %823 = vmatpush.msra.mxu0 %v513
    %824 = vmatpush.msra.mxu0 %v507
    %825 = vmatpush.msra.mxu0 %v501
    %826 = vmatpush.msra.mxu0 %v495
    %827 = vmatpush.msra.mxu0 %v489
    %828 = vmatpush.msra.mxu0 %v483
    %829 = vmatpush.msra.mxu0 %v477
    %830 = vmatpush.msra.mxu0 %v471
    %831 = vmatpush.msra.mxu0 %v465
    %832 = vmatpush.msra.mxu0 %v459
    %833 = vmatpush.msra.mxu0 %v453
    %834 = vmatpush.msra.mxu0 %v447
    %835 = vmatpush.msra.mxu0 %v441
    %836 = vmatpush.msra.mxu0 %v435
    %837 = vmatmul.f32.gmra.mxu0 %v427
    %v838 = vpop.f32.mrf.mxu0
    %v839 = vadd.f32 %v629, %v838
    %840 = vmatmul.f32.gmra.mxu0 %v429
    %v841 = vpop.f32.mrf.mxu0
    %v842 = vadd.f32 %v629, %v841
    %843 = vdwg.mxu0
    %844 = vmatpush.msra.mxu0 %v621
    %845 = vmatpush.msra.mxu0 %v615
    %846 = vmatpush.msra.mxu0 %v609
    %847 = vmatpush.msra.mxu0 %v603
    %848 = vmatpush.msra.mxu0 %v597
    %849 = vmatpush.msra.mxu0 %v591
    %850 = vmatpush.msra.mxu0 %v585
    %851 = vmatpush.msra.mxu0 %v579
    %852 = vmatpush.msra.mxu0 %v573
    %853 = vmatpush.msra.mxu0 %v567
    %854 = vmatpush.msra.mxu0 %v561
    %855 = vmatpush.msra.mxu0 %v555
    %856 = vmatpush.msra.mxu0 %v549
    %857 = vmatpush.msra.mxu0 %v543
    %858 = vmatpush.msra.mxu0 %v537
    %859 = vmatpush.msra.mxu0 %v531
    %860 = vmatmul.f32.gmra.mxu0 %v428
    %v861 = vpop.f32.mrf.mxu0
    %v862 = vadd.f32 %v839, %v861
    %863 = vmatmul.f32.gmra.mxu0 %v430
    %v864 = vpop.f32.mrf.mxu0
    %v865 = vadd.f32 %v842, %v864
    %866 = vdwg.mxu0
    %867 = vmatpush.msra.mxu0 %v526
    %868 = vmatpush.msra.mxu0 %v520
    %869 = vmatpush.msra.mxu0 %v514
    %870 = vmatpush.msra.mxu0 %v508
    %871 = vmatpush.msra.mxu0 %v502
    %872 = vmatpush.msra.mxu0 %v496
    %873 = vmatpush.msra.mxu0 %v490
    %874 = vmatpush.msra.mxu0 %v484
    %875 = vmatpush.msra.mxu0 %v478
    %876 = vmatpush.msra.mxu0 %v472
    %877 = vmatpush.msra.mxu0 %v466
    %878 = vmatpush.msra.mxu0 %v460
    %879 = vmatpush.msra.mxu0 %v454
    %880 = vmatpush.msra.mxu0 %v448
    %881 = vmatpush.msra.mxu0 %v442
    %882 = vmatpush.msra.mxu0 %v436
    %883 = vmatmul.f32.gmra.mxu0 %v427
    %v884 = vpop.f32.mrf.mxu0
    %v885 = vadd.f32 %v630, %v884
    %886 = vmatmul.f32.gmra.mxu0 %v429
    %v887 = vpop.f32.mrf.mxu0
    %v888 = vadd.f32 %v630, %v887
    %889 = vdwg.mxu0
    %890 = vmatpush.msra.mxu0 %v622
    %891 = vmatpush.msra.mxu0 %v616
    %892 = vmatpush.msra.mxu0 %v610
    %893 = vmatpush.msra.mxu0 %v604
    %894 = vmatpush.msra.mxu0 %v598
    %895 = vmatpush.msra.mxu0 %v592
    %896 = vmatpush.msra.mxu0 %v586
    %897 = vmatpush.msra.mxu0 %v580
    %898 = vmatpush.msra.mxu0 %v574
    %899 = vmatpush.msra.mxu0 %v568
    %900 = vmatpush.msra.mxu0 %v562
    %901 = vmatpush.msra.mxu0 %v556
    %902 = vmatpush.msra.mxu0 %v550
    %903 = vmatpush.msra.mxu0 %v544
    %904 = vmatpush.msra.mxu0 %v538
    %905 = vmatpush.msra.mxu0 %v532
    %906 = vmatmul.f32.gmra.mxu0 %v428
    %v907 = vpop.f32.mrf.mxu0
    %v908 = vadd.f32 %v885, %v907
    %909 = vmatmul.f32.gmra.mxu0 %v430
    %v910 = vpop.f32.mrf.mxu0
    %v911 = vadd.f32 %v888, %v910
    %912 = vdwg.mxu0
    %913 = vmatpush.xpose.msra.mxu0 0.0
    %914 = vmatpush.xpose.msra.mxu0 0.0
    %915 = vmatpush.xpose.msra.mxu0 0.0
    %916 = vmatpush.xpose.msra.mxu0 0.0
    %917 = vmatpush.xpose.msra.mxu0 0.0
    %918 = vmatpush.xpose.msra.mxu0 0.0
    %919 = vmatpush.xpose.msra.mxu0 0.0
    %920 = vmatpush.xpose.msra.mxu0 0.0
    %921 = vmatpush.xpose.msra.mxu0 0.0
    %922 = vmatpush.xpose.msra.mxu0 0.0
    %923 = vmatpush.xpose.msra.mxu0 0.0
    %924 = vmatpush.xpose.msra.mxu0 0.0
    %925 = vmatpush.xpose.msra.mxu0 0.0
    %926 = vmatpush.xpose.msra.mxu0 0.0
    %927 = vmatpush.xpose.msra.mxu0 0.0
    %928 = vmatpush.xpose.msra.mxu0 %v770
    %929 = vmatmul.f32.gmra.mxu0 %v678
    %v930 = vpop.f32.mrf.mxu0
    %v931 = vadd.f32 0.0, %v930
    %932 = vdwg.mxu0
    %v933 = vmul.f32 %v931, 0.088388346
    %vm934 = vcmask 64512
    %v935 = vsel %vm934, %v933, -inf
    %936 = vmax.xlane.f32.xlu0 %v935
    %v937 = vpop.xlane.xlu0 %936
    %v938 = vsub.f32 %v933, %v937
    %v939 = vmul.f32 %v938, 1.442695
    %v940 = vpow.pop %v939
    %v941 = vsel %vm934, %v940, 0.0
    %942 = vadd.xlane.f32.xlu0 %v941
    %v943 = vpop.xlane.xlu0 %942
    %v944 = vrcp.pop %v943
    %v945 = vmul.f32 %v940, %v944
    %v947 = vsel %vm934, %v945, 0
    %949 = vmatpush.msra.mxu0 0.0
    %950 = vmatpush.msra.mxu0 0.0
    %951 = vmatpush.msra.mxu0 0.0
    %952 = vmatpush.msra.mxu0 0.0
    %953 = vmatpush.msra.mxu0 0.0
    %954 = vmatpush.msra.mxu0 0.0
    %955 = vmatpush.msra.mxu0 0.0
    %956 = vmatpush.msra.mxu0 0.0
    %957 = vmatpush.msra.mxu0 0.0
    %958 = vmatpush.msra.mxu0 0.0
    %959 = vmatpush.msra.mxu0 0.0
    %960 = vmatpush.msra.mxu0 0.0
    %961 = vmatpush.msra.mxu0 0.0
    %962 = vmatpush.msra.mxu0 0.0
    %963 = vmatpush.msra.mxu0 0.0
    %964 = vmatpush.msra.mxu0 %v862
    %965 = vmatmul.f32.gmra.mxu0 %v947
    %v966 = vpop.f32.mrf.mxu0
    %v967 = vadd.f32 0.0, %v966
    %968 = vdwg.mxu0
    %969 = vmatpush.xpose.msra.mxu0 0.0
    %970 = vmatpush.xpose.msra.mxu0 0.0
    %971 = vmatpush.xpose.msra.mxu0 0.0
    %972 = vmatpush.xpose.msra.mxu0 0.0
    %973 = vmatpush.xpose.msra.mxu0 0.0
    %974 = vmatpush.xpose.msra.mxu0 0.0
    %975 = vmatpush.xpose.msra.mxu0 0.0
    %976 = vmatpush.xpose.msra.mxu0 0.0
    %977 = vmatpush.xpose.msra.mxu0 0.0
    %978 = vmatpush.xpose.msra.mxu0 0.0
    %979 = vmatpush.xpose.msra.mxu0 0.0
    %980 = vmatpush.xpose.msra.mxu0 0.0
    %981 = vmatpush.xpose.msra.mxu0 0.0
    %982 = vmatpush.xpose.msra.mxu0 0.0
    %983 = vmatpush.xpose.msra.mxu0 0.0
    %984 = vmatpush.xpose.msra.mxu0 %v816
    %985 = vmatmul.f32.gmra.mxu0 %v724
    %v986 = vpop.f32.mrf.mxu0
    %v987 = vadd.f32 0.0, %v986
    %988 = vdwg.mxu0
    %v989 = vmul.f32 %v987, 0.088388346
    %v990 = vsel %vm934, %v989, -inf
    %991 = vmax.xlane.f32.xlu0 %v990
    %v992 = vpop.xlane.xlu0 %991
    %v993 = vsub.f32 %v989, %v992
    %v994 = vmul.f32 %v993, 1.442695
    %v995 = vpow.pop %v994
    %v996 = vsel %vm934, %v995, 0.0
    %997 = vadd.xlane.f32.xlu0 %v996
    %v998 = vpop.xlane.xlu0 %997
    %v999 = vrcp.pop %v998
    %v1000 = vmul.f32 %v995, %v999
    %v1002 = vsel %vm934, %v1000, 0
    %1004 = vmatpush.msra.mxu0 0.0
    %1005 = vmatpush.msra.mxu0 0.0
    %1006 = vmatpush.msra.mxu0 0.0
    %1007 = vmatpush.msra.mxu0 0.0
    %1008 = vmatpush.msra.mxu0 0.0
    %1009 = vmatpush.msra.mxu0 0.0
    %1010 = vmatpush.msra.mxu0 0.0
    %1011 = vmatpush.msra.mxu0 0.0
    %1012 = vmatpush.msra.mxu0 0.0
    %1013 = vmatpush.msra.mxu0 0.0
    %1014 = vmatpush.msra.mxu0 0.0
    %1015 = vmatpush.msra.mxu0 0.0
    %1016 = vmatpush.msra.mxu0 0.0
    %1017 = vmatpush.msra.mxu0 0.0
    %1018 = vmatpush.msra.mxu0 0.0
    %1019 = vmatpush.msra.mxu0 %v908
    %1020 = vmatmul.f32.gmra.mxu0 %v1002
    %v1021 = vpop.f32.mrf.mxu0
    %v1022 = vadd.f32 0.0, %v1021
    %1023 = vdwg.mxu0
    %1024 = vmatpush.xpose.msra.mxu0 0.0
    %1025 = vmatpush.xpose.msra.mxu0 0.0
    %1026 = vmatpush.xpose.msra.mxu0 0.0
    %1027 = vmatpush.xpose.msra.mxu0 0.0
    %1028 = vmatpush.xpose.msra.mxu0 0.0
    %1029 = vmatpush.xpose.msra.mxu0 0.0
    %1030 = vmatpush.xpose.msra.mxu0 0.0
    %1031 = vmatpush.xpose.msra.mxu0 0.0
    %1032 = vmatpush.xpose.msra.mxu0 0.0
    %1033 = vmatpush.xpose.msra.mxu0 0.0
    %1034 = vmatpush.xpose.msra.mxu0 0.0
    %1035 = vmatpush.xpose.msra.mxu0 0.0
    %1036 = vmatpush.xpose.msra.mxu0 0.0
    %1037 = vmatpush.xpose.msra.mxu0 0.0
    %1038 = vmatpush.xpose.msra.mxu0 0.0
    %1039 = vmatpush.xpose.msra.mxu0 %v773
    %1040 = vmatmul.f32.gmra.mxu0 %v681
    %v1041 = vpop.f32.mrf.mxu0
    %v1042 = vadd.f32 0.0, %v1041
    %1043 = vdwg.mxu0
    %v1044 = vmul.f32 %v1042, 0.088388346
    %v1045 = vsel %vm934, %v1044, -inf
    %1046 = vmax.xlane.f32.xlu0 %v1045
    %v1047 = vpop.xlane.xlu0 %1046
    %v1048 = vsub.f32 %v1044, %v1047
    %v1049 = vmul.f32 %v1048, 1.442695
    %v1050 = vpow.pop %v1049
    %v1051 = vsel %vm934, %v1050, 0.0
    %1052 = vadd.xlane.f32.xlu0 %v1051
    %v1053 = vpop.xlane.xlu0 %1052
    %v1054 = vrcp.pop %v1053
    %v1055 = vmul.f32 %v1050, %v1054
    %v1057 = vsel %vm934, %v1055, 0
    %1059 = vmatpush.msra.mxu0 0.0
    %1060 = vmatpush.msra.mxu0 0.0
    %1061 = vmatpush.msra.mxu0 0.0
    %1062 = vmatpush.msra.mxu0 0.0
    %1063 = vmatpush.msra.mxu0 0.0
    %1064 = vmatpush.msra.mxu0 0.0
    %1065 = vmatpush.msra.mxu0 0.0
    %1066 = vmatpush.msra.mxu0 0.0
    %1067 = vmatpush.msra.mxu0 0.0
    %1068 = vmatpush.msra.mxu0 0.0
    %1069 = vmatpush.msra.mxu0 0.0
    %1070 = vmatpush.msra.mxu0 0.0
    %1071 = vmatpush.msra.mxu0 0.0
    %1072 = vmatpush.msra.mxu0 0.0
    %1073 = vmatpush.msra.mxu0 0.0
    %1074 = vmatpush.msra.mxu0 %v865
    %1075 = vmatmul.f32.gmra.mxu0 %v1057
    %v1076 = vpop.f32.mrf.mxu0
    %v1077 = vadd.f32 0.0, %v1076
    %1078 = vdwg.mxu0
    %1079 = vmatpush.xpose.msra.mxu0 0.0
    %1080 = vmatpush.xpose.msra.mxu0 0.0
    %1081 = vmatpush.xpose.msra.mxu0 0.0
    %1082 = vmatpush.xpose.msra.mxu0 0.0
    %1083 = vmatpush.xpose.msra.mxu0 0.0
    %1084 = vmatpush.xpose.msra.mxu0 0.0
    %1085 = vmatpush.xpose.msra.mxu0 0.0
    %1086 = vmatpush.xpose.msra.mxu0 0.0
    %1087 = vmatpush.xpose.msra.mxu0 0.0
    %1088 = vmatpush.xpose.msra.mxu0 0.0
    %1089 = vmatpush.xpose.msra.mxu0 0.0
    %1090 = vmatpush.xpose.msra.mxu0 0.0
    %1091 = vmatpush.xpose.msra.mxu0 0.0
    %1092 = vmatpush.xpose.msra.mxu0 0.0
    %1093 = vmatpush.xpose.msra.mxu0 0.0
    %1094 = vmatpush.xpose.msra.mxu0 %v819
    %1095 = vmatmul.f32.gmra.mxu0 %v727
    %v1096 = vpop.f32.mrf.mxu0
    %v1097 = vadd.f32 0.0, %v1096
    %1098 = vdwg.mxu0
    %v1099 = vmul.f32 %v1097, 0.088388346
    %v1100 = vsel %vm934, %v1099, -inf
    %1101 = vmax.xlane.f32.xlu0 %v1100
    %v1102 = vpop.xlane.xlu0 %1101
    %v1103 = vsub.f32 %v1099, %v1102
    %v1104 = vmul.f32 %v1103, 1.442695
    %v1105 = vpow.pop %v1104
    %v1106 = vsel %vm934, %v1105, 0.0
    %1107 = vadd.xlane.f32.xlu0 %v1106
    %v1108 = vpop.xlane.xlu0 %1107
    %v1109 = vrcp.pop %v1108
    %v1110 = vmul.f32 %v1105, %v1109
    %v1112 = vsel %vm934, %v1110, 0
    %1114 = vmatpush.msra.mxu0 0.0
    %1115 = vmatpush.msra.mxu0 0.0
    %1116 = vmatpush.msra.mxu0 0.0
    %1117 = vmatpush.msra.mxu0 0.0
    %1118 = vmatpush.msra.mxu0 0.0
    %1119 = vmatpush.msra.mxu0 0.0
    %1120 = vmatpush.msra.mxu0 0.0
    %1121 = vmatpush.msra.mxu0 0.0
    %1122 = vmatpush.msra.mxu0 0.0
    %1123 = vmatpush.msra.mxu0 0.0
    %1124 = vmatpush.msra.mxu0 0.0
    %1125 = vmatpush.msra.mxu0 0.0
    %1126 = vmatpush.msra.mxu0 0.0
    %1127 = vmatpush.msra.mxu0 0.0
    %1128 = vmatpush.msra.mxu0 0.0
    %1129 = vmatpush.msra.mxu0 %v911
    %1130 = vmatmul.f32.gmra.mxu0 %v1112
    %v1131 = vpop.f32.mrf.mxu0
    %v1132 = vadd.f32 0.0, %v1131
    %1133 = vdwg.mxu0
    %v1134 = vld [vmem:[#allocation11] sm:$0xff]
    %v1135 = vld [vmem:[#allocation11 + $0x8] sm:$0xff]
    %v1136 = vld [vmem:[#allocation11 + $0x10] sm:$0xff]
    %v1137 = vld [vmem:[#allocation11 + $0x18] sm:$0xff]
    %v1138 = vld [vmem:[#allocation11 + $0x20] sm:$0xff]
    %v1139 = vld [vmem:[#allocation11 + $0x28] sm:$0xff]
    %v1140 = vld [vmem:[#allocation11 + $0x30] sm:$0xff]
    %v1141 = vld [vmem:[#allocation11 + $0x38] sm:$0xff]
    %v1142 = vld [vmem:[#allocation11 + $0x40] sm:$0xff]
    %v1143 = vld [vmem:[#allocation11 + $0x48] sm:$0xff]
    %v1144 = vld [vmem:[#allocation11 + $0x50] sm:$0xff]
    %v1145 = vld [vmem:[#allocation11 + $0x58] sm:$0xff]
    %v1146 = vld [vmem:[#allocation11 + $0x60] sm:$0xff]
    %v1147 = vld [vmem:[#allocation11 + $0x68] sm:$0xff]
    %v1148 = vld [vmem:[#allocation11 + $0x70] sm:$0xff]
    %v1149 = vld [vmem:[#allocation11 + $0x78] sm:$0xff]
    %v1150 = vld [vmem:[#allocation11 + $0x80] sm:$0xff]
    %v1151 = vld [vmem:[#allocation11 + $0x88] sm:$0xff]
    %v1152 = vld [vmem:[#allocation11 + $0x90] sm:$0xff]
    %v1153 = vld [vmem:[#allocation11 + $0x98] sm:$0xff]
    %v1154 = vld [vmem:[#allocation11 + $0xa0] sm:$0xff]
    %v1155 = vld [vmem:[#allocation11 + $0xa8] sm:$0xff]
    %v1156 = vld [vmem:[#allocation11 + $0xb0] sm:$0xff]
    %v1157 = vld [vmem:[#allocation11 + $0xb8] sm:$0xff]
    %v1158 = vld [vmem:[#allocation11 + $0xc0] sm:$0xff]
    %v1159 = vld [vmem:[#allocation11 + $0xc8] sm:$0xff]
    %v1160 = vld [vmem:[#allocation11 + $0xd0] sm:$0xff]
    %v1161 = vld [vmem:[#allocation11 + $0xd8] sm:$0xff]
    %v1162 = vld [vmem:[#allocation11 + $0xe0] sm:$0xff]
    %v1163 = vld [vmem:[#allocation11 + $0xe8] sm:$0xff]
    %v1164 = vld [vmem:[#allocation11 + $0xf0] sm:$0xff]
    %v1165 = vld [vmem:[#allocation11 + $0xf8] sm:$0xff]
    %v1166 = vld [vmem:[#allocation11 + $0x100] sm:$0xff]
    %v1167 = vld [vmem:[#allocation11 + $0x108] sm:$0xff]
    %v1168 = vld [vmem:[#allocation11 + $0x110] sm:$0xff]
    %v1169 = vld [vmem:[#allocation11 + $0x118] sm:$0xff]
    %v1170 = vld [vmem:[#allocation11 + $0x120] sm:$0xff]
    %v1171 = vld [vmem:[#allocation11 + $0x128] sm:$0xff]
    %v1172 = vld [vmem:[#allocation11 + $0x130] sm:$0xff]
    %v1173 = vld [vmem:[#allocation11 + $0x138] sm:$0xff]
    %v1174 = vld [vmem:[#allocation11 + $0x140] sm:$0xff]
    %v1175 = vld [vmem:[#allocation11 + $0x148] sm:$0xff]
    %v1176 = vld [vmem:[#allocation11 + $0x150] sm:$0xff]
    %v1177 = vld [vmem:[#allocation11 + $0x158] sm:$0xff]
    %v1178 = vld [vmem:[#allocation11 + $0x160] sm:$0xff]
    %v1179 = vld [vmem:[#allocation11 + $0x168] sm:$0xff]
    %v1180 = vld [vmem:[#allocation11 + $0x170] sm:$0xff]
    %v1181 = vld [vmem:[#allocation11 + $0x178] sm:$0xff]
    %v1182 = vld [vmem:[#allocation11 + $0x180] sm:$0xff]
    %v1183 = vld [vmem:[#allocation11 + $0x188] sm:$0xff]
    %v1184 = vld [vmem:[#allocation11 + $0x190] sm:$0xff]
    %v1185 = vld [vmem:[#allocation11 + $0x198] sm:$0xff]
    %v1186 = vld [vmem:[#allocation11 + $0x1a0] sm:$0xff]
    %v1187 = vld [vmem:[#allocation11 + $0x1a8] sm:$0xff]
    %v1188 = vld [vmem:[#allocation11 + $0x1b0] sm:$0xff]
    %v1189 = vld [vmem:[#allocation11 + $0x1b8] sm:$0xff]
    %v1190 = vld [vmem:[#allocation11 + $0x1c0] sm:$0xff]
    %v1191 = vld [vmem:[#allocation11 + $0x1c8] sm:$0xff]
    %v1192 = vld [vmem:[#allocation11 + $0x1d0] sm:$0xff]
    %v1193 = vld [vmem:[#allocation11 + $0x1d8] sm:$0xff]
    %v1194 = vld [vmem:[#allocation11 + $0x1e0] sm:$0xff]
    %v1195 = vld [vmem:[#allocation11 + $0x1e8] sm:$0xff]
    %v1196 = vld [vmem:[#allocation11 + $0x1f0] sm:$0xff]
    %v1197 = vld [vmem:[#allocation11 + $0x1f8] sm:$0xff]
    %v1198 = vld [vmem:[#allocation13] sm:$0x3]
    %v1200 = vperm.slane %v1198, 0
    %v1201 = vperm.slane %v1198, 1
    %1204 = vmatpush.msra.mxu0 %v1164
    %1205 = vmatpush.msra.mxu0 %v1162
    %1206 = vmatpush.msra.mxu0 %v1160
    %1207 = vmatpush.msra.mxu0 %v1158
    %1208 = vmatpush.msra.mxu0 %v1156
    %1209 = vmatpush.msra.mxu0 %v1154
    %1210 = vmatpush.msra.mxu0 %v1152
    %1211 = vmatpush.msra.mxu0 %v1150
    %1212 = vmatpush.msra.mxu0 %v1148
    %1213 = vmatpush.msra.mxu0 %v1146
    %1214 = vmatpush.msra.mxu0 %v1144
    %1215 = vmatpush.msra.mxu0 %v1142
    %1216 = vmatpush.msra.mxu0 %v1140
    %1217 = vmatpush.msra.mxu0 %v1138
    %1218 = vmatpush.msra.mxu0 %v1136
    %1219 = vmatpush.msra.mxu0 %v1134
    %1220 = vmatmul.f32.gmra.mxu0 %v967
    %v1221 = vpop.f32.mrf.mxu0
    %v1222 = vadd.f32 %v1200, %v1221
    %1223 = vmatmul.f32.gmra.mxu0 %v1077
    %v1224 = vpop.f32.mrf.mxu0
    %v1225 = vadd.f32 %v1200, %v1224
    %1226 = vdwg.mxu0
    %1227 = vmatpush.msra.mxu0 %v1196
    %1228 = vmatpush.msra.mxu0 %v1194
    %1229 = vmatpush.msra.mxu0 %v1192
    %1230 = vmatpush.msra.mxu0 %v1190
    %1231 = vmatpush.msra.mxu0 %v1188
    %1232 = vmatpush.msra.mxu0 %v1186
    %1233 = vmatpush.msra.mxu0 %v1184
    %1234 = vmatpush.msra.mxu0 %v1182
    %1235 = vmatpush.msra.mxu0 %v1180
    %1236 = vmatpush.msra.mxu0 %v1178
    %1237 = vmatpush.msra.mxu0 %v1176
    %1238 = vmatpush.msra.mxu0 %v1174
    %1239 = vmatpush.msra.mxu0 %v1172
    %1240 = vmatpush.msra.mxu0 %v1170
    %1241 = vmatpush.msra.mxu0 %v1168
    %1242 = vmatpush.msra.mxu0 %v1166
    %1243 = vmatmul.f32.gmra.mxu0 %v1022
    %v1244 = vpop.f32.mrf.mxu0
    %v1245 = vadd.f32 %v1222, %v1244
    %1246 = vmatmul.f32.gmra.mxu0 %v1132
    %v1247 = vpop.f32.mrf.mxu0
    %v1248 = vadd.f32 %v1225, %v1247
    %1249 = vdwg.mxu0
    %1250 = vmatpush.msra.mxu0 %v1165
    %1251 = vmatpush.msra.mxu0 %v1163
    %1252 = vmatpush.msra.mxu0 %v1161
    %1253 = vmatpush.msra.mxu0 %v1159
    %1254 = vmatpush.msra.mxu0 %v1157
    %1255 = vmatpush.msra.mxu0 %v1155
    %1256 = vmatpush.msra.mxu0 %v1153
    %1257 = vmatpush.msra.mxu0 %v1151
    %1258 = vmatpush.msra.mxu0 %v1149
    %1259 = vmatpush.msra.mxu0 %v1147
    %1260 = vmatpush.msra.mxu0 %v1145
    %1261 = vmatpush.msra.mxu0 %v1143
    %1262 = vmatpush.msra.mxu0 %v1141
    %1263 = vmatpush.msra.mxu0 %v1139
    %1264 = vmatpush.msra.mxu0 %v1137
    %1265 = vmatpush.msra.mxu0 %v1135
    %1266 = vmatmul.f32.gmra.mxu0 %v967
    %v1267 = vpop.f32.mrf.mxu0
    %v1268 = vadd.f32 %v1201, %v1267
    %1269 = vmatmul.f32.gmra.mxu0 %v1077
    %v1270 = vpop.f32.mrf.mxu0
    %v1271 = vadd.f32 %v1201, %v1270
    %1272 = vdwg.mxu0
    %1273 = vmatpush.msra.mxu0 %v1197
    %1274 = vmatpush.msra.mxu0 %v1195
    %1275 = vmatpush.msra.mxu0 %v1193
    %1276 = vmatpush.msra.mxu0 %v1191
    %1277 = vmatpush.msra.mxu0 %v1189
    %1278 = vmatpush.msra.mxu0 %v1187
    %1279 = vmatpush.msra.mxu0 %v1185
    %1280 = vmatpush.msra.mxu0 %v1183
    %1281 = vmatpush.msra.mxu0 %v1181
    %1282 = vmatpush.msra.mxu0 %v1179
    %1283 = vmatpush.msra.mxu0 %v1177
    %1284 = vmatpush.msra.mxu0 %v1175
    %1285 = vmatpush.msra.mxu0 %v1173
    %1286 = vmatpush.msra.mxu0 %v1171
    %1287 = vmatpush.msra.mxu0 %v1169
    %1288 = vmatpush.msra.mxu0 %v1167
    %1289 = vmatmul.f32.gmra.mxu0 %v1022
    %v1290 = vpop.f32.mrf.mxu0
    %v1291 = vadd.f32 %v1268, %v1290
    %1292 = vmatmul.f32.gmra.mxu0 %v1132
    %v1293 = vpop.f32.mrf.mxu0
    %v1294 = vadd.f32 %v1271, %v1293
    %1295 = vdwg.mxu0
    %v1296 = vadd.f32 %v1245, %v427
    %v1297 = vadd.f32 %v1291, %v428
    %v1298 = vadd.f32 %v1248, %v429
    %v1299 = vadd.f32 %v1294, %v430
    %v1300 = vld [vmem:[#allocation14] sm:$0x3]
    %v1301 = vld [vmem:[#allocation16] sm:$0x3]
    %v1302 = vadd.f32 %v1296, %v1297
    %1303 = vadd.xlane.f32.xlu0 %v1302
    %v1304 = vpop.xlane.xlu0 %1303
    %v1305 = vadd.f32 %v1298, %v1299
    %1306 = vadd.xlane.f32.xlu0 %v1305
    %v1307 = vpop.xlane.xlu0 %1306
    %v1308 = vmul.f32 %v1304, %v368
    %v1309 = vmul.f32 %v1307, %v368
    %v1310 = vsub.f32 %v1296, %v1308
    %v1311 = vsub.f32 %v1297, %v1308
    %v1312 = vsub.f32 %v1298, %v1309
    %v1313 = vsub.f32 %v1299, %v1309
    %v1314 = vmul.f32 %v1310, %v1310
    %v1315 = vmul.f32 %v1311, %v1311
    %v1316 = vmul.f32 %v1312, %v1312
    %v1317 = vmul.f32 %v1313, %v1313
    %v1318 = vadd.f32 %v1314, %v1315
    %1319 = vadd.xlane.f32.xlu0 %v1318
    %v1320 = vpop.xlane.xlu0 %1319
    %v1321 = vadd.f32 %v1316, %v1317
    %1322 = vadd.xlane.f32.xlu0 %v1321
    %v1323 = vpop.xlane.xlu0 %1322
    %v1324 = vmul.f32 %v1320, %v368
    %v1325 = vmul.f32 %v1323, %v368
    %v1326 = vadd.f32 %v1324, 1e-12
    %v1327 = vadd.f32 %v1325, 1e-12
    %v1328 = vrsqrt.pop %v1326
    %v1329 = vmul.f32 %v1328, %v1326
    %v1330 = vmul.f32 %v1329, %v1328
    %v1331 = vmul.f32 0.5, %v1330
    %v1332 = vsub.f32 1.5, %v1331
    %v1333 = vmul.f32 %v1328, %v1332
    %vm1334 = vweird.f32 %v1326
    %vm1335 = vweird.f32 %v1328
    %vm1336 = vmor %vm1334, %vm1335
    %v1337 = vsel %vm1336, %v1328, %v1333
    %v1338 = vrsqrt.pop %v1327
    %v1339 = vmul.f32 %v1338, %v1327
    %v1340 = vmul.f32 %v1339, %v1338
    %v1341 = vmul.f32 0.5, %v1340
    %v1342 = vsub.f32 1.5, %v1341
    %v1343 = vmul.f32 %v1338, %v1342
    %vm1344 = vweird.f32 %v1327
    %vm1345 = vweird.f32 %v1338
    %vm1346 = vmor %vm1344, %vm1345
    %v1347 = vsel %vm1346, %v1338, %v1343
    %v1348 = vmul.f32 %v1310, %v1337
    %v1349 = vmul.f32 %v1311, %v1337
    %v1350 = vmul.f32 %v1312, %v1347
    %v1351 = vmul.f32 %v1313, %v1347
    %v1353 = vperm.slane %v1300, 0
    %v1354 = vperm.slane %v1300, 1
    %v1357 = vmul.f32 %v1348, %v1353
    %v1358 = vmul.f32 %v1349, %v1354
    %v1359 = vmul.f32 %v1350, %v1353
    %v1360 = vmul.f32 %v1351, %v1354
    %v1362 = vperm.slane %v1301, 0
    %v1363 = vperm.slane %v1301, 1
    %v1366 = vadd.f32 %v1357, %v1362
    %v1367 = vadd.f32 %v1358, %v1363
    %v1368 = vadd.f32 %v1359, %v1362
    %v1369 = vadd.f32 %v1360, %v1363
    %v1370 = vld [vmem:[#allocation17] sm:$0xff]
    %v1371 = vld [vmem:[#allocation17 + $0x8] sm:$0xff]
    %v1372 = vld [vmem:[#allocation17 + $0x10] sm:$0xff]
    %v1373 = vld [vmem:[#allocation17 + $0x18] sm:$0xff]
    %v1374 = vld [vmem:[#allocation17 + $0x20] sm:$0xff]
    %v1375 = vld [vmem:[#allocation17 + $0x28] sm:$0xff]
    %v1376 = vld [vmem:[#allocation17 + $0x30] sm:$0xff]
    %v1377 = vld [vmem:[#allocation17 + $0x38] sm:$0xff]
    %v1378 = vld [vmem:[#allocation17 + $0x40] sm:$0xff]
    %v1379 = vld [vmem:[#allocation17 + $0x48] sm:$0xff]
    %v1380 = vld [vmem:[#allocation17 + $0x50] sm:$0xff]
    %v1381 = vld [vmem:[#allocation17 + $0x58] sm:$0xff]
    %v1382 = vld [vmem:[#allocation17 + $0x60] sm:$0xff]
    %v1383 = vld [vmem:[#allocation17 + $0x68] sm:$0xff]
    %v1384 = vld [vmem:[#allocation17 + $0x70] sm:$0xff]
    %v1385 = vld [vmem:[#allocation17 + $0x78] sm:$0xff]
    %v1386 = vld [vmem:[#allocation17 + $0x80] sm:$0xff]
    %v1387 = vld [vmem:[#allocation17 + $0x88] sm:$0xff]
    %v1388 = vld [vmem:[#allocation17 + $0x90] sm:$0xff]
    %v1389 = vld [vmem:[#allocation17 + $0x98] sm:$0xff]
    %v1390 = vld [vmem:[#allocation17 + $0xa0] sm:$0xff]
    %v1391 = vld [vmem:[#allocation17 + $0xa8] sm:$0xff]
    %v1392 = vld [vmem:[#allocation17 + $0xb0] sm:$0xff]
    %v1393 = vld [vmem:[#allocation17 + $0xb8] sm:$0xff]
    %v1394 = vld [vmem:[#allocation17 + $0xc0] sm:$0xff]
    %v1395 = vld [vmem:[#allocation17 + $0xc8] sm:$0xff]
    %v1396 = vld [vmem:[#allocation17 + $0xd0] sm:$0xff]
    %v1397 = vld [vmem:[#allocation17 + $0xd8] sm:$0xff]
    %v1398 = vld [vmem:[#allocation17 + $0xe0] sm:$0xff]
    %v1399 = vld [vmem:[#allocation17 + $0xe8] sm:$0xff]
    %v1400 = vld [vmem:[#allocation17 + $0xf0] sm:$0xff]
    %v1401 = vld [vmem:[#allocation17 + $0xf8] sm:$0xff]
    %v1402 = vld [vmem:[#allocation17 + $0x100] sm:$0xff]
    %v1403 = vld [vmem:[#allocation17 + $0x108] sm:$0xff]
    %v1404 = vld [vmem:[#allocation17 + $0x110] sm:$0xff]
    %v1405 = vld [vmem:[#allocation17 + $0x118] sm:$0xff]
    %v1406 = vld [vmem:[#allocation17 + $0x120] sm:$0xff]
    %v1407 = vld [vmem:[#allocation17 + $0x128] sm:$0xff]
    %v1408 = vld [vmem:[#allocation17 + $0x130] sm:$0xff]
    %v1409 = vld [vmem:[#allocation17 + $0x138] sm:$0xff]
    %v1410 = vld [vmem:[#allocation17 + $0x140] sm:$0xff]
    %v1411 = vld [vmem:[#allocation17 + $0x148] sm:$0xff]
    %v1412 = vld [vmem:[#allocation17 + $0x150] sm:$0xff]
    %v1413 = vld [vmem:[#allocation17 + $0x158] sm:$0xff]
    %v1414 = vld [vmem:[#allocation17 + $0x160] sm:$0xff]
    %v1415 = vld [vmem:[#allocation17 + $0x168] sm:$0xff]
    %v1416 = vld [vmem:[#allocation17 + $0x170] sm:$0xff]
    %v1417 = vld [vmem:[#allocation17 + $0x178] sm:$0xff]
    %v1418 = vld [vmem:[#allocation17 + $0x180] sm:$0xff]
    %v1419 = vld [vmem:[#allocation17 + $0x188] sm:$0xff]
    %v1420 = vld [vmem:[#allocation17 + $0x190] sm:$0xff]
    %v1421 = vld [vmem:[#allocation17 + $0x198] sm:$0xff]
    %v1422 = vld [vmem:[#allocation17 + $0x1a0] sm:$0xff]
    %v1423 = vld [vmem:[#allocation17 + $0x1a8] sm:$0xff]
    %v1424 = vld [vmem:[#allocation17 + $0x1b0] sm:$0xff]
    %v1425 = vld [vmem:[#allocation17 + $0x1b8] sm:$0xff]
    %v1426 = vld [vmem:[#allocation17 + $0x1c0] sm:$0xff]
    %v1427 = vld [vmem:[#allocation17 + $0x1c8] sm:$0xff]
    %v1428 = vld [vmem:[#allocation17 + $0x1d0] sm:$0xff]
    %v1429 = vld [vmem:[#allocation17 + $0x1d8] sm:$0xff]
    %v1430 = vld [vmem:[#allocation17 + $0x1e0] sm:$0xff]
    %v1431 = vld [vmem:[#allocation17 + $0x1e8] sm:$0xff]
    %v1432 = vld [vmem:[#allocation17 + $0x1f0] sm:$0xff]
    %v1433 = vld [vmem:[#allocation17 + $0x1f8] sm:$0xff]
    %v1434 = vld [vmem:[#allocation17 + $0x200] sm:$0xff]
    %v1435 = vld [vmem:[#allocation17 + $0x208] sm:$0xff]
    %v1436 = vld [vmem:[#allocation17 + $0x210] sm:$0xff]
    %v1437 = vld [vmem:[#allocation17 + $0x218] sm:$0xff]
    %v1438 = vld [vmem:[#allocation17 + $0x220] sm:$0xff]
    %v1439 = vld [vmem:[#allocation17 + $0x228] sm:$0xff]
    %v1440 = vld [vmem:[#allocation17 + $0x230] sm:$0xff]
    %v1441 = vld [vmem:[#allocation17 + $0x238] sm:$0xff]
    %v1442 = vld [vmem:[#allocation17 + $0x240] sm:$0xff]
    %v1443 = vld [vmem:[#allocation17 + $0x248] sm:$0xff]
    %v1444 = vld [vmem:[#allocation17 + $0x250] sm:$0xff]
    %v1445 = vld [vmem:[#allocation17 + $0x258] sm:$0xff]
    %v1446 = vld [vmem:[#allocation17 + $0x260] sm:$0xff]
    %v1447 = vld [vmem:[#allocation17 + $0x268] sm:$0xff]
    %v1448 = vld [vmem:[#allocation17 + $0x270] sm:$0xff]
    %v1449 = vld [vmem:[#allocation17 + $0x278] sm:$0xff]
    %v1450 = vld [vmem:[#allocation17 + $0x280] sm:$0xff]
    %v1451 = vld [vmem:[#allocation17 + $0x288] sm:$0xff]
    %v1452 = vld [vmem:[#allocation17 + $0x290] sm:$0xff]
    %v1453 = vld [vmem:[#allocation17 + $0x298] sm:$0xff]
    %v1454 = vld [vmem:[#allocation17 + $0x2a0] sm:$0xff]
    %v1455 = vld [vmem:[#allocation17 + $0x2a8] sm:$0xff]
    %v1456 = vld [vmem:[#allocation17 + $0x2b0] sm:$0xff]
    %v1457 = vld [vmem:[#allocation17 + $0x2b8] sm:$0xff]
    %v1458 = vld [vmem:[#allocation17 + $0x2c0] sm:$0xff]
    %v1459 = vld [vmem:[#allocation17 + $0x2c8] sm:$0xff]
    %v1460 = vld [vmem:[#allocation17 + $0x2d0] sm:$0xff]
    %v1461 = vld [vmem:[#allocation17 + $0x2d8] sm:$0xff]
    %v1462 = vld [vmem:[#allocation17 + $0x2e0] sm:$0xff]
    %v1463 = vld [vmem:[#allocation17 + $0x2e8] sm:$0xff]
    %v1464 = vld [vmem:[#allocation17 + $0x2f0] sm:$0xff]
    %v1465 = vld [vmem:[#allocation17 + $0x2f8] sm:$0xff]
    %v1466 = vld [vmem:[#allocation17 + $0x300] sm:$0xff]
    %v1467 = vld [vmem:[#allocation17 + $0x308] sm:$0xff]
    %v1468 = vld [vmem:[#allocation17 + $0x310] sm:$0xff]
    %v1469 = vld [vmem:[#allocation17 + $0x318] sm:$0xff]
    %v1470 = vld [vmem:[#allocation17 + $0x320] sm:$0xff]
    %v1471 = vld [vmem:[#allocation17 + $0x328] sm:$0xff]
    %v1472 = vld [vmem:[#allocation17 + $0x330] sm:$0xff]
    %v1473 = vld [vmem:[#allocation17 + $0x338] sm:$0xff]
    %v1474 = vld [vmem:[#allocation17 + $0x340] sm:$0xff]
    %v1475 = vld [vmem:[#allocation17 + $0x348] sm:$0xff]
    %v1476 = vld [vmem:[#allocation17 + $0x350] sm:$0xff]
    %v1477 = vld [vmem:[#allocation17 + $0x358] sm:$0xff]
    %v1478 = vld [vmem:[#allocation17 + $0x360] sm:$0xff]
    %v1479 = vld [vmem:[#allocation17 + $0x368] sm:$0xff]
    %v1480 = vld [vmem:[#allocation17 + $0x370] sm:$0xff]
    %v1481 = vld [vmem:[#allocation17 + $0x378] sm:$0xff]
    %v1482 = vld [vmem:[#allocation17 + $0x380] sm:$0xff]
    %v1483 = vld [vmem:[#allocation17 + $0x388] sm:$0xff]
    %v1484 = vld [vmem:[#allocation17 + $0x390] sm:$0xff]
    %v1485 = vld [vmem:[#allocation17 + $0x398] sm:$0xff]
    %v1486 = vld [vmem:[#allocation17 + $0x3a0] sm:$0xff]
    %v1487 = vld [vmem:[#allocation17 + $0x3a8] sm:$0xff]
    %v1488 = vld [vmem:[#allocation17 + $0x3b0] sm:$0xff]
    %v1489 = vld [vmem:[#allocation17 + $0x3b8] sm:$0xff]
    %v1490 = vld [vmem:[#allocation17 + $0x3c0] sm:$0xff]
    %v1491 = vld [vmem:[#allocation17 + $0x3c8] sm:$0xff]
    %v1492 = vld [vmem:[#allocation17 + $0x3d0] sm:$0xff]
    %v1493 = vld [vmem:[#allocation17 + $0x3d8] sm:$0xff]
    %v1494 = vld [vmem:[#allocation17 + $0x3e0] sm:$0xff]
    %v1495 = vld [vmem:[#allocation17 + $0x3e8] sm:$0xff]
    %v1496 = vld [vmem:[#allocation17 + $0x3f0] sm:$0xff]
    %v1497 = vld [vmem:[#allocation17 + $0x3f8] sm:$0xff]
    %v1498 = vld [vmem:[#allocation19] sm:$0xf]
    %v1500 = vperm.slane %v1498, 0
    %v1501 = vperm.slane %v1498, 1
    %v1502 = vperm.slane %v1498, 2
    %v1503 = vperm.slane %v1498, 3
    %1508 = vmatpush.msra.mxu0 %v1430
    %1509 = vmatpush.msra.mxu0 %v1426
    %1510 = vmatpush.msra.mxu0 %v1422
    %1511 = vmatpush.msra.mxu0 %v1418
    %1512 = vmatpush.msra.mxu0 %v1414
    %1513 = vmatpush.msra.mxu0 %v1410
    %1514 = vmatpush.msra.mxu0 %v1406
    %1515 = vmatpush.msra.mxu0 %v1402
    %1516 = vmatpush.msra.mxu0 %v1398
    %1517 = vmatpush.msra.mxu0 %v1394
    %1518 = vmatpush.msra.mxu0 %v1390
    %1519 = vmatpush.msra.mxu0 %v1386
    %1520 = vmatpush.msra.mxu0 %v1382
    %1521 = vmatpush.msra.mxu0 %v1378
    %1522 = vmatpush.msra.mxu0 %v1374
    %1523 = vmatpush.msra.mxu0 %v1370
    %1524 = vmatmul.f32.gmra.mxu0 %v1366
    %v1525 = vpop.f32.mrf.mxu0
    %v1526 = vadd.f32 %v1500, %v1525
    %1527 = vmatmul.f32.gmra.mxu0 %v1368
    %v1528 = vpop.f32.mrf.mxu0
    %v1529 = vadd.f32 %v1500, %v1528
    %1530 = vdwg.mxu0
    %1531 = vmatpush.msra.mxu0 %v1494
    %1532 = vmatpush.msra.mxu0 %v1490
    %1533 = vmatpush.msra.mxu0 %v1486
    %1534 = vmatpush.msra.mxu0 %v1482
    %1535 = vmatpush.msra.mxu0 %v1478
    %1536 = vmatpush.msra.mxu0 %v1474
    %1537 = vmatpush.msra.mxu0 %v1470
    %1538 = vmatpush.msra.mxu0 %v1466
    %1539 = vmatpush.msra.mxu0 %v1462
    %1540 = vmatpush.msra.mxu0 %v1458
    %1541 = vmatpush.msra.mxu0 %v1454
    %1542 = vmatpush.msra.mxu0 %v1450
    %1543 = vmatpush.msra.mxu0 %v1446
    %1544 = vmatpush.msra.mxu0 %v1442
    %1545 = vmatpush.msra.mxu0 %v1438
    %1546 = vmatpush.msra.mxu0 %v1434
    %1547 = vmatmul.f32.gmra.mxu0 %v1367
    %v1548 = vpop.f32.mrf.mxu0
    %v1549 = vadd.f32 %v1526, %v1548
    %1550 = vmatmul.f32.gmra.mxu0 %v1369
    %v1551 = vpop.f32.mrf.mxu0
    %v1552 = vadd.f32 %v1529, %v1551
    %1553 = vdwg.mxu0
    %1554 = vmatpush.msra.mxu0 %v1431
    %1555 = vmatpush.msra.mxu0 %v1427
    %1556 = vmatpush.msra.mxu0 %v1423
    %1557 = vmatpush.msra.mxu0 %v1419
    %1558 = vmatpush.msra.mxu0 %v1415
    %1559 = vmatpush.msra.mxu0 %v1411
    %1560 = vmatpush.msra.mxu0 %v1407
    %1561 = vmatpush.msra.mxu0 %v1403
    %1562 = vmatpush.msra.mxu0 %v1399
    %1563 = vmatpush.msra.mxu0 %v1395
    %1564 = vmatpush.msra.mxu0 %v1391
    %1565 = vmatpush.msra.mxu0 %v1387
    %1566 = vmatpush.msra.mxu0 %v1383
    %1567 = vmatpush.msra.mxu0 %v1379
    %1568 = vmatpush.msra.mxu0 %v1375
    %1569 = vmatpush.msra.mxu0 %v1371
    %1570 = vmatmul.f32.gmra.mxu0 %v1366
    %v1571 = vpop.f32.mrf.mxu0
    %v1572 = vadd.f32 %v1501, %v1571
    %1573 = vmatmul.f32.gmra.mxu0 %v1368
    %v1574 = vpop.f32.mrf.mxu0
    %v1575 = vadd.f32 %v1501, %v1574
    %1576 = vdwg.mxu0
    %1577 = vmatpush.msra.mxu0 %v1495
    %1578 = vmatpush.msra.mxu0 %v1491
    %1579 = vmatpush.msra.mxu0 %v1487
    %1580 = vmatpush.msra.mxu0 %v1483
    %1581 = vmatpush.msra.mxu0 %v1479
    %1582 = vmatpush.msra.mxu0 %v1475
    %1583 = vmatpush.msra.mxu0 %v1471
    %1584 = vmatpush.msra.mxu0 %v1467
    %1585 = vmatpush.msra.mxu0 %v1463
    %1586 = vmatpush.msra.mxu0 %v1459
    %1587 = vmatpush.msra.mxu0 %v1455
    %1588 = vmatpush.msra.mxu0 %v1451
    %1589 = vmatpush.msra.mxu0 %v1447
    %1590 = vmatpush.msra.mxu0 %v1443
    %1591 = vmatpush.msra.mxu0 %v1439
    %1592 = vmatpush.msra.mxu0 %v1435
    %1593 = vmatmul.f32.gmra.mxu0 %v1367
    %v1594 = vpop.f32.mrf.mxu0
    %v1595 = vadd.f32 %v1572, %v1594
    %1596 = vmatmul.f32.gmra.mxu0 %v1369
    %v1597 = vpop.f32.mrf.mxu0
    %v1598 = vadd.f32 %v1575, %v1597
    %1599 = vdwg.mxu0
    %1600 = vmatpush.msra.mxu0 %v1432
    %1601 = vmatpush.msra.mxu0 %v1428
    %1602 = vmatpush.msra.mxu0 %v1424
    %1603 = vmatpush.msra.mxu0 %v1420
    %1604 = vmatpush.msra.mxu0 %v1416
    %1605 = vmatpush.msra.mxu0 %v1412
    %1606 = vmatpush.msra.mxu0 %v1408
    %1607 = vmatpush.msra.mxu0 %v1404
    %1608 = vmatpush.msra.mxu0 %v1400
    %1609 = vmatpush.msra.mxu0 %v1396
    %1610 = vmatpush.msra.mxu0 %v1392
    %1611 = vmatpush.msra.mxu0 %v1388
    %1612 = vmatpush.msra.mxu0 %v1384
    %1613 = vmatpush.msra.mxu0 %v1380
    %1614 = vmatpush.msra.mxu0 %v1376
    %1615 = vmatpush.msra.mxu0 %v1372
    %1616 = vmatmul.f32.gmra.mxu0 %v1366
    %v1617 = vpop.f32.mrf.mxu0
    %v1618 = vadd.f32 %v1502, %v1617
    %1619 = vmatmul.f32.gmra.mxu0 %v1368
    %v1620 = vpop.f32.mrf.mxu0
    %v1621 = vadd.f32 %v1502, %v1620
    %1622 = vdwg.mxu0
    %1623 = vmatpush.msra.mxu0 %v1496
    %1624 = vmatpush.msra.mxu0 %v1492
    %1625 = vmatpush.msra.mxu0 %v1488
    %1626 = vmatpush.msra.mxu0 %v1484
    %1627 = vmatpush.msra.mxu0 %v1480
    %1628 = vmatpush.msra.mxu0 %v1476
    %1629 = vmatpush.msra.mxu0 %v1472
    %1630 = vmatpush.msra.mxu0 %v1468
    %1631 = vmatpush.msra.mxu0 %v1464
    %1632 = vmatpush.msra.mxu0 %v1460
    %1633 = vmatpush.msra.mxu0 %v1456
    %1634 = vmatpush.msra.mxu0 %v1452
    %1635 = vmatpush.msra.mxu0 %v1448
    %1636 = vmatpush.msra.mxu0 %v1444
    %1637 = vmatpush.msra.mxu0 %v1440
    %1638 = vmatpush.msra.mxu0 %v1436
    %1639 = vmatmul.f32.gmra.mxu0 %v1367
    %v1640 = vpop.f32.mrf.mxu0
    %v1641 = vadd.f32 %v1618, %v1640
    %1642 = vmatmul.f32.gmra.mxu0 %v1369
    %v1643 = vpop.f32.mrf.mxu0
    %v1644 = vadd.f32 %v1621, %v1643
    %1645 = vdwg.mxu0
    %1646 = vmatpush.msra.mxu0 %v1433
    %1647 = vmatpush.msra.mxu0 %v1429
    %1648 = vmatpush.msra.mxu0 %v1425
    %1649 = vmatpush.msra.mxu0 %v1421
    %1650 = vmatpush.msra.mxu0 %v1417
    %1651 = vmatpush.msra.mxu0 %v1413
    %1652 = vmatpush.msra.mxu0 %v1409
    %1653 = vmatpush.msra.mxu0 %v1405
    %1654 = vmatpush.msra.mxu0 %v1401
    %1655 = vmatpush.msra.mxu0 %v1397
    %1656 = vmatpush.msra.mxu0 %v1393
    %1657 = vmatpush.msra.mxu0 %v1389
    %1658 = vmatpush.msra.mxu0 %v1385
    %1659 = vmatpush.msra.mxu0 %v1381
    %1660 = vmatpush.msra.mxu0 %v1377
    %1661 = vmatpush.msra.mxu0 %v1373
    %1662 = vmatmul.f32.gmra.mxu0 %v1366
    %v1663 = vpop.f32.mrf.mxu0
    %v1664 = vadd.f32 %v1503, %v1663
    %1665 = vmatmul.f32.gmra.mxu0 %v1368
    %v1666 = vpop.f32.mrf.mxu0
    %v1667 = vadd.f32 %v1503, %v1666
    %1668 = vdwg.mxu0
    %1669 = vmatpush.msra.mxu0 %v1497
    %1670 = vmatpush.msra.mxu0 %v1493
    %1671 = vmatpush.msra.mxu0 %v1489
    %1672 = vmatpush.msra.mxu0 %v1485
    %1673 = vmatpush.msra.mxu0 %v1481
    %1674 = vmatpush.msra.mxu0 %v1477
    %1675 = vmatpush.msra.mxu0 %v1473
    %1676 = vmatpush.msra.mxu0 %v1469
    %1677 = vmatpush.msra.mxu0 %v1465
    %1678 = vmatpush.msra.mxu0 %v1461
    %1679 = vmatpush.msra.mxu0 %v1457
    %1680 = vmatpush.msra.mxu0 %v1453
    %1681 = vmatpush.msra.mxu0 %v1449
    %1682 = vmatpush.msra.mxu0 %v1445
    %1683 = vmatpush.msra.mxu0 %v1441
    %1684 = vmatpush.msra.mxu0 %v1437
    %1685 = vmatmul.f32.gmra.mxu0 %v1367
    %v1686 = vpop.f32.mrf.mxu0
    %v1687 = vadd.f32 %v1664, %v1686
    %1688 = vmatmul.f32.gmra.mxu0 %v1369
    %v1689 = vpop.f32.mrf.mxu0
    %v1690 = vadd.f32 %v1667, %v1689
    %1691 = vdwg.mxu0
    %v1692 = vmul.f32 %v1549, 0.5
    %v1693 = vmul.f32 %v1595, 0.5
    %v1694 = vmul.f32 %v1641, 0.5
    %v1695 = vmul.f32 %v1687, 0.5
    %v1696 = vmul.f32 %v1552, 0.5
    %v1697 = vmul.f32 %v1598, 0.5
    %v1698 = vmul.f32 %v1644, 0.5
    %v1699 = vmul.f32 %v1690, 0.5
    %v1700 = vmul.f32 %v1549, 0.70710677
    %v1701 = vmul.f32 %v1595, 0.70710677
    %v1702 = vmul.f32 %v1641, 0.70710677
    %v1703 = vmul.f32 %v1687, 0.70710677
    %v1704 = vmul.f32 %v1552, 0.70710677
    %v1705 = vmul.f32 %v1598, 0.70710677
    %v1706 = vmul.f32 %v1644, 0.70710677
    %v1707 = vmul.f32 %v1690, 0.70710677
    %v1708 = vmul.f32 %v1700, %v1700
    %v1709 = vmin.f32 16.0, %v1708
    %v1710 = vmul.f32 %v1709, 2.1237322e-06
    %v1711 = vadd.f32 %v1710, 0.00028619796
    %v1712 = vmul.f32 %v1709, %v1711
    %v1713 = vadd.f32 %v1712, 0.0036580483
    %v1714 = vmul.f32 %v1709, %v1713
    %v1715 = vadd.f32 %v1714, 0.05243302
    %v1716 = vmul.f32 %v1709, %v1715
    %v1717 = vadd.f32 %v1716, 0.18741608
    %v1718 = vmul.f32 %v1709, %v1717
    %v1719 = vadd.f32 %v1718, 1.1283791
    %v1720 = vmul.f32 %v1700, %v1719
    %v1721 = vmul.f32 %v1709, 3.8918573e-05
    %v1722 = vadd.f32 %v1721, 0.001143296
    %v1723 = vmul.f32 %v1709, %v1722
    %v1724 = vadd.f32 %v1723, 0.014752088
    %v1725 = vmul.f32 %v1709, %v1724
    %v1726 = vadd.f32 %v1725, 0.112945676
    %v1727 = vmul.f32 %v1709, %v1726
    %v1728 = vadd.f32 %v1727, 0.4994258
    %v1729 = vmul.f32 %v1709, %v1728
    %v1730 = vadd.f32 %v1729, 1.0
    %v1731 = vrcp.pop %v1730
    %v1732 = vmul.f32 %v1730, %v1731
    %v1733 = vsub.f32 1.0, %v1732
    %v1734 = vmul.f32 %v1731, %v1733
    %v1735 = vadd.f32 %v1731, %v1734
    %vm1736 = vweird.f32 %v1730
    %vm1737 = vweird.f32 %v1731
    %vm1738 = vmor %vm1736, %vm1737
    %v1739 = vsel %vm1738, %v1731, %v1735
    %v1740 = vand.u32 2147483647, %v1730
    %vm1741 = vcmp.eq.f32.partialorder %v1740, 8.507059e+37
    %v1742 = vand.u32 %v1730, 2147483648
    %v1743 = vor.u32 1.1754944e-38, %v1742
    %v1744 = vsel %vm1741, %v1743, %v1739
    %v1745 = vmul.f32 %v1720, %v1744
    %v1746 = vmin.f32 %v1745, 1.0
    %v1747 = vmax.f32 %v1746, -1.0
    %v1748 = vmul.f32 %v1701, %v1701
    %v1749 = vmin.f32 16.0, %v1748
    %v1750 = vmul.f32 %v1749, 2.1237322e-06
    %v1751 = vadd.f32 %v1750, 0.00028619796
    %v1752 = vmul.f32 %v1749, %v1751
    %v1753 = vadd.f32 %v1752, 0.0036580483
    %v1754 = vmul.f32 %v1749, %v1753
    %v1755 = vadd.f32 %v1754, 0.05243302
    %v1756 = vmul.f32 %v1749, %v1755
    %v1757 = vadd.f32 %v1756, 0.18741608
    %v1758 = vmul.f32 %v1749, %v1757
    %v1759 = vadd.f32 %v1758, 1.1283791
    %v1760 = vmul.f32 %v1701, %v1759
    %v1761 = vmul.f32 %v1749, 3.8918573e-05
    %v1762 = vadd.f32 %v1761, 0.001143296
    %v1763 = vmul.f32 %v1749, %v1762
    %v1764 = vadd.f32 %v1763, 0.014752088
    %v1765 = vmul.f32 %v1749, %v1764
    %v1766 = vadd.f32 %v1765, 0.112945676
    %v1767 = vmul.f32 %v1749, %v1766
    %v1768 = vadd.f32 %v1767, 0.4994258
    %v1769 = vmul.f32 %v1749, %v1768
    %v1770 = vadd.f32 %v1769, 1.0
    %v1771 = vrcp.pop %v1770
    %v1772 = vmul.f32 %v1770, %v1771
    %v1773 = vsub.f32 1.0, %v1772
    %v1774 = vmul.f32 %v1771, %v1773
    %v1775 = vadd.f32 %v1771, %v1774
    %vm1776 = vweird.f32 %v1770
    %vm1777 = vweird.f32 %v1771
    %vm1778 = vmor %vm1776, %vm1777
    %v1779 = vsel %vm1778, %v1771, %v1775
    %v1780 = vand.u32 2147483647, %v1770
    %vm1781 = vcmp.eq.f32.partialorder %v1780, 8.507059e+37
    %v1782 = vand.u32 %v1770, 2147483648
    %v1783 = vor.u32 1.1754944e-38, %v1782
    %v1784 = vsel %vm1781, %v1783, %v1779
    %v1785 = vmul.f32 %v1760, %v1784
    %v1786 = vmin.f32 %v1785, 1.0
    %v1787 = vmax.f32 %v1786, -1.0
    %v1788 = vmul.f32 %v1702, %v1702
    %v1789 = vmin.f32 16.0, %v1788
    %v1790 = vmul.f32 %v1789, 2.1237322e-06
    %v1791 = vadd.f32 %v1790, 0.00028619796
    %v1792 = vmul.f32 %v1789, %v1791
    %v1793 = vadd.f32 %v1792, 0.0036580483
    %v1794 = vmul.f32 %v1789, %v1793
    %v1795 = vadd.f32 %v1794, 0.05243302
    %v1796 = vmul.f32 %v1789, %v1795
    %v1797 = vadd.f32 %v1796, 0.18741608
    %v1798 = vmul.f32 %v1789, %v1797
    %v1799 = vadd.f32 %v1798, 1.1283791
    %v1800 = vmul.f32 %v1702, %v1799
    %v1801 = vmul.f32 %v1789, 3.8918573e-05
    %v1802 = vadd.f32 %v1801, 0.001143296
    %v1803 = vmul.f32 %v1789, %v1802
    %v1804 = vadd.f32 %v1803, 0.014752088
    %v1805 = vmul.f32 %v1789, %v1804
    %v1806 = vadd.f32 %v1805, 0.112945676
    %v1807 = vmul.f32 %v1789, %v1806
    %v1808 = vadd.f32 %v1807, 0.4994258
    %v1809 = vmul.f32 %v1789, %v1808
    %v1810 = vadd.f32 %v1809, 1.0
    %v1811 = vrcp.pop %v1810
    %v1812 = vmul.f32 %v1810, %v1811
    %v1813 = vsub.f32 1.0, %v1812
    %v1814 = vmul.f32 %v1811, %v1813
    %v1815 = vadd.f32 %v1811, %v1814
    %vm1816 = vweird.f32 %v1810
    %vm1817 = vweird.f32 %v1811
    %vm1818 = vmor %vm1816, %vm1817
    %v1819 = vsel %vm1818, %v1811, %v1815
    %v1820 = vand.u32 2147483647, %v1810
    %vm1821 = vcmp.eq.f32.partialorder %v1820, 8.507059e+37
    %v1822 = vand.u32 %v1810, 2147483648
    %v1823 = vor.u32 1.1754944e-38, %v1822
    %v1824 = vsel %vm1821, %v1823, %v1819
    %v1825 = vmul.f32 %v1800, %v1824
    %v1826 = vmin.f32 %v1825, 1.0
    %v1827 = vmax.f32 %v1826, -1.0
    %v1828 = vmul.f32 %v1703, %v1703
    %v1829 = vmin.f32 16.0, %v1828
    %v1830 = vmul.f32 %v1829, 2.1237322e-06
    %v1831 = vadd.f32 %v1830, 0.00028619796
    %v1832 = vmul.f32 %v1829, %v1831
    %v1833 = vadd.f32 %v1832, 0.0036580483
    %v1834 = vmul.f32 %v1829, %v1833
    %v1835 = vadd.f32 %v1834, 0.05243302
    %v1836 = vmul.f32 %v1829, %v1835
    %v1837 = vadd.f32 %v1836, 0.18741608
    %v1838 = vmul.f32 %v1829, %v1837
    %v1839 = vadd.f32 %v1838, 1.1283791
    %v1840 = vmul.f32 %v1703, %v1839
    %v1841 = vmul.f32 %v1829, 3.8918573e-05
    %v1842 = vadd.f32 %v1841, 0.001143296
    %v1843 = vmul.f32 %v1829, %v1842
    %v1844 = vadd.f32 %v1843, 0.014752088
    %v1845 = vmul.f32 %v1829, %v1844
    %v1846 = vadd.f32 %v1845, 0.112945676
    %v1847 = vmul.f32 %v1829, %v1846
    %v1848 = vadd.f32 %v1847, 0.4994258
    %v1849 = vmul.f32 %v1829, %v1848
    %v1850 = vadd.f32 %v1849, 1.0
    %v1851 = vrcp.pop %v1850
    %v1852 = vmul.f32 %v1850, %v1851
    %v1853 = vsub.f32 1.0, %v1852
    %v1854 = vmul.f32 %v1851, %v1853
    %v1855 = vadd.f32 %v1851, %v1854
    %vm1856 = vweird.f32 %v1850
    %vm1857 = vweird.f32 %v1851
    %vm1858 = vmor %vm1856, %vm1857
    %v1859 = vsel %vm1858, %v1851, %v1855
    %v1860 = vand.u32 2147483647, %v1850
    %vm1861 = vcmp.eq.f32.partialorder %v1860, 8.507059e+37
    %v1862 = vand.u32 %v1850, 2147483648
    %v1863 = vor.u32 1.1754944e-38, %v1862
    %v1864 = vsel %vm1861, %v1863, %v1859
    %v1865 = vmul.f32 %v1840, %v1864
    %v1866 = vmin.f32 %v1865, 1.0
    %v1867 = vmax.f32 %v1866, -1.0
    %v1868 = vmul.f32 %v1704, %v1704
    %v1869 = vmin.f32 16.0, %v1868
    %v1870 = vmul.f32 %v1869, 2.1237322e-06
    %v1871 = vadd.f32 %v1870, 0.00028619796
    %v1872 = vmul.f32 %v1869, %v1871
    %v1873 = vadd.f32 %v1872, 0.0036580483
    %v1874 = vmul.f32 %v1869, %v1873
    %v1875 = vadd.f32 %v1874, 0.05243302
    %v1876 = vmul.f32 %v1869, %v1875
    %v1877 = vadd.f32 %v1876, 0.18741608
    %v1878 = vmul.f32 %v1869, %v1877
    %v1879 = vadd.f32 %v1878, 1.1283791
    %v1880 = vmul.f32 %v1704, %v1879
    %v1881 = vmul.f32 %v1869, 3.8918573e-05
    %v1882 = vadd.f32 %v1881, 0.001143296
    %v1883 = vmul.f32 %v1869, %v1882
    %v1884 = vadd.f32 %v1883, 0.014752088
    %v1885 = vmul.f32 %v1869, %v1884
    %v1886 = vadd.f32 %v1885, 0.112945676
    %v1887 = vmul.f32 %v1869, %v1886
    %v1888 = vadd.f32 %v1887, 0.4994258
    %v1889 = vmul.f32 %v1869, %v1888
    %v1890 = vadd.f32 %v1889, 1.0
    %v1891 = vrcp.pop %v1890
    %v1892 = vmul.f32 %v1890, %v1891
    %v1893 = vsub.f32 1.0, %v1892
    %v1894 = vmul.f32 %v1891, %v1893
    %v1895 = vadd.f32 %v1891, %v1894
    %vm1896 = vweird.f32 %v1890
    %vm1897 = vweird.f32 %v1891
    %vm1898 = vmor %vm1896, %vm1897
    %v1899 = vsel %vm1898, %v1891, %v1895
    %v1900 = vand.u32 2147483647, %v1890
    %vm1901 = vcmp.eq.f32.partialorder %v1900, 8.507059e+37
    %v1902 = vand.u32 %v1890, 2147483648
    %v1903 = vor.u32 1.1754944e-38, %v1902
    %v1904 = vsel %vm1901, %v1903, %v1899
    %v1905 = vmul.f32 %v1880, %v1904
    %v1906 = vmin.f32 %v1905, 1.0
    %v1907 = vmax.f32 %v1906, -1.0
    %v1908 = vmul.f32 %v1705, %v1705
    %v1909 = vmin.f32 16.0, %v1908
    %v1910 = vmul.f32 %v1909, 2.1237322e-06
    %v1911 = vadd.f32 %v1910, 0.00028619796
    %v1912 = vmul.f32 %v1909, %v1911
    %v1913 = vadd.f32 %v1912, 0.0036580483
    %v1914 = vmul.f32 %v1909, %v1913
    %v1915 = vadd.f32 %v1914, 0.05243302
    %v1916 = vmul.f32 %v1909, %v1915
    %v1917 = vadd.f32 %v1916, 0.18741608
    %v1918 = vmul.f32 %v1909, %v1917
    %v1919 = vadd.f32 %v1918, 1.1283791
    %v1920 = vmul.f32 %v1705, %v1919
    %v1921 = vmul.f32 %v1909, 3.8918573e-05
    %v1922 = vadd.f32 %v1921, 0.001143296
    %v1923 = vmul.f32 %v1909, %v1922
    %v1924 = vadd.f32 %v1923, 0.014752088
    %v1925 = vmul.f32 %v1909, %v1924
    %v1926 = vadd.f32 %v1925, 0.112945676
    %v1927 = vmul.f32 %v1909, %v1926
    %v1928 = vadd.f32 %v1927, 0.4994258
    %v1929 = vmul.f32 %v1909, %v1928
    %v1930 = vadd.f32 %v1929, 1.0
    %v1931 = vrcp.pop %v1930
    %v1932 = vmul.f32 %v1930, %v1931
    %v1933 = vsub.f32 1.0, %v1932
    %v1934 = vmul.f32 %v1931, %v1933
    %v1935 = vadd.f32 %v1931, %v1934
    %vm1936 = vweird.f32 %v1930
    %vm1937 = vweird.f32 %v1931
    %vm1938 = vmor %vm1936, %vm1937
    %v1939 = vsel %vm1938, %v1931, %v1935
    %v1940 = vand.u32 2147483647, %v1930
    %vm1941 = vcmp.eq.f32.partialorder %v1940, 8.507059e+37
    %v1942 = vand.u32 %v1930, 2147483648
    %v1943 = vor.u32 1.1754944e-38, %v1942
    %v1944 = vsel %vm1941, %v1943, %v1939
    %v1945 = vmul.f32 %v1920, %v1944
    %v1946 = vmin.f32 %v1945, 1.0
    %v1947 = vmax.f32 %v1946, -1.0
    %v1948 = vmul.f32 %v1706, %v1706
    %v1949 = vmin.f32 16.0, %v1948
    %v1950 = vmul.f32 %v1949, 2.1237322e-06
    %v1951 = vadd.f32 %v1950, 0.00028619796
    %v1952 = vmul.f32 %v1949, %v1951
    %v1953 = vadd.f32 %v1952, 0.0036580483
    %v1954 = vmul.f32 %v1949, %v1953
    %v1955 = vadd.f32 %v1954, 0.05243302
    %v1956 = vmul.f32 %v1949, %v1955
    %v1957 = vadd.f32 %v1956, 0.18741608
    %v1958 = vmul.f32 %v1949, %v1957
    %v1959 = vadd.f32 %v1958, 1.1283791
    %v1960 = vmul.f32 %v1706, %v1959
    %v1961 = vmul.f32 %v1949, 3.8918573e-05
    %v1962 = vadd.f32 %v1961, 0.001143296
    %v1963 = vmul.f32 %v1949, %v1962
    %v1964 = vadd.f32 %v1963, 0.014752088
    %v1965 = vmul.f32 %v1949, %v1964
    %v1966 = vadd.f32 %v1965, 0.112945676
    %v1967 = vmul.f32 %v1949, %v1966
    %v1968 = vadd.f32 %v1967, 0.4994258
    %v1969 = vmul.f32 %v1949, %v1968
    %v1970 = vadd.f32 %v1969, 1.0
    %v1971 = vrcp.pop %v1970
    %v1972 = vmul.f32 %v1970, %v1971
    %v1973 = vsub.f32 1.0, %v1972
    %v1974 = vmul.f32 %v1971, %v1973
    %v1975 = vadd.f32 %v1971, %v1974
    %vm1976 = vweird.f32 %v1970
    %vm1977 = vweird.f32 %v1971
    %vm1978 = vmor %vm1976, %vm1977
    %v1979 = vsel %vm1978, %v1971, %v1975
    %v1980 = vand.u32 2147483647, %v1970
    %vm1981 = vcmp.eq.f32.partialorder %v1980, 8.507059e+37
    %v1982 = vand.u32 %v1970, 2147483648
    %v1983 = vor.u32 1.1754944e-38, %v1982
    %v1984 = vsel %vm1981, %v1983, %v1979
    %v1985 = vmul.f32 %v1960, %v1984
    %v1986 = vmin.f32 %v1985, 1.0
    %v1987 = vmax.f32 %v1986, -1.0
    %v1988 = vmul.f32 %v1707, %v1707
    %v1989 = vmin.f32 16.0, %v1988
    %v1990 = vmul.f32 %v1989, 2.1237322e-06
    %v1991 = vadd.f32 %v1990, 0.00028619796
    %v1992 = vmul.f32 %v1989, %v1991
    %v1993 = vadd.f32 %v1992, 0.0036580483
    %v1994 = vmul.f32 %v1989, %v1993
    %v1995 = vadd.f32 %v1994, 0.05243302
    %v1996 = vmul.f32 %v1989, %v1995
    %v1997 = vadd.f32 %v1996, 0.18741608
    %v1998 = vmul.f32 %v1989, %v1997
    %v1999 = vadd.f32 %v1998, 1.1283791
    %v2000 = vmul.f32 %v1707, %v1999
    %v2001 = vmul.f32 %v1989, 3.8918573e-05
    %v2002 = vadd.f32 %v2001, 0.001143296
    %v2003 = vmul.f32 %v1989, %v2002
    %v2004 = vadd.f32 %v2003, 0.014752088
    %v2005 = vmul.f32 %v1989, %v2004
    %v2006 = vadd.f32 %v2005, 0.112945676
    %v2007 = vmul.f32 %v1989, %v2006
    %v2008 = vadd.f32 %v2007, 0.4994258
    %v2009 = vmul.f32 %v1989, %v2008
    %v2010 = vadd.f32 %v2009, 1.0
    %v2011 = vrcp.pop %v2010
    %v2012 = vmul.f32 %v2010, %v2011
    %v2013 = vsub.f32 1.0, %v2012
    %v2014 = vmul.f32 %v2011, %v2013
    %v2015 = vadd.f32 %v2011, %v2014
    %vm2016 = vweird.f32 %v2010
    %vm2017 = vweird.f32 %v2011
    %vm2018 = vmor %vm2016, %vm2017
    %v2019 = vsel %vm2018, %v2011, %v2015
    %v2020 = vand.u32 2147483647, %v2010
    %vm2021 = vcmp.eq.f32.partialorder %v2020, 8.507059e+37
    %v2022 = vand.u32 %v2010, 2147483648
    %v2023 = vor.u32 1.1754944e-38, %v2022
    %v2024 = vsel %vm2021, %v2023, %v2019
    %v2025 = vmul.f32 %v2000, %v2024
    %v2026 = vmin.f32 %v2025, 1.0
    %v2027 = vmax.f32 %v2026, -1.0
    %v2028 = vadd.f32 %v1747, 1.0
    %v2029 = vadd.f32 %v1787, 1.0
    %v2030 = vadd.f32 %v1827, 1.0
    %v2031 = vadd.f32 %v1867, 1.0
    %v2032 = vadd.f32 %v1907, 1.0
    %v2033 = vadd.f32 %v1947, 1.0
    %v2034 = vadd.f32 %v1987, 1.0
    %v2035 = vadd.f32 %v2027, 1.0
    %v2036 = vmul.f32 %v1692, %v2028
    %v2037 = vmul.f32 %v1693, %v2029
    %v2038 = vmul.f32 %v1694, %v2030
    %v2039 = vmul.f32 %v1695, %v2031
    %v2040 = vmul.f32 %v1696, %v2032
    %v2041 = vmul.f32 %v1697, %v2033
    %v2042 = vmul.f32 %v1698, %v2034
    %v2043 = vmul.f32 %v1699, %v2035
    %v2044 = vld [vmem:[#allocation20] sm:$0xff]
    %v2045 = vld [vmem:[#allocation20 + $0x8] sm:$0xff]
    %v2046 = vld [vmem:[#allocation20 + $0x10] sm:$0xff]
    %v2047 = vld [vmem:[#allocation20 + $0x18] sm:$0xff]
    %v2048 = vld [vmem:[#allocation20 + $0x20] sm:$0xff]
    %v2049 = vld [vmem:[#allocation20 + $0x28] sm:$0xff]
    %v2050 = vld [vmem:[#allocation20 + $0x30] sm:$0xff]
    %v2051 = vld [vmem:[#allocation20 + $0x38] sm:$0xff]
    %v2052 = vld [vmem:[#allocation20 + $0x40] sm:$0xff]
    %v2053 = vld [vmem:[#allocation20 + $0x48] sm:$0xff]
    %v2054 = vld [vmem:[#allocation20 + $0x50] sm:$0xff]
    %v2055 = vld [vmem:[#allocation20 + $0x58] sm:$0xff]
    %v2056 = vld [vmem:[#allocation20 + $0x60] sm:$0xff]
    %v2057 = vld [vmem:[#allocation20 + $0x68] sm:$0xff]
    %v2058 = vld [vmem:[#allocation20 + $0x70] sm:$0xff]
    %v2059 = vld [vmem:[#allocation20 + $0x78] sm:$0xff]
    %v2060 = vld [vmem:[#allocation20 + $0x80] sm:$0xff]
    %v2061 = vld [vmem:[#allocation20 + $0x88] sm:$0xff]
    %v2062 = vld [vmem:[#allocation20 + $0x90] sm:$0xff]
    %v2063 = vld [vmem:[#allocation20 + $0x98] sm:$0xff]
    %v2064 = vld [vmem:[#allocation20 + $0xa0] sm:$0xff]
    %v2065 = vld [vmem:[#allocation20 + $0xa8] sm:$0xff]
    %v2066 = vld [vmem:[#allocation20 + $0xb0] sm:$0xff]
    %v2067 = vld [vmem:[#allocation20 + $0xb8] sm:$0xff]
    %v2068 = vld [vmem:[#allocation20 + $0xc0] sm:$0xff]
    %v2069 = vld [vmem:[#allocation20 + $0xc8] sm:$0xff]
    %v2070 = vld [vmem:[#allocation20 + $0xd0] sm:$0xff]
    %v2071 = vld [vmem:[#allocation20 + $0xd8] sm:$0xff]
    %v2072 = vld [vmem:[#allocation20 + $0xe0] sm:$0xff]
    %v2073 = vld [vmem:[#allocation20 + $0xe8] sm:$0xff]
    %v2074 = vld [vmem:[#allocation20 + $0xf0] sm:$0xff]
    %v2075 = vld [vmem:[#allocation20 + $0xf8] sm:$0xff]
    %v2076 = vld [vmem:[#allocation20 + $0x100] sm:$0xff]
    %v2077 = vld [vmem:[#allocation20 + $0x108] sm:$0xff]
    %v2078 = vld [vmem:[#allocation20 + $0x110] sm:$0xff]
    %v2079 = vld [vmem:[#allocation20 + $0x118] sm:$0xff]
    %v2080 = vld [vmem:[#allocation20 + $0x120] sm:$0xff]
    %v2081 = vld [vmem:[#allocation20 + $0x128] sm:$0xff]
    %v2082 = vld [vmem:[#allocation20 + $0x130] sm:$0xff]
    %v2083 = vld [vmem:[#allocation20 + $0x138] sm:$0xff]
    %v2084 = vld [vmem:[#allocation20 + $0x140] sm:$0xff]
    %v2085 = vld [vmem:[#allocation20 + $0x148] sm:$0xff]
    %v2086 = vld [vmem:[#allocation20 + $0x150] sm:$0xff]
    %v2087 = vld [vmem:[#allocation20 + $0x158] sm:$0xff]
    %v2088 = vld [vmem:[#allocation20 + $0x160] sm:$0xff]
    %v2089 = vld [vmem:[#allocation20 + $0x168] sm:$0xff]
    %v2090 = vld [vmem:[#allocation20 + $0x170] sm:$0xff]
    %v2091 = vld [vmem:[#allocation20 + $0x178] sm:$0xff]
    %v2092 = vld [vmem:[#allocation20 + $0x180] sm:$0xff]
    %v2093 = vld [vmem:[#allocation20 + $0x188] sm:$0xff]
    %v2094 = vld [vmem:[#allocation20 + $0x190] sm:$0xff]
    %v2095 = vld [vmem:[#allocation20 + $0x198] sm:$0xff]
    %v2096 = vld [vmem:[#allocation20 + $0x1a0] sm:$0xff]
    %v2097 = vld [vmem:[#allocation20 + $0x1a8] sm:$0xff]
    %v2098 = vld [vmem:[#allocation20 + $0x1b0] sm:$0xff]
    %v2099 = vld [vmem:[#allocation20 + $0x1b8] sm:$0xff]
    %v2100 = vld [vmem:[#allocation20 + $0x1c0] sm:$0xff]
    %v2101 = vld [vmem:[#allocation20 + $0x1c8] sm:$0xff]
    %v2102 = vld [vmem:[#allocation20 + $0x1d0] sm:$0xff]
    %v2103 = vld [vmem:[#allocation20 + $0x1d8] sm:$0xff]
    %v2104 = vld [vmem:[#allocation20 + $0x1e0] sm:$0xff]
    %v2105 = vld [vmem:[#allocation20 + $0x1e8] sm:$0xff]
    %v2106 = vld [vmem:[#allocation20 + $0x1f0] sm:$0xff]
    %v2107 = vld [vmem:[#allocation20 + $0x1f8] sm:$0xff]
    %v2108 = vld [vmem:[#allocation20 + $0x200] sm:$0xff]
    %v2109 = vld [vmem:[#allocation20 + $0x208] sm:$0xff]
    %v2110 = vld [vmem:[#allocation20 + $0x210] sm:$0xff]
    %v2111 = vld [vmem:[#allocation20 + $0x218] sm:$0xff]
    %v2112 = vld [vmem:[#allocation20 + $0x220] sm:$0xff]
    %v2113 = vld [vmem:[#allocation20 + $0x228] sm:$0xff]
    %v2114 = vld [vmem:[#allocation20 + $0x230] sm:$0xff]
    %v2115 = vld [vmem:[#allocation20 + $0x238] sm:$0xff]
    %v2116 = vld [vmem:[#allocation20 + $0x240] sm:$0xff]
    %v2117 = vld [vmem:[#allocation20 + $0x248] sm:$0xff]
    %v2118 = vld [vmem:[#allocation20 + $0x250] sm:$0xff]
    %v2119 = vld [vmem:[#allocation20 + $0x258] sm:$0xff]
    %v2120 = vld [vmem:[#allocation20 + $0x260] sm:$0xff]
    %v2121 = vld [vmem:[#allocation20 + $0x268] sm:$0xff]
    %v2122 = vld [vmem:[#allocation20 + $0x270] sm:$0xff]
    %v2123 = vld [vmem:[#allocation20 + $0x278] sm:$0xff]
    %v2124 = vld [vmem:[#allocation20 + $0x280] sm:$0xff]
    %v2125 = vld [vmem:[#allocation20 + $0x288] sm:$0xff]
    %v2126 = vld [vmem:[#allocation20 + $0x290] sm:$0xff]
    %v2127 = vld [vmem:[#allocation20 + $0x298] sm:$0xff]
    %v2128 = vld [vmem:[#allocation20 + $0x2a0] sm:$0xff]
    %v2129 = vld [vmem:[#allocation20 + $0x2a8] sm:$0xff]
    %v2130 = vld [vmem:[#allocation20 + $0x2b0] sm:$0xff]
    %v2131 = vld [vmem:[#allocation20 + $0x2b8] sm:$0xff]
    %v2132 = vld [vmem:[#allocation20 + $0x2c0] sm:$0xff]
    %v2133 = vld [vmem:[#allocation20 + $0x2c8] sm:$0xff]
    %v2134 = vld [vmem:[#allocation20 + $0x2d0] sm:$0xff]
    %v2135 = vld [vmem:[#allocation20 + $0x2d8] sm:$0xff]
    %v2136 = vld [vmem:[#allocation20 + $0x2e0] sm:$0xff]
    %v2137 = vld [vmem:[#allocation20 + $0x2e8] sm:$0xff]
    %v2138 = vld [vmem:[#allocation20 + $0x2f0] sm:$0xff]
    %v2139 = vld [vmem:[#allocation20 + $0x2f8] sm:$0xff]
    %v2140 = vld [vmem:[#allocation20 + $0x300] sm:$0xff]
    %v2141 = vld [vmem:[#allocation20 + $0x308] sm:$0xff]
    %v2142 = vld [vmem:[#allocation20 + $0x310] sm:$0xff]
    %v2143 = vld [vmem:[#allocation20 + $0x318] sm:$0xff]
    %v2144 = vld [vmem:[#allocation20 + $0x320] sm:$0xff]
    %v2145 = vld [vmem:[#allocation20 + $0x328] sm:$0xff]
    %v2146 = vld [vmem:[#allocation20 + $0x330] sm:$0xff]
    %v2147 = vld [vmem:[#allocation20 + $0x338] sm:$0xff]
    %v2148 = vld [vmem:[#allocation20 + $0x340] sm:$0xff]
    %v2149 = vld [vmem:[#allocation20 + $0x348] sm:$0xff]
    %v2150 = vld [vmem:[#allocation20 + $0x350] sm:$0xff]
    %v2151 = vld [vmem:[#allocation20 + $0x358] sm:$0xff]
    %v2152 = vld [vmem:[#allocation20 + $0x360] sm:$0xff]
    %v2153 = vld [vmem:[#allocation20 + $0x368] sm:$0xff]
    %v2154 = vld [vmem:[#allocation20 + $0x370] sm:$0xff]
    %v2155 = vld [vmem:[#allocation20 + $0x378] sm:$0xff]
    %v2156 = vld [vmem:[#allocation20 + $0x380] sm:$0xff]
    %v2157 = vld [vmem:[#allocation20 + $0x388] sm:$0xff]
    %v2158 = vld [vmem:[#allocation20 + $0x390] sm:$0xff]
    %v2159 = vld [vmem:[#allocation20 + $0x398] sm:$0xff]
    %v2160 = vld [vmem:[#allocation20 + $0x3a0] sm:$0xff]
    %v2161 = vld [vmem:[#allocation20 + $0x3a8] sm:$0xff]
    %v2162 = vld [vmem:[#allocation20 + $0x3b0] sm:$0xff]
    %v2163 = vld [vmem:[#allocation20 + $0x3b8] sm:$0xff]
    %v2164 = vld [vmem:[#allocation20 + $0x3c0] sm:$0xff]
    %v2165 = vld [vmem:[#allocation20 + $0x3c8] sm:$0xff]
    %v2166 = vld [vmem:[#allocation20 + $0x3d0] sm:$0xff]
    %v2167 = vld [vmem:[#allocation20 + $0x3d8] sm:$0xff]
    %v2168 = vld [vmem:[#allocation20 + $0x3e0] sm:$0xff]
    %v2169 = vld [vmem:[#allocation20 + $0x3e8] sm:$0xff]
    %v2170 = vld [vmem:[#allocation20 + $0x3f0] sm:$0xff]
    %v2171 = vld [vmem:[#allocation20 + $0x3f8] sm:$0xff]
    %v2172 = vld [vmem:[#allocation22] sm:$0x3]
    %v2174 = vperm.slane %v2172, 0
    %v2175 = vperm.slane %v2172, 1
    %2178 = vmatpush.msra.mxu0 %v2074
    %2179 = vmatpush.msra.mxu0 %v2072
    %2180 = vmatpush.msra.mxu0 %v2070
    %2181 = vmatpush.msra.mxu0 %v2068
    %2182 = vmatpush.msra.mxu0 %v2066
    %2183 = vmatpush.msra.mxu0 %v2064
    %2184 = vmatpush.msra.mxu0 %v2062
    %2185 = vmatpush.msra.mxu0 %v2060
    %2186 = vmatpush.msra.mxu0 %v2058
    %2187 = vmatpush.msra.mxu0 %v2056
    %2188 = vmatpush.msra.mxu0 %v2054
    %2189 = vmatpush.msra.mxu0 %v2052
    %2190 = vmatpush.msra.mxu0 %v2050
    %2191 = vmatpush.msra.mxu0 %v2048
    %2192 = vmatpush.msra.mxu0 %v2046
    %2193 = vmatpush.msra.mxu0 %v2044
    %2194 = vmatmul.f32.gmra.mxu0 %v2036
    %v2195 = vpop.f32.mrf.mxu0
    %v2196 = vadd.f32 %v2174, %v2195
    %2197 = vmatmul.f32.gmra.mxu0 %v2040
    %v2198 = vpop.f32.mrf.mxu0
    %v2199 = vadd.f32 %v2174, %v2198
    %2200 = vdwg.mxu0
    %2201 = vmatpush.msra.mxu0 %v2106
    %2202 = vmatpush.msra.mxu0 %v2104
    %2203 = vmatpush.msra.mxu0 %v2102
    %2204 = vmatpush.msra.mxu0 %v2100
    %2205 = vmatpush.msra.mxu0 %v2098
    %2206 = vmatpush.msra.mxu0 %v2096
    %2207 = vmatpush.msra.mxu0 %v2094
    %2208 = vmatpush.msra.mxu0 %v2092
    %2209 = vmatpush.msra.mxu0 %v2090
    %2210 = vmatpush.msra.mxu0 %v2088
    %2211 = vmatpush.msra.mxu0 %v2086
    %2212 = vmatpush.msra.mxu0 %v2084
    %2213 = vmatpush.msra.mxu0 %v2082
    %2214 = vmatpush.msra.mxu0 %v2080
    %2215 = vmatpush.msra.mxu0 %v2078
    %2216 = vmatpush.msra.mxu0 %v2076
    %2217 = vmatmul.f32.gmra.mxu0 %v2037
    %v2218 = vpop.f32.mrf.mxu0
    %v2219 = vadd.f32 %v2196, %v2218
    %2220 = vmatmul.f32.gmra.mxu0 %v2041
    %v2221 = vpop.f32.mrf.mxu0
    %v2222 = vadd.f32 %v2199, %v2221
    %2223 = vdwg.mxu0
    %2224 = vmatpush.msra.mxu0 %v2138
    %2225 = vmatpush.msra.mxu0 %v2136
    %2226 = vmatpush.msra.mxu0 %v2134
    %2227 = vmatpush.msra.mxu0 %v2132
    %2228 = vmatpush.msra.mxu0 %v2130
    %2229 = vmatpush.msra.mxu0 %v2128
    %2230 = vmatpush.msra.mxu0 %v2126
    %2231 = vmatpush.msra.mxu0 %v2124
    %2232 = vmatpush.msra.mxu0 %v2122
    %2233 = vmatpush.msra.mxu0 %v2120
    %2234 = vmatpush.msra.mxu0 %v2118
    %2235 = vmatpush.msra.mxu0 %v2116
    %2236 = vmatpush.msra.mxu0 %v2114
    %2237 = vmatpush.msra.mxu0 %v2112
    %2238 = vmatpush.msra.mxu0 %v2110
    %2239 = vmatpush.msra.mxu0 %v2108
    %2240 = vmatmul.f32.gmra.mxu0 %v2038
    %v2241 = vpop.f32.mrf.mxu0
    %v2242 = vadd.f32 %v2219, %v2241
    %2243 = vmatmul.f32.gmra.mxu0 %v2042
    %v2244 = vpop.f32.mrf.mxu0
    %v2245 = vadd.f32 %v2222, %v2244
    %2246 = vdwg.mxu0
    %2247 = vmatpush.msra.mxu0 %v2170
    %2248 = vmatpush.msra.mxu0 %v2168
    %2249 = vmatpush.msra.mxu0 %v2166
    %2250 = vmatpush.msra.mxu0 %v2164
    %2251 = vmatpush.msra.mxu0 %v2162
    %2252 = vmatpush.msra.mxu0 %v2160
    %2253 = vmatpush.msra.mxu0 %v2158
    %2254 = vmatpush.msra.mxu0 %v2156
    %2255 = vmatpush.msra.mxu0 %v2154
    %2256 = vmatpush.msra.mxu0 %v2152
    %2257 = vmatpush.msra.mxu0 %v2150
    %2258 = vmatpush.msra.mxu0 %v2148
    %2259 = vmatpush.msra.mxu0 %v2146
    %2260 = vmatpush.msra.mxu0 %v2144
    %2261 = vmatpush.msra.mxu0 %v2142
    %2262 = vmatpush.msra.mxu0 %v2140
    %2263 = vmatmul.f32.gmra.mxu0 %v2039
    %v2264 = vpop.f32.mrf.mxu0
    %v2265 = vadd.f32 %v2242, %v2264
    %2266 = vmatmul.f32.gmra.mxu0 %v2043
    %v2267 = vpop.f32.mrf.mxu0
    %v2268 = vadd.f32 %v2245, %v2267
    %2269 = vdwg.mxu0
    %2270 = vmatpush.msra.mxu0 %v2075
    %2271 = vmatpush.msra.mxu0 %v2073
    %2272 = vmatpush.msra.mxu0 %v2071
    %2273 = vmatpush.msra.mxu0 %v2069
    %2274 = vmatpush.msra.mxu0 %v2067
    %2275 = vmatpush.msra.mxu0 %v2065
    %2276 = vmatpush.msra.mxu0 %v2063
    %2277 = vmatpush.msra.mxu0 %v2061
    %2278 = vmatpush.msra.mxu0 %v2059
    %2279 = vmatpush.msra.mxu0 %v2057
    %2280 = vmatpush.msra.mxu0 %v2055
    %2281 = vmatpush.msra.mxu0 %v2053
    %2282 = vmatpush.msra.mxu0 %v2051
    %2283 = vmatpush.msra.mxu0 %v2049
    %2284 = vmatpush.msra.mxu0 %v2047
    %2285 = vmatpush.msra.mxu0 %v2045
    %2286 = vmatmul.f32.gmra.mxu0 %v2036
    %v2287 = vpop.f32.mrf.mxu0
    %v2288 = vadd.f32 %v2175, %v2287
    %2289 = vmatmul.f32.gmra.mxu0 %v2040
    %v2290 = vpop.f32.mrf.mxu0
    %v2291 = vadd.f32 %v2175, %v2290
    %2292 = vdwg.mxu0
    %2293 = vmatpush.msra.mxu0 %v2107
    %2294 = vmatpush.msra.mxu0 %v2105
    %2295 = vmatpush.msra.mxu0 %v2103
    %2296 = vmatpush.msra.mxu0 %v2101
    %2297 = vmatpush.msra.mxu0 %v2099
    %2298 = vmatpush.msra.mxu0 %v2097
    %2299 = vmatpush.msra.mxu0 %v2095
    %2300 = vmatpush.msra.mxu0 %v2093
    %2301 = vmatpush.msra.mxu0 %v2091
    %2302 = vmatpush.msra.mxu0 %v2089
    %2303 = vmatpush.msra.mxu0 %v2087
    %2304 = vmatpush.msra.mxu0 %v2085
    %2305 = vmatpush.msra.mxu0 %v2083
    %2306 = vmatpush.msra.mxu0 %v2081
    %2307 = vmatpush.msra.mxu0 %v2079
    %2308 = vmatpush.msra.mxu0 %v2077
    %2309 = vmatmul.f32.gmra.mxu0 %v2037
    %v2310 = vpop.f32.mrf.mxu0
    %v2311 = vadd.f32 %v2288, %v2310
    %2312 = vmatmul.f32.gmra.mxu0 %v2041
    %v2313 = vpop.f32.mrf.mxu0
    %v2314 = vadd.f32 %v2291, %v2313
    %2315 = vdwg.mxu0
    %2316 = vmatpush.msra.mxu0 %v2139
    %2317 = vmatpush.msra.mxu0 %v2137
    %2318 = vmatpush.msra.mxu0 %v2135
    %2319 = vmatpush.msra.mxu0 %v2133
    %2320 = vmatpush.msra.mxu0 %v2131
    %2321 = vmatpush.msra.mxu0 %v2129
    %2322 = vmatpush.msra.mxu0 %v2127
    %2323 = vmatpush.msra.mxu0 %v2125
    %2324 = vmatpush.msra.mxu0 %v2123
    %2325 = vmatpush.msra.mxu0 %v2121
    %2326 = vmatpush.msra.mxu0 %v2119
    %2327 = vmatpush.msra.mxu0 %v2117
    %2328 = vmatpush.msra.mxu0 %v2115
    %2329 = vmatpush.msra.mxu0 %v2113
    %2330 = vmatpush.msra.mxu0 %v2111
    %2331 = vmatpush.msra.mxu0 %v2109
    %2332 = vmatmul.f32.gmra.mxu0 %v2038
    %v2333 = vpop.f32.mrf.mxu0
    %v2334 = vadd.f32 %v2311, %v2333
    %2335 = vmatmul.f32.gmra.mxu0 %v2042
    %v2336 = vpop.f32.mrf.mxu0
    %v2337 = vadd.f32 %v2314, %v2336
    %2338 = vdwg.mxu0
    %2339 = vmatpush.msra.mxu0 %v2171
    %2340 = vmatpush.msra.mxu0 %v2169
    %2341 = vmatpush.msra.mxu0 %v2167
    %2342 = vmatpush.msra.mxu0 %v2165
    %2343 = vmatpush.msra.mxu0 %v2163
    %2344 = vmatpush.msra.mxu0 %v2161
    %2345 = vmatpush.msra.mxu0 %v2159
    %2346 = vmatpush.msra.mxu0 %v2157
    %2347 = vmatpush.msra.mxu0 %v2155
    %2348 = vmatpush.msra.mxu0 %v2153
    %2349 = vmatpush.msra.mxu0 %v2151
    %2350 = vmatpush.msra.mxu0 %v2149
    %2351 = vmatpush.msra.mxu0 %v2147
    %2352 = vmatpush.msra.mxu0 %v2145
    %2353 = vmatpush.msra.mxu0 %v2143
    %2354 = vmatpush.msra.mxu0 %v2141
    %2355 = vmatmul.f32.gmra.mxu0 %v2039
    %v2356 = vpop.f32.mrf.mxu0
    %v2357 = vadd.f32 %v2334, %v2356
    %2358 = vmatmul.f32.gmra.mxu0 %v2043
    %v2359 = vpop.f32.mrf.mxu0
    %v2360 = vadd.f32 %v2337, %v2359
    %2361 = vdwg.mxu0
    %v2362 = vadd.f32 %v2265, %v1366
    %v2363 = vadd.f32 %v2357, %v1367
    %v2364 = vadd.f32 %v2268, %v1368
    %v2365 = vadd.f32 %v2360, %v1369
    %v2366 = vld [vmem:[#allocation23] sm:$0x3]
    %v2367 = vld [vmem:[#allocation25] sm:$0x3]
    %v2368 = vadd.f32 %v2362, %v2363
    %2369 = vadd.xlane.f32.xlu0 %v2368
    %v2370 = vpop.xlane.xlu0 %2369
    %v2371 = vadd.f32 %v2364, %v2365
    %2372 = vadd.xlane.f32.xlu0 %v2371
    %v2373 = vpop.xlane.xlu0 %2372
    %v2374 = vmul.f32 %v2370, %v368
    %v2375 = vmul.f32 %v2373, %v368
    %v2376 = vsub.f32 %v2362, %v2374
    %v2377 = vsub.f32 %v2363, %v2374
    %v2378 = vsub.f32 %v2364, %v2375
    %v2379 = vsub.f32 %v2365, %v2375
    %v2380 = vmul.f32 %v2376, %v2376
    %v2381 = vmul.f32 %v2377, %v2377
    %v2382 = vmul.f32 %v2378, %v2378
    %v2383 = vmul.f32 %v2379, %v2379
    %v2384 = vadd.f32 %v2380, %v2381
    %2385 = vadd.xlane.f32.xlu0 %v2384
    %v2386 = vpop.xlane.xlu0 %2385
    %v2387 = vadd.f32 %v2382, %v2383
    %2388 = vadd.xlane.f32.xlu0 %v2387
    %v2389 = vpop.xlane.xlu0 %2388
    %v2390 = vmul.f32 %v2386, %v368
    %v2391 = vmul.f32 %v2389, %v368
    %v2392 = vadd.f32 %v2390, 1e-12
    %v2393 = vadd.f32 %v2391, 1e-12
    %v2394 = vrsqrt.pop %v2392
    %v2395 = vmul.f32 %v2394, %v2392
    %v2396 = vmul.f32 %v2395, %v2394
    %v2397 = vmul.f32 0.5, %v2396
    %v2398 = vsub.f32 1.5, %v2397
    %v2399 = vmul.f32 %v2394, %v2398
    %vm2400 = vweird.f32 %v2392
    %vm2401 = vweird.f32 %v2394
    %vm2402 = vmor %vm2400, %vm2401
    %v2403 = vsel %vm2402, %v2394, %v2399
    %v2404 = vrsqrt.pop %v2393
    %v2405 = vmul.f32 %v2404, %v2393
    %v2406 = vmul.f32 %v2405, %v2404
    %v2407 = vmul.f32 0.5, %v2406
    %v2408 = vsub.f32 1.5, %v2407
    %v2409 = vmul.f32 %v2404, %v2408
    %vm2410 = vweird.f32 %v2393
    %vm2411 = vweird.f32 %v2404
    %vm2412 = vmor %vm2410, %vm2411
    %v2413 = vsel %vm2412, %v2404, %v2409
    %v2414 = vmul.f32 %v2376, %v2403
    %v2415 = vmul.f32 %v2377, %v2403
    %v2416 = vmul.f32 %v2378, %v2413
    %v2417 = vmul.f32 %v2379, %v2413
    %v2419 = vperm.slane %v2366, 0
    %v2420 = vperm.slane %v2366, 1
    %v2423 = vmul.f32 %v2414, %v2419
    %v2424 = vmul.f32 %v2415, %v2420
    %v2425 = vmul.f32 %v2416, %v2419
    %v2426 = vmul.f32 %v2417, %v2420
    %v2428 = vperm.slane %v2367, 0
    %v2429 = vperm.slane %v2367, 1
    %v2432 = vadd.f32 %v2423, %v2428
    %v2433 = vadd.f32 %v2424, %v2429
    %v2434 = vadd.f32 %v2425, %v2428
    %v2435 = vadd.f32 %v2426, %v2429
    %s2436 = scalar_lea.vmem [#allocation8], 1536
    %v2437 = vld [vmem:[%s2436] sm:$0xff]
    %v2438 = vld [vmem:[%s2436 + $0x8] sm:$0xff]
    %v2439 = vld [vmem:[%s2436 + $0x10] sm:$0xff]
    %v2440 = vld [vmem:[%s2436 + $0x18] sm:$0xff]
    %v2441 = vld [vmem:[%s2436 + $0x20] sm:$0xff]
    %v2442 = vld [vmem:[%s2436 + $0x28] sm:$0xff]
    %v2443 = vld [vmem:[%s2436 + $0x30] sm:$0xff]
    %v2444 = vld [vmem:[%s2436 + $0x38] sm:$0xff]
    %v2445 = vld [vmem:[%s2436 + $0x40] sm:$0xff]
    %v2446 = vld [vmem:[%s2436 + $0x48] sm:$0xff]
    %v2447 = vld [vmem:[%s2436 + $0x50] sm:$0xff]
    %v2448 = vld [vmem:[%s2436 + $0x58] sm:$0xff]
    %v2449 = vld [vmem:[%s2436 + $0x60] sm:$0xff]
    %v2450 = vld [vmem:[%s2436 + $0x68] sm:$0xff]
    %v2451 = vld [vmem:[%s2436 + $0x70] sm:$0xff]
    %v2452 = vld [vmem:[%s2436 + $0x78] sm:$0xff]
    %v2453 = vld [vmem:[%s2436 + $0x80] sm:$0xff]
    %v2454 = vld [vmem:[%s2436 + $0x88] sm:$0xff]
    %v2455 = vld [vmem:[%s2436 + $0x90] sm:$0xff]
    %v2456 = vld [vmem:[%s2436 + $0x98] sm:$0xff]
    %v2457 = vld [vmem:[%s2436 + $0xa0] sm:$0xff]
    %v2458 = vld [vmem:[%s2436 + $0xa8] sm:$0xff]
    %v2459 = vld [vmem:[%s2436 + $0xb0] sm:$0xff]
    %v2460 = vld [vmem:[%s2436 + $0xb8] sm:$0xff]
    %v2461 = vld [vmem:[%s2436 + $0xc0] sm:$0xff]
    %v2462 = vld [vmem:[%s2436 + $0xc8] sm:$0xff]
    %v2463 = vld [vmem:[%s2436 + $0xd0] sm:$0xff]
    %v2464 = vld [vmem:[%s2436 + $0xd8] sm:$0xff]
    %v2465 = vld [vmem:[%s2436 + $0xe0] sm:$0xff]
    %v2466 = vld [vmem:[%s2436 + $0xe8] sm:$0xff]
    %v2467 = vld [vmem:[%s2436 + $0xf0] sm:$0xff]
    %v2468 = vld [vmem:[%s2436 + $0xf8] sm:$0xff]
    %v2469 = vld [vmem:[%s2436 + $0x100] sm:$0xff]
    %v2470 = vld [vmem:[%s2436 + $0x108] sm:$0xff]
    %v2471 = vld [vmem:[%s2436 + $0x110] sm:$0xff]
    %v2472 = vld [vmem:[%s2436 + $0x118] sm:$0xff]
    %v2473 = vld [vmem:[%s2436 + $0x120] sm:$0xff]
    %v2474 = vld [vmem:[%s2436 + $0x128] sm:$0xff]
    %v2475 = vld [vmem:[%s2436 + $0x130] sm:$0xff]
    %v2476 = vld [vmem:[%s2436 + $0x138] sm:$0xff]
    %v2477 = vld [vmem:[%s2436 + $0x140] sm:$0xff]
    %v2478 = vld [vmem:[%s2436 + $0x148] sm:$0xff]
    %v2479 = vld [vmem:[%s2436 + $0x150] sm:$0xff]
    %v2480 = vld [vmem:[%s2436 + $0x158] sm:$0xff]
    %v2481 = vld [vmem:[%s2436 + $0x160] sm:$0xff]
    %v2482 = vld [vmem:[%s2436 + $0x168] sm:$0xff]
    %v2483 = vld [vmem:[%s2436 + $0x170] sm:$0xff]
    %v2484 = vld [vmem:[%s2436 + $0x178] sm:$0xff]
    %v2485 = vld [vmem:[%s2436 + $0x180] sm:$0xff]
    %v2486 = vld [vmem:[%s2436 + $0x188] sm:$0xff]
    %v2487 = vld [vmem:[%s2436 + $0x190] sm:$0xff]
    %v2488 = vld [vmem:[%s2436 + $0x198] sm:$0xff]
    %v2489 = vld [vmem:[%s2436 + $0x1a0] sm:$0xff]
    %v2490 = vld [vmem:[%s2436 + $0x1a8] sm:$0xff]
    %v2491 = vld [vmem:[%s2436 + $0x1b0] sm:$0xff]
    %v2492 = vld [vmem:[%s2436 + $0x1b8] sm:$0xff]
    %v2493 = vld [vmem:[%s2436 + $0x1c0] sm:$0xff]
    %v2494 = vld [vmem:[%s2436 + $0x1c8] sm:$0xff]
    %v2495 = vld [vmem:[%s2436 + $0x1d0] sm:$0xff]
    %v2496 = vld [vmem:[%s2436 + $0x1d8] sm:$0xff]
    %v2497 = vld [vmem:[%s2436 + $0x1e0] sm:$0xff]
    %v2498 = vld [vmem:[%s2436 + $0x1e8] sm:$0xff]
    %v2499 = vld [vmem:[%s2436 + $0x1f0] sm:$0xff]
    %v2500 = vld [vmem:[%s2436 + $0x1f8] sm:$0xff]
    %v2501 = vld [vmem:[%s2436 + $0x200] sm:$0xff]
    %v2502 = vld [vmem:[%s2436 + $0x208] sm:$0xff]
    %v2503 = vld [vmem:[%s2436 + $0x210] sm:$0xff]
    %v2504 = vld [vmem:[%s2436 + $0x218] sm:$0xff]
    %v2505 = vld [vmem:[%s2436 + $0x220] sm:$0xff]
    %v2506 = vld [vmem:[%s2436 + $0x228] sm:$0xff]
    %v2507 = vld [vmem:[%s2436 + $0x230] sm:$0xff]
    %v2508 = vld [vmem:[%s2436 + $0x238] sm:$0xff]
    %v2509 = vld [vmem:[%s2436 + $0x240] sm:$0xff]
    %v2510 = vld [vmem:[%s2436 + $0x248] sm:$0xff]
    %v2511 = vld [vmem:[%s2436 + $0x250] sm:$0xff]
    %v2512 = vld [vmem:[%s2436 + $0x258] sm:$0xff]
    %v2513 = vld [vmem:[%s2436 + $0x260] sm:$0xff]
    %v2514 = vld [vmem:[%s2436 + $0x268] sm:$0xff]
    %v2515 = vld [vmem:[%s2436 + $0x270] sm:$0xff]
    %v2516 = vld [vmem:[%s2436 + $0x278] sm:$0xff]
    %v2517 = vld [vmem:[%s2436 + $0x280] sm:$0xff]
    %v2518 = vld [vmem:[%s2436 + $0x288] sm:$0xff]
    %v2519 = vld [vmem:[%s2436 + $0x290] sm:$0xff]
    %v2520 = vld [vmem:[%s2436 + $0x298] sm:$0xff]
    %v2521 = vld [vmem:[%s2436 + $0x2a0] sm:$0xff]
    %v2522 = vld [vmem:[%s2436 + $0x2a8] sm:$0xff]
    %v2523 = vld [vmem:[%s2436 + $0x2b0] sm:$0xff]
    %v2524 = vld [vmem:[%s2436 + $0x2b8] sm:$0xff]
    %v2525 = vld [vmem:[%s2436 + $0x2c0] sm:$0xff]
    %v2526 = vld [vmem:[%s2436 + $0x2c8] sm:$0xff]
    %v2527 = vld [vmem:[%s2436 + $0x2d0] sm:$0xff]
    %v2528 = vld [vmem:[%s2436 + $0x2d8] sm:$0xff]
    %v2529 = vld [vmem:[%s2436 + $0x2e0] sm:$0xff]
    %v2530 = vld [vmem:[%s2436 + $0x2e8] sm:$0xff]
    %v2531 = vld [vmem:[%s2436 + $0x2f0] sm:$0xff]
    %v2532 = vld [vmem:[%s2436 + $0x2f8] sm:$0xff]
    %v2533 = vld [vmem:[%s2436 + $0x300] sm:$0xff]
    %v2534 = vld [vmem:[%s2436 + $0x308] sm:$0xff]
    %v2535 = vld [vmem:[%s2436 + $0x310] sm:$0xff]
    %v2536 = vld [vmem:[%s2436 + $0x318] sm:$0xff]
    %v2537 = vld [vmem:[%s2436 + $0x320] sm:$0xff]
    %v2538 = vld [vmem:[%s2436 + $0x328] sm:$0xff]
    %v2539 = vld [vmem:[%s2436 + $0x330] sm:$0xff]
    %v2540 = vld [vmem:[%s2436 + $0x338] sm:$0xff]
    %v2541 = vld [vmem:[%s2436 + $0x340] sm:$0xff]
    %v2542 = vld [vmem:[%s2436 + $0x348] sm:$0xff]
    %v2543 = vld [vmem:[%s2436 + $0x350] sm:$0xff]
    %v2544 = vld [vmem:[%s2436 + $0x358] sm:$0xff]
    %v2545 = vld [vmem:[%s2436 + $0x360] sm:$0xff]
    %v2546 = vld [vmem:[%s2436 + $0x368] sm:$0xff]
    %v2547 = vld [vmem:[%s2436 + $0x370] sm:$0xff]
    %v2548 = vld [vmem:[%s2436 + $0x378] sm:$0xff]
    %v2549 = vld [vmem:[%s2436 + $0x380] sm:$0xff]
    %v2550 = vld [vmem:[%s2436 + $0x388] sm:$0xff]
    %v2551 = vld [vmem:[%s2436 + $0x390] sm:$0xff]
    %v2552 = vld [vmem:[%s2436 + $0x398] sm:$0xff]
    %v2553 = vld [vmem:[%s2436 + $0x3a0] sm:$0xff]
    %v2554 = vld [vmem:[%s2436 + $0x3a8] sm:$0xff]
    %v2555 = vld [vmem:[%s2436 + $0x3b0] sm:$0xff]
    %v2556 = vld [vmem:[%s2436 + $0x3b8] sm:$0xff]
    %v2557 = vld [vmem:[%s2436 + $0x3c0] sm:$0xff]
    %v2558 = vld [vmem:[%s2436 + $0x3c8] sm:$0xff]
    %v2559 = vld [vmem:[%s2436 + $0x3d0] sm:$0xff]
    %v2560 = vld [vmem:[%s2436 + $0x3d8] sm:$0xff]
    %v2561 = vld [vmem:[%s2436 + $0x3e0] sm:$0xff]
    %v2562 = vld [vmem:[%s2436 + $0x3e8] sm:$0xff]
    %v2563 = vld [vmem:[%s2436 + $0x3f0] sm:$0xff]
    %v2564 = vld [vmem:[%s2436 + $0x3f8] sm:$0xff]
    %v2565 = vld [vmem:[%s2436 + $0x400] sm:$0xff]
    %v2566 = vld [vmem:[%s2436 + $0x408] sm:$0xff]
    %v2567 = vld [vmem:[%s2436 + $0x410] sm:$0xff]
    %v2568 = vld [vmem:[%s2436 + $0x418] sm:$0xff]
    %v2569 = vld [vmem:[%s2436 + $0x420] sm:$0xff]
    %v2570 = vld [vmem:[%s2436 + $0x428] sm:$0xff]
    %v2571 = vld [vmem:[%s2436 + $0x430] sm:$0xff]
    %v2572 = vld [vmem:[%s2436 + $0x438] sm:$0xff]
    %v2573 = vld [vmem:[%s2436 + $0x440] sm:$0xff]
    %v2574 = vld [vmem:[%s2436 + $0x448] sm:$0xff]
    %v2575 = vld [vmem:[%s2436 + $0x450] sm:$0xff]
    %v2576 = vld [vmem:[%s2436 + $0x458] sm:$0xff]
    %v2577 = vld [vmem:[%s2436 + $0x460] sm:$0xff]
    %v2578 = vld [vmem:[%s2436 + $0x468] sm:$0xff]
    %v2579 = vld [vmem:[%s2436 + $0x470] sm:$0xff]
    %v2580 = vld [vmem:[%s2436 + $0x478] sm:$0xff]
    %v2581 = vld [vmem:[%s2436 + $0x480] sm:$0xff]
    %v2582 = vld [vmem:[%s2436 + $0x488] sm:$0xff]
    %v2583 = vld [vmem:[%s2436 + $0x490] sm:$0xff]
    %v2584 = vld [vmem:[%s2436 + $0x498] sm:$0xff]
    %v2585 = vld [vmem:[%s2436 + $0x4a0] sm:$0xff]
    %v2586 = vld [vmem:[%s2436 + $0x4a8] sm:$0xff]
    %v2587 = vld [vmem:[%s2436 + $0x4b0] sm:$0xff]
    %v2588 = vld [vmem:[%s2436 + $0x4b8] sm:$0xff]
    %v2589 = vld [vmem:[%s2436 + $0x4c0] sm:$0xff]
    %v2590 = vld [vmem:[%s2436 + $0x4c8] sm:$0xff]
    %v2591 = vld [vmem:[%s2436 + $0x4d0] sm:$0xff]
    %v2592 = vld [vmem:[%s2436 + $0x4d8] sm:$0xff]
    %v2593 = vld [vmem:[%s2436 + $0x4e0] sm:$0xff]
    %v2594 = vld [vmem:[%s2436 + $0x4e8] sm:$0xff]
    %v2595 = vld [vmem:[%s2436 + $0x4f0] sm:$0xff]
    %v2596 = vld [vmem:[%s2436 + $0x4f8] sm:$0xff]
    %v2597 = vld [vmem:[%s2436 + $0x500] sm:$0xff]
    %v2598 = vld [vmem:[%s2436 + $0x508] sm:$0xff]
    %v2599 = vld [vmem:[%s2436 + $0x510] sm:$0xff]
    %v2600 = vld [vmem:[%s2436 + $0x518] sm:$0xff]
    %v2601 = vld [vmem:[%s2436 + $0x520] sm:$0xff]
    %v2602 = vld [vmem:[%s2436 + $0x528] sm:$0xff]
    %v2603 = vld [vmem:[%s2436 + $0x530] sm:$0xff]
    %v2604 = vld [vmem:[%s2436 + $0x538] sm:$0xff]
    %v2605 = vld [vmem:[%s2436 + $0x540] sm:$0xff]
    %v2606 = vld [vmem:[%s2436 + $0x548] sm:$0xff]
    %v2607 = vld [vmem:[%s2436 + $0x550] sm:$0xff]
    %v2608 = vld [vmem:[%s2436 + $0x558] sm:$0xff]
    %v2609 = vld [vmem:[%s2436 + $0x560] sm:$0xff]
    %v2610 = vld [vmem:[%s2436 + $0x568] sm:$0xff]
    %v2611 = vld [vmem:[%s2436 + $0x570] sm:$0xff]
    %v2612 = vld [vmem:[%s2436 + $0x578] sm:$0xff]
    %v2613 = vld [vmem:[%s2436 + $0x580] sm:$0xff]
    %v2614 = vld [vmem:[%s2436 + $0x588] sm:$0xff]
    %v2615 = vld [vmem:[%s2436 + $0x590] sm:$0xff]
    %v2616 = vld [vmem:[%s2436 + $0x598] sm:$0xff]
    %v2617 = vld [vmem:[%s2436 + $0x5a0] sm:$0xff]
    %v2618 = vld [vmem:[%s2436 + $0x5a8] sm:$0xff]
    %v2619 = vld [vmem:[%s2436 + $0x5b0] sm:$0xff]
    %v2620 = vld [vmem:[%s2436 + $0x5b8] sm:$0xff]
    %v2621 = vld [vmem:[%s2436 + $0x5c0] sm:$0xff]
    %v2622 = vld [vmem:[%s2436 + $0x5c8] sm:$0xff]
    %v2623 = vld [vmem:[%s2436 + $0x5d0] sm:$0xff]
    %v2624 = vld [vmem:[%s2436 + $0x5d8] sm:$0xff]
    %v2625 = vld [vmem:[%s2436 + $0x5e0] sm:$0xff]
    %v2626 = vld [vmem:[%s2436 + $0x5e8] sm:$0xff]
    %v2627 = vld [vmem:[%s2436 + $0x5f0] sm:$0xff]
    %v2628 = vld [vmem:[%s2436 + $0x5f8] sm:$0xff]
    %s2629 = scalar_lea.vmem [#allocation10], 6
    %v2630 = vld [vmem:[%s2629] sm:$0x3f]
    %v2632 = vperm.slane %v2630, 0
    %v2633 = vperm.slane %v2630, 1
    %v2634 = vperm.slane %v2630, 2
    %v2635 = vperm.slane %v2630, 3
    %v2636 = vperm.slane %v2630, 4
    %v2637 = vperm.slane %v2630, 5
    %2644 = vmatpush.msra.mxu0 %v2527
    %2645 = vmatpush.msra.mxu0 %v2521
    %2646 = vmatpush.msra.mxu0 %v2515
    %2647 = vmatpush.msra.mxu0 %v2509
    %2648 = vmatpush.msra.mxu0 %v2503
    %2649 = vmatpush.msra.mxu0 %v2497
    %2650 = vmatpush.msra.mxu0 %v2491
    %2651 = vmatpush.msra.mxu0 %v2485
    %2652 = vmatpush.msra.mxu0 %v2479
    %2653 = vmatpush.msra.mxu0 %v2473
    %2654 = vmatpush.msra.mxu0 %v2467
    %2655 = vmatpush.msra.mxu0 %v2461
    %2656 = vmatpush.msra.mxu0 %v2455
    %2657 = vmatpush.msra.mxu0 %v2449
    %2658 = vmatpush.msra.mxu0 %v2443
    %2659 = vmatpush.msra.mxu0 %v2437
    %2660 = vmatmul.f32.gmra.mxu0 %v2432
    %v2661 = vpop.f32.mrf.mxu0
    %v2662 = vadd.f32 %v2632, %v2661
    %2663 = vmatmul.f32.gmra.mxu0 %v2434
    %v2664 = vpop.f32.mrf.mxu0
    %v2665 = vadd.f32 %v2632, %v2664
    %2666 = vdwg.mxu0
    %2667 = vmatpush.msra.mxu0 %v2623
    %2668 = vmatpush.msra.mxu0 %v2617
    %2669 = vmatpush.msra.mxu0 %v2611
    %2670 = vmatpush.msra.mxu0 %v2605
    %2671 = vmatpush.msra.mxu0 %v2599
    %2672 = vmatpush.msra.mxu0 %v2593
    %2673 = vmatpush.msra.mxu0 %v2587
    %2674 = vmatpush.msra.mxu0 %v2581
    %2675 = vmatpush.msra.mxu0 %v2575
    %2676 = vmatpush.msra.mxu0 %v2569
    %2677 = vmatpush.msra.mxu0 %v2563
    %2678 = vmatpush.msra.mxu0 %v2557
    %2679 = vmatpush.msra.mxu0 %v2551
    %2680 = vmatpush.msra.mxu0 %v2545
    %2681 = vmatpush.msra.mxu0 %v2539
    %2682 = vmatpush.msra.mxu0 %v2533
    %2683 = vmatmul.f32.gmra.mxu0 %v2433
    %v2684 = vpop.f32.mrf.mxu0
    %v2685 = vadd.f32 %v2662, %v2684
    %2686 = vmatmul.f32.gmra.mxu0 %v2435
    %v2687 = vpop.f32.mrf.mxu0
    %v2688 = vadd.f32 %v2665, %v2687
    %2689 = vdwg.mxu0
    %2690 = vmatpush.msra.mxu0 %v2528
    %2691 = vmatpush.msra.mxu0 %v2522
    %2692 = vmatpush.msra.mxu0 %v2516
    %2693 = vmatpush.msra.mxu0 %v2510
    %2694 = vmatpush.msra.mxu0 %v2504
    %2695 = vmatpush.msra.mxu0 %v2498
    %2696 = vmatpush.msra.mxu0 %v2492
    %2697 = vmatpush.msra.mxu0 %v2486
    %2698 = vmatpush.msra.mxu0 %v2480
    %2699 = vmatpush.msra.mxu0 %v2474
    %2700 = vmatpush.msra.mxu0 %v2468
    %2701 = vmatpush.msra.mxu0 %v2462
    %2702 = vmatpush.msra.mxu0 %v2456
    %2703 = vmatpush.msra.mxu0 %v2450
    %2704 = vmatpush.msra.mxu0 %v2444
    %2705 = vmatpush.msra.mxu0 %v2438
    %2706 = vmatmul.f32.gmra.mxu0 %v2432
    %v2707 = vpop.f32.mrf.mxu0
    %v2708 = vadd.f32 %v2633, %v2707
    %2709 = vmatmul.f32.gmra.mxu0 %v2434
    %v2710 = vpop.f32.mrf.mxu0
    %v2711 = vadd.f32 %v2633, %v2710
    %2712 = vdwg.mxu0
    %2713 = vmatpush.msra.mxu0 %v2624
    %2714 = vmatpush.msra.mxu0 %v2618
    %2715 = vmatpush.msra.mxu0 %v2612
    %2716 = vmatpush.msra.mxu0 %v2606
    %2717 = vmatpush.msra.mxu0 %v2600
    %2718 = vmatpush.msra.mxu0 %v2594
    %2719 = vmatpush.msra.mxu0 %v2588
    %2720 = vmatpush.msra.mxu0 %v2582
    %2721 = vmatpush.msra.mxu0 %v2576
    %2722 = vmatpush.msra.mxu0 %v2570
    %2723 = vmatpush.msra.mxu0 %v2564
    %2724 = vmatpush.msra.mxu0 %v2558
    %2725 = vmatpush.msra.mxu0 %v2552
    %2726 = vmatpush.msra.mxu0 %v2546
    %2727 = vmatpush.msra.mxu0 %v2540
    %2728 = vmatpush.msra.mxu0 %v2534
    %2729 = vmatmul.f32.gmra.mxu0 %v2433
    %v2730 = vpop.f32.mrf.mxu0
    %v2731 = vadd.f32 %v2708, %v2730
    %2732 = vmatmul.f32.gmra.mxu0 %v2435
    %v2733 = vpop.f32.mrf.mxu0
    %v2734 = vadd.f32 %v2711, %v2733
    %2735 = vdwg.mxu0
    %2736 = vmatpush.msra.mxu0 %v2529
    %2737 = vmatpush.msra.mxu0 %v2523
    %2738 = vmatpush.msra.mxu0 %v2517
    %2739 = vmatpush.msra.mxu0 %v2511
    %2740 = vmatpush.msra.mxu0 %v2505
    %2741 = vmatpush.msra.mxu0 %v2499
    %2742 = vmatpush.msra.mxu0 %v2493
    %2743 = vmatpush.msra.mxu0 %v2487
    %2744 = vmatpush.msra.mxu0 %v2481
    %2745 = vmatpush.msra.mxu0 %v2475
    %2746 = vmatpush.msra.mxu0 %v2469
    %2747 = vmatpush.msra.mxu0 %v2463
    %2748 = vmatpush.msra.mxu0 %v2457
    %2749 = vmatpush.msra.mxu0 %v2451
    %2750 = vmatpush.msra.mxu0 %v2445
    %2751 = vmatpush.msra.mxu0 %v2439
    %2752 = vmatmul.f32.gmra.mxu0 %v2432
    %v2753 = vpop.f32.mrf.mxu0
    %v2754 = vadd.f32 %v2634, %v2753
    %2755 = vmatmul.f32.gmra.mxu0 %v2434
    %v2756 = vpop.f32.mrf.mxu0
    %v2757 = vadd.f32 %v2634, %v2756
    %2758 = vdwg.mxu0
    %2759 = vmatpush.msra.mxu0 %v2625
    %2760 = vmatpush.msra.mxu0 %v2619
    %2761 = vmatpush.msra.mxu0 %v2613
    %2762 = vmatpush.msra.mxu0 %v2607
    %2763 = vmatpush.msra.mxu0 %v2601
    %2764 = vmatpush.msra.mxu0 %v2595
    %2765 = vmatpush.msra.mxu0 %v2589
    %2766 = vmatpush.msra.mxu0 %v2583
    %2767 = vmatpush.msra.mxu0 %v2577
    %2768 = vmatpush.msra.mxu0 %v2571
    %2769 = vmatpush.msra.mxu0 %v2565
    %2770 = vmatpush.msra.mxu0 %v2559
    %2771 = vmatpush.msra.mxu0 %v2553
    %2772 = vmatpush.msra.mxu0 %v2547
    %2773 = vmatpush.msra.mxu0 %v2541
    %2774 = vmatpush.msra.mxu0 %v2535
    %2775 = vmatmul.f32.gmra.mxu0 %v2433
    %v2776 = vpop.f32.mrf.mxu0
    %v2777 = vadd.f32 %v2754, %v2776
    %2778 = vmatmul.f32.gmra.mxu0 %v2435
    %v2779 = vpop.f32.mrf.mxu0
    %v2780 = vadd.f32 %v2757, %v2779
    %2781 = vdwg.mxu0
    %2782 = vmatpush.msra.mxu0 %v2530
    %2783 = vmatpush.msra.mxu0 %v2524
    %2784 = vmatpush.msra.mxu0 %v2518
    %2785 = vmatpush.msra.mxu0 %v2512
    %2786 = vmatpush.msra.mxu0 %v2506
    %2787 = vmatpush.msra.mxu0 %v2500
    %2788 = vmatpush.msra.mxu0 %v2494
    %2789 = vmatpush.msra.mxu0 %v2488
    %2790 = vmatpush.msra.mxu0 %v2482
    %2791 = vmatpush.msra.mxu0 %v2476
    %2792 = vmatpush.msra.mxu0 %v2470
    %2793 = vmatpush.msra.mxu0 %v2464
    %2794 = vmatpush.msra.mxu0 %v2458
    %2795 = vmatpush.msra.mxu0 %v2452
    %2796 = vmatpush.msra.mxu0 %v2446
    %2797 = vmatpush.msra.mxu0 %v2440
    %2798 = vmatmul.f32.gmra.mxu0 %v2432
    %v2799 = vpop.f32.mrf.mxu0
    %v2800 = vadd.f32 %v2635, %v2799
    %2801 = vmatmul.f32.gmra.mxu0 %v2434
    %v2802 = vpop.f32.mrf.mxu0
    %v2803 = vadd.f32 %v2635, %v2802
    %2804 = vdwg.mxu0
    %2805 = vmatpush.msra.mxu0 %v2626
    %2806 = vmatpush.msra.mxu0 %v2620
    %2807 = vmatpush.msra.mxu0 %v2614
    %2808 = vmatpush.msra.mxu0 %v2608
    %2809 = vmatpush.msra.mxu0 %v2602
    %2810 = vmatpush.msra.mxu0 %v2596
    %2811 = vmatpush.msra.mxu0 %v2590
    %2812 = vmatpush.msra.mxu0 %v2584
    %2813 = vmatpush.msra.mxu0 %v2578
    %2814 = vmatpush.msra.mxu0 %v2572
    %2815 = vmatpush.msra.mxu0 %v2566
    %2816 = vmatpush.msra.mxu0 %v2560
    %2817 = vmatpush.msra.mxu0 %v2554
    %2818 = vmatpush.msra.mxu0 %v2548
    %2819 = vmatpush.msra.mxu0 %v2542
    %2820 = vmatpush.msra.mxu0 %v2536
    %2821 = vmatmul.f32.gmra.mxu0 %v2433
    %v2822 = vpop.f32.mrf.mxu0
    %v2823 = vadd.f32 %v2800, %v2822
    %2824 = vmatmul.f32.gmra.mxu0 %v2435
    %v2825 = vpop.f32.mrf.mxu0
    %v2826 = vadd.f32 %v2803, %v2825
    %2827 = vdwg.mxu0
    %2828 = vmatpush.msra.mxu0 %v2531
    %2829 = vmatpush.msra.mxu0 %v2525
    %2830 = vmatpush.msra.mxu0 %v2519
    %2831 = vmatpush.msra.mxu0 %v2513
    %2832 = vmatpush.msra.mxu0 %v2507
    %2833 = vmatpush.msra.mxu0 %v2501
    %2834 = vmatpush.msra.mxu0 %v2495
    %2835 = vmatpush.msra.mxu0 %v2489
    %2836 = vmatpush.msra.mxu0 %v2483
    %2837 = vmatpush.msra.mxu0 %v2477
    %2838 = vmatpush.msra.mxu0 %v2471
    %2839 = vmatpush.msra.mxu0 %v2465
    %2840 = vmatpush.msra.mxu0 %v2459
    %2841 = vmatpush.msra.mxu0 %v2453
    %2842 = vmatpush.msra.mxu0 %v2447
    %2843 = vmatpush.msra.mxu0 %v2441
    %2844 = vmatmul.f32.gmra.mxu0 %v2432
    %v2845 = vpop.f32.mrf.mxu0
    %v2846 = vadd.f32 %v2636, %v2845
    %2847 = vmatmul.f32.gmra.mxu0 %v2434
    %v2848 = vpop.f32.mrf.mxu0
    %v2849 = vadd.f32 %v2636, %v2848
    %2850 = vdwg.mxu0
    %2851 = vmatpush.msra.mxu0 %v2627
    %2852 = vmatpush.msra.mxu0 %v2621
    %2853 = vmatpush.msra.mxu0 %v2615
    %2854 = vmatpush.msra.mxu0 %v2609
    %2855 = vmatpush.msra.mxu0 %v2603
    %2856 = vmatpush.msra.mxu0 %v2597
    %2857 = vmatpush.msra.mxu0 %v2591
    %2858 = vmatpush.msra.mxu0 %v2585
    %2859 = vmatpush.msra.mxu0 %v2579
    %2860 = vmatpush.msra.mxu0 %v2573
    %2861 = vmatpush.msra.mxu0 %v2567
    %2862 = vmatpush.msra.mxu0 %v2561
    %2863 = vmatpush.msra.mxu0 %v2555
    %2864 = vmatpush.msra.mxu0 %v2549
    %2865 = vmatpush.msra.mxu0 %v2543
    %2866 = vmatpush.msra.mxu0 %v2537
    %2867 = vmatmul.f32.gmra.mxu0 %v2433
    %v2868 = vpop.f32.mrf.mxu0
    %v2869 = vadd.f32 %v2846, %v2868
    %2870 = vmatmul.f32.gmra.mxu0 %v2435
    %v2871 = vpop.f32.mrf.mxu0
    %v2872 = vadd.f32 %v2849, %v2871
    %2873 = vdwg.mxu0
    %2874 = vmatpush.msra.mxu0 %v2532
    %2875 = vmatpush.msra.mxu0 %v2526
    %2876 = vmatpush.msra.mxu0 %v2520
    %2877 = vmatpush.msra.mxu0 %v2514
    %2878 = vmatpush.msra.mxu0 %v2508
    %2879 = vmatpush.msra.mxu0 %v2502
    %2880 = vmatpush.msra.mxu0 %v2496
    %2881 = vmatpush.msra.mxu0 %v2490
    %2882 = vmatpush.msra.mxu0 %v2484
    %2883 = vmatpush.msra.mxu0 %v2478
    %2884 = vmatpush.msra.mxu0 %v2472
    %2885 = vmatpush.msra.mxu0 %v2466
    %2886 = vmatpush.msra.mxu0 %v2460
    %2887 = vmatpush.msra.mxu0 %v2454
    %2888 = vmatpush.msra.mxu0 %v2448
    %2889 = vmatpush.msra.mxu0 %v2442
    %2890 = vmatmul.f32.gmra.mxu0 %v2432
    %v2891 = vpop.f32.mrf.mxu0
    %v2892 = vadd.f32 %v2637, %v2891
    %2893 = vmatmul.f32.gmra.mxu0 %v2434
    %v2894 = vpop.f32.mrf.mxu0
    %v2895 = vadd.f32 %v2637, %v2894
    %2896 = vdwg.mxu0
    %2897 = vmatpush.msra.mxu0 %v2628
    %2898 = vmatpush.msra.mxu0 %v2622
    %2899 = vmatpush.msra.mxu0 %v2616
    %2900 = vmatpush.msra.mxu0 %v2610
    %2901 = vmatpush.msra.mxu0 %v2604
    %2902 = vmatpush.msra.mxu0 %v2598
    %2903 = vmatpush.msra.mxu0 %v2592
    %2904 = vmatpush.msra.mxu0 %v2586
    %2905 = vmatpush.msra.mxu0 %v2580
    %2906 = vmatpush.msra.mxu0 %v2574
    %2907 = vmatpush.msra.mxu0 %v2568
    %2908 = vmatpush.msra.mxu0 %v2562
    %2909 = vmatpush.msra.mxu0 %v2556
    %2910 = vmatpush.msra.mxu0 %v2550
    %2911 = vmatpush.msra.mxu0 %v2544
    %2912 = vmatpush.msra.mxu0 %v2538
    %2913 = vmatmul.f32.gmra.mxu0 %v2433
    %v2914 = vpop.f32.mrf.mxu0
    %v2915 = vadd.f32 %v2892, %v2914
    %2916 = vmatmul.f32.gmra.mxu0 %v2435
    %v2917 = vpop.f32.mrf.mxu0
    %v2918 = vadd.f32 %v2895, %v2917
    %2919 = vdwg.mxu0
    %2920 = vmatpush.xpose.msra.mxu0 0.0
    %2921 = vmatpush.xpose.msra.mxu0 0.0
    %2922 = vmatpush.xpose.msra.mxu0 0.0
    %2923 = vmatpush.xpose.msra.mxu0 0.0
    %2924 = vmatpush.xpose.msra.mxu0 0.0
    %2925 = vmatpush.xpose.msra.mxu0 0.0
    %2926 = vmatpush.xpose.msra.mxu0 0.0
    %2927 = vmatpush.xpose.msra.mxu0 0.0
    %2928 = vmatpush.xpose.msra.mxu0 0.0
    %2929 = vmatpush.xpose.msra.mxu0 0.0
    %2930 = vmatpush.xpose.msra.mxu0 0.0
    %2931 = vmatpush.xpose.msra.mxu0 0.0
    %2932 = vmatpush.xpose.msra.mxu0 0.0
    %2933 = vmatpush.xpose.msra.mxu0 0.0
    %2934 = vmatpush.xpose.msra.mxu0 0.0
    %2935 = vmatpush.xpose.msra.mxu0 %v2777
    %2936 = vmatmul.f32.gmra.mxu0 %v2685
    %v2937 = vpop.f32.mrf.mxu0
    %v2938 = vadd.f32 0.0, %v2937
    %2939 = vdwg.mxu0
    %v2940 = vmul.f32 %v2938, 0.088388346
    %v2941 = vsel %vm934, %v2940, -inf
    %2942 = vmax.xlane.f32.xlu0 %v2941
    %v2943 = vpop.xlane.xlu0 %2942
    %v2944 = vsub.f32 %v2940, %v2943
    %v2945 = vmul.f32 %v2944, 1.442695
    %v2946 = vpow.pop %v2945
    %v2947 = vsel %vm934, %v2946, 0.0
    %2948 = vadd.xlane.f32.xlu0 %v2947
    %v2949 = vpop.xlane.xlu0 %2948
    %v2950 = vrcp.pop %v2949
    %v2951 = vmul.f32 %v2946, %v2950
    %v2953 = vsel %vm934, %v2951, 0
    %2955 = vmatpush.msra.mxu0 0.0
    %2956 = vmatpush.msra.mxu0 0.0
    %2957 = vmatpush.msra.mxu0 0.0
    %2958 = vmatpush.msra.mxu0 0.0
    %2959 = vmatpush.msra.mxu0 0.0
    %2960 = vmatpush.msra.mxu0 0.0
    %2961 = vmatpush.msra.mxu0 0.0
    %2962 = vmatpush.msra.mxu0 0.0
    %2963 = vmatpush.msra.mxu0 0.0
    %2964 = vmatpush.msra.mxu0 0.0
    %2965 = vmatpush.msra.mxu0 0.0
    %2966 = vmatpush.msra.mxu0 0.0
    %2967 = vmatpush.msra.mxu0 0.0
    %2968 = vmatpush.msra.mxu0 0.0
    %2969 = vmatpush.msra.mxu0 0.0
    %2970 = vmatpush.msra.mxu0 %v2869
    %2971 = vmatmul.f32.gmra.mxu0 %v2953
    %v2972 = vpop.f32.mrf.mxu0
    %v2973 = vadd.f32 0.0, %v2972
    %2974 = vdwg.mxu0
    %2975 = vmatpush.xpose.msra.mxu0 0.0
    %2976 = vmatpush.xpose.msra.mxu0 0.0
    %2977 = vmatpush.xpose.msra.mxu0 0.0
    %2978 = vmatpush.xpose.msra.mxu0 0.0
    %2979 = vmatpush.xpose.msra.mxu0 0.0
    %2980 = vmatpush.xpose.msra.mxu0 0.0
    %2981 = vmatpush.xpose.msra.mxu0 0.0
    %2982 = vmatpush.xpose.msra.mxu0 0.0
    %2983 = vmatpush.xpose.msra.mxu0 0.0
    %2984 = vmatpush.xpose.msra.mxu0 0.0
    %2985 = vmatpush.xpose.msra.mxu0 0.0
    %2986 = vmatpush.xpose.msra.mxu0 0.0
    %2987 = vmatpush.xpose.msra.mxu0 0.0
    %2988 = vmatpush.xpose.msra.mxu0 0.0
    %2989 = vmatpush.xpose.msra.mxu0 0.0
    %2990 = vmatpush.xpose.msra.mxu0 %v2823
    %2991 = vmatmul.f32.gmra.mxu0 %v2731
    %v2992 = vpop.f32.mrf.mxu0
    %v2993 = vadd.f32 0.0, %v2992
    %2994 = vdwg.mxu0
    %v2995 = vmul.f32 %v2993, 0.088388346
    %v2996 = vsel %vm934, %v2995, -inf
    %2997 = vmax.xlane.f32.xlu0 %v2996
    %v2998 = vpop.xlane.xlu0 %2997
    %v2999 = vsub.f32 %v2995, %v2998
    %v3000 = vmul.f32 %v2999, 1.442695
    %v3001 = vpow.pop %v3000
    %v3002 = vsel %vm934, %v3001, 0.0
    %3003 = vadd.xlane.f32.xlu0 %v3002
    %v3004 = vpop.xlane.xlu0 %3003
    %v3005 = vrcp.pop %v3004
    %v3006 = vmul.f32 %v3001, %v3005
    %v3008 = vsel %vm934, %v3006, 0
    %3010 = vmatpush.msra.mxu0 0.0
    %3011 = vmatpush.msra.mxu0 0.0
    %3012 = vmatpush.msra.mxu0 0.0
    %3013 = vmatpush.msra.mxu0 0.0
    %3014 = vmatpush.msra.mxu0 0.0
    %3015 = vmatpush.msra.mxu0 0.0
    %3016 = vmatpush.msra.mxu0 0.0
    %3017 = vmatpush.msra.mxu0 0.0
    %3018 = vmatpush.msra.mxu0 0.0
    %3019 = vmatpush.msra.mxu0 0.0
    %3020 = vmatpush.msra.mxu0 0.0
    %3021 = vmatpush.msra.mxu0 0.0
    %3022 = vmatpush.msra.mxu0 0.0
    %3023 = vmatpush.msra.mxu0 0.0
    %3024 = vmatpush.msra.mxu0 0.0
    %3025 = vmatpush.msra.mxu0 %v2915
    %3026 = vmatmul.f32.gmra.mxu0 %v3008
    %v3027 = vpop.f32.mrf.mxu0
    %v3028 = vadd.f32 0.0, %v3027
    %3029 = vdwg.mxu0
    %3030 = vmatpush.xpose.msra.mxu0 0.0
    %3031 = vmatpush.xpose.msra.mxu0 0.0
    %3032 = vmatpush.xpose.msra.mxu0 0.0
    %3033 = vmatpush.xpose.msra.mxu0 0.0
    %3034 = vmatpush.xpose.msra.mxu0 0.0
    %3035 = vmatpush.xpose.msra.mxu0 0.0
    %3036 = vmatpush.xpose.msra.mxu0 0.0
    %3037 = vmatpush.xpose.msra.mxu0 0.0
    %3038 = vmatpush.xpose.msra.mxu0 0.0
    %3039 = vmatpush.xpose.msra.mxu0 0.0
    %3040 = vmatpush.xpose.msra.mxu0 0.0
    %3041 = vmatpush.xpose.msra.mxu0 0.0
    %3042 = vmatpush.xpose.msra.mxu0 0.0
    %3043 = vmatpush.xpose.msra.mxu0 0.0
    %3044 = vmatpush.xpose.msra.mxu0 0.0
    %3045 = vmatpush.xpose.msra.mxu0 %v2780
    %3046 = vmatmul.f32.gmra.mxu0 %v2688
    %v3047 = vpop.f32.mrf.mxu0
    %v3048 = vadd.f32 0.0, %v3047
    %3049 = vdwg.mxu0
    %v3050 = vmul.f32 %v3048, 0.088388346
    %v3051 = vsel %vm934, %v3050, -inf
    %3052 = vmax.xlane.f32.xlu0 %v3051
    %v3053 = vpop.xlane.xlu0 %3052
    %v3054 = vsub.f32 %v3050, %v3053
    %v3055 = vmul.f32 %v3054, 1.442695
    %v3056 = vpow.pop %v3055
    %v3057 = vsel %vm934, %v3056, 0.0
    %3058 = vadd.xlane.f32.xlu0 %v3057
    %v3059 = vpop.xlane.xlu0 %3058
    %v3060 = vrcp.pop %v3059
    %v3061 = vmul.f32 %v3056, %v3060
    %v3063 = vsel %vm934, %v3061, 0
    %3065 = vmatpush.msra.mxu0 0.0
    %3066 = vmatpush.msra.mxu0 0.0
    %3067 = vmatpush.msra.mxu0 0.0
    %3068 = vmatpush.msra.mxu0 0.0
    %3069 = vmatpush.msra.mxu0 0.0
    %3070 = vmatpush.msra.mxu0 0.0
    %3071 = vmatpush.msra.mxu0 0.0
    %3072 = vmatpush.msra.mxu0 0.0
    %3073 = vmatpush.msra.mxu0 0.0
    %3074 = vmatpush.msra.mxu0 0.0
    %3075 = vmatpush.msra.mxu0 0.0
    %3076 = vmatpush.msra.mxu0 0.0
    %3077 = vmatpush.msra.mxu0 0.0
    %3078 = vmatpush.msra.mxu0 0.0
    %3079 = vmatpush.msra.mxu0 0.0
    %3080 = vmatpush.msra.mxu0 %v2872
    %3081 = vmatmul.f32.gmra.mxu0 %v3063
    %v3082 = vpop.f32.mrf.mxu0
    %v3083 = vadd.f32 0.0, %v3082
    %3084 = vdwg.mxu0
    %3085 = vmatpush.xpose.msra.mxu0 0.0
    %3086 = vmatpush.xpose.msra.mxu0 0.0
    %3087 = vmatpush.xpose.msra.mxu0 0.0
    %3088 = vmatpush.xpose.msra.mxu0 0.0
    %3089 = vmatpush.xpose.msra.mxu0 0.0
    %3090 = vmatpush.xpose.msra.mxu0 0.0
    %3091 = vmatpush.xpose.msra.mxu0 0.0
    %3092 = vmatpush.xpose.msra.mxu0 0.0
    %3093 = vmatpush.xpose.msra.mxu0 0.0
    %3094 = vmatpush.xpose.msra.mxu0 0.0
    %3095 = vmatpush.xpose.msra.mxu0 0.0
    %3096 = vmatpush.xpose.msra.mxu0 0.0
    %3097 = vmatpush.xpose.msra.mxu0 0.0
    %3098 = vmatpush.xpose.msra.mxu0 0.0
    %3099 = vmatpush.xpose.msra.mxu0 0.0
    %3100 = vmatpush.xpose.msra.mxu0 %v2826
    %3101 = vmatmul.f32.gmra.mxu0 %v2734
    %v3102 = vpop.f32.mrf.mxu0
    %v3103 = vadd.f32 0.0, %v3102
    %3104 = vdwg.mxu0
    %v3105 = vmul.f32 %v3103, 0.088388346
    %v3106 = vsel %vm934, %v3105, -inf
    %3107 = vmax.xlane.f32.xlu0 %v3106
    %v3108 = vpop.xlane.xlu0 %3107
    %v3109 = vsub.f32 %v3105, %v3108
    %v3110 = vmul.f32 %v3109, 1.442695
    %v3111 = vpow.pop %v3110
    %v3112 = vsel %vm934, %v3111, 0.0
    %3113 = vadd.xlane.f32.xlu0 %v3112
    %v3114 = vpop.xlane.xlu0 %3113
    %v3115 = vrcp.pop %v3114
    %v3116 = vmul.f32 %v3111, %v3115
    %v3118 = vsel %vm934, %v3116, 0
    %3120 = vmatpush.msra.mxu0 0.0
    %3121 = vmatpush.msra.mxu0 0.0
    %3122 = vmatpush.msra.mxu0 0.0
    %3123 = vmatpush.msra.mxu0 0.0
    %3124 = vmatpush.msra.mxu0 0.0
    %3125 = vmatpush.msra.mxu0 0.0
    %3126 = vmatpush.msra.mxu0 0.0
    %3127 = vmatpush.msra.mxu0 0.0
    %3128 = vmatpush.msra.mxu0 0.0
    %3129 = vmatpush.msra.mxu0 0.0
    %3130 = vmatpush.msra.mxu0 0.0
    %3131 = vmatpush.msra.mxu0 0.0
    %3132 = vmatpush.msra.mxu0 0.0
    %3133 = vmatpush.msra.mxu0 0.0
    %3134 = vmatpush.msra.mxu0 0.0
    %3135 = vmatpush.msra.mxu0 %v2918
    %3136 = vmatmul.f32.gmra.mxu0 %v3118
    %v3137 = vpop.f32.mrf.mxu0
    %v3138 = vadd.f32 0.0, %v3137
    %3139 = vdwg.mxu0
    %s3140 = scalar_lea.vmem [#allocation11], 512
    %v3141 = vld [vmem:[%s3140] sm:$0xff]
    %v3142 = vld [vmem:[%s3140 + $0x8] sm:$0xff]
    %v3143 = vld [vmem:[%s3140 + $0x10] sm:$0xff]
    %v3144 = vld [vmem:[%s3140 + $0x18] sm:$0xff]
    %v3145 = vld [vmem:[%s3140 + $0x20] sm:$0xff]
    %v3146 = vld [vmem:[%s3140 + $0x28] sm:$0xff]
    %v3147 = vld [vmem:[%s3140 + $0x30] sm:$0xff]
    %v3148 = vld [vmem:[%s3140 + $0x38] sm:$0xff]
    %v3149 = vld [vmem:[%s3140 + $0x40] sm:$0xff]
    %v3150 = vld [vmem:[%s3140 + $0x48] sm:$0xff]
    %v3151 = vld [vmem:[%s3140 + $0x50] sm:$0xff]
    %v3152 = vld [vmem:[%s3140 + $0x58] sm:$0xff]
    %v3153 = vld [vmem:[%s3140 + $0x60] sm:$0xff]
    %v3154 = vld [vmem:[%s3140 + $0x68] sm:$0xff]
    %v3155 = vld [vmem:[%s3140 + $0x70] sm:$0xff]
    %v3156 = vld [vmem:[%s3140 + $0x78] sm:$0xff]
    %v3157 = vld [vmem:[%s3140 + $0x80] sm:$0xff]
    %v3158 = vld [vmem:[%s3140 + $0x88] sm:$0xff]
    %v3159 = vld [vmem:[%s3140 + $0x90] sm:$0xff]
    %v3160 = vld [vmem:[%s3140 + $0x98] sm:$0xff]
    %v3161 = vld [vmem:[%s3140 + $0xa0] sm:$0xff]
    %v3162 = vld [vmem:[%s3140 + $0xa8] sm:$0xff]
    %v3163 = vld [vmem:[%s3140 + $0xb0] sm:$0xff]
    %v3164 = vld [vmem:[%s3140 + $0xb8] sm:$0xff]
    %v3165 = vld [vmem:[%s3140 + $0xc0] sm:$0xff]
    %v3166 = vld [vmem:[%s3140 + $0xc8] sm:$0xff]
    %v3167 = vld [vmem:[%s3140 + $0xd0] sm:$0xff]
    %v3168 = vld [vmem:[%s3140 + $0xd8] sm:$0xff]
    %v3169 = vld [vmem:[%s3140 + $0xe0] sm:$0xff]
    %v3170 = vld [vmem:[%s3140 + $0xe8] sm:$0xff]
    %v3171 = vld [vmem:[%s3140 + $0xf0] sm:$0xff]
    %v3172 = vld [vmem:[%s3140 + $0xf8] sm:$0xff]
    %v3173 = vld [vmem:[%s3140 + $0x100] sm:$0xff]
    %v3174 = vld [vmem:[%s3140 + $0x108] sm:$0xff]
    %v3175 = vld [vmem:[%s3140 + $0x110] sm:$0xff]
    %v3176 = vld [vmem:[%s3140 + $0x118] sm:$0xff]
    %v3177 = vld [vmem:[%s3140 + $0x120] sm:$0xff]
    %v3178 = vld [vmem:[%s3140 + $0x128] sm:$0xff]
    %v3179 = vld [vmem:[%s3140 + $0x130] sm:$0xff]
    %v3180 = vld [vmem:[%s3140 + $0x138] sm:$0xff]
    %v3181 = vld [vmem:[%s3140 + $0x140] sm:$0xff]
    %v3182 = vld [vmem:[%s3140 + $0x148] sm:$0xff]
    %v3183 = vld [vmem:[%s3140 + $0x150] sm:$0xff]
    %v3184 = vld [vmem:[%s3140 + $0x158] sm:$0xff]
    %v3185 = vld [vmem:[%s3140 + $0x160] sm:$0xff]
    %v3186 = vld [vmem:[%s3140 + $0x168] sm:$0xff]
    %v3187 = vld [vmem:[%s3140 + $0x170] sm:$0xff]
    %v3188 = vld [vmem:[%s3140 + $0x178] sm:$0xff]
    %v3189 = vld [vmem:[%s3140 + $0x180] sm:$0xff]
    %v3190 = vld [vmem:[%s3140 + $0x188] sm:$0xff]
    %v3191 = vld [vmem:[%s3140 + $0x190] sm:$0xff]
    %v3192 = vld [vmem:[%s3140 + $0x198] sm:$0xff]
    %v3193 = vld [vmem:[%s3140 + $0x1a0] sm:$0xff]
    %v3194 = vld [vmem:[%s3140 + $0x1a8] sm:$0xff]
    %v3195 = vld [vmem:[%s3140 + $0x1b0] sm:$0xff]
    %v3196 = vld [vmem:[%s3140 + $0x1b8] sm:$0xff]
    %v3197 = vld [vmem:[%s3140 + $0x1c0] sm:$0xff]
    %v3198 = vld [vmem:[%s3140 + $0x1c8] sm:$0xff]
    %v3199 = vld [vmem:[%s3140 + $0x1d0] sm:$0xff]
    %v3200 = vld [vmem:[%s3140 + $0x1d8] sm:$0xff]
    %v3201 = vld [vmem:[%s3140 + $0x1e0] sm:$0xff]
    %v3202 = vld [vmem:[%s3140 + $0x1e8] sm:$0xff]
    %v3203 = vld [vmem:[%s3140 + $0x1f0] sm:$0xff]
    %v3204 = vld [vmem:[%s3140 + $0x1f8] sm:$0xff]
    %s3205 = scalar_lea.vmem [#allocation13], 2
    %v3206 = vld [vmem:[%s3205] sm:$0x3]
    %v3208 = vperm.slane %v3206, 0
    %v3209 = vperm.slane %v3206, 1
    %3212 = vmatpush.msra.mxu0 %v3171
    %3213 = vmatpush.msra.mxu0 %v3169
    %3214 = vmatpush.msra.mxu0 %v3167
    %3215 = vmatpush.msra.mxu0 %v3165
    %3216 = vmatpush.msra.mxu0 %v3163
    %3217 = vmatpush.msra.mxu0 %v3161
    %3218 = vmatpush.msra.mxu0 %v3159
    %3219 = vmatpush.msra.mxu0 %v3157
    %3220 = vmatpush.msra.mxu0 %v3155
    %3221 = vmatpush.msra.mxu0 %v3153
    %3222 = vmatpush.msra.mxu0 %v3151
    %3223 = vmatpush.msra.mxu0 %v3149
    %3224 = vmatpush.msra.mxu0 %v3147
    %3225 = vmatpush.msra.mxu0 %v3145
    %3226 = vmatpush.msra.mxu0 %v3143
    %3227 = vmatpush.msra.mxu0 %v3141
    %3228 = vmatmul.f32.gmra.mxu0 %v2973
    %v3229 = vpop.f32.mrf.mxu0
    %v3230 = vadd.f32 %v3208, %v3229
    %3231 = vmatmul.f32.gmra.mxu0 %v3083
    %v3232 = vpop.f32.mrf.mxu0
    %v3233 = vadd.f32 %v3208, %v3232
    %3234 = vdwg.mxu0
    %3235 = vmatpush.msra.mxu0 %v3203
    %3236 = vmatpush.msra.mxu0 %v3201
    %3237 = vmatpush.msra.mxu0 %v3199
    %3238 = vmatpush.msra.mxu0 %v3197
    %3239 = vmatpush.msra.mxu0 %v3195
    %3240 = vmatpush.msra.mxu0 %v3193
    %3241 = vmatpush.msra.mxu0 %v3191
    %3242 = vmatpush.msra.mxu0 %v3189
    %3243 = vmatpush.msra.mxu0 %v3187
    %3244 = vmatpush.msra.mxu0 %v3185
    %3245 = vmatpush.msra.mxu0 %v3183
    %3246 = vmatpush.msra.mxu0 %v3181
    %3247 = vmatpush.msra.mxu0 %v3179
    %3248 = vmatpush.msra.mxu0 %v3177
    %3249 = vmatpush.msra.mxu0 %v3175
    %3250 = vmatpush.msra.mxu0 %v3173
    %3251 = vmatmul.f32.gmra.mxu0 %v3028
    %v3252 = vpop.f32.mrf.mxu0
    %v3253 = vadd.f32 %v3230, %v3252
    %3254 = vmatmul.f32.gmra.mxu0 %v3138
    %v3255 = vpop.f32.mrf.mxu0
    %v3256 = vadd.f32 %v3233, %v3255
    %3257 = vdwg.mxu0
    %3258 = vmatpush.msra.mxu0 %v3172
    %3259 = vmatpush.msra.mxu0 %v3170
    %3260 = vmatpush.msra.mxu0 %v3168
    %3261 = vmatpush.msra.mxu0 %v3166
    %3262 = vmatpush.msra.mxu0 %v3164
    %3263 = vmatpush.msra.mxu0 %v3162
    %3264 = vmatpush.msra.mxu0 %v3160
    %3265 = vmatpush.msra.mxu0 %v3158
    %3266 = vmatpush.msra.mxu0 %v3156
    %3267 = vmatpush.msra.mxu0 %v3154
    %3268 = vmatpush.msra.mxu0 %v3152
    %3269 = vmatpush.msra.mxu0 %v3150
    %3270 = vmatpush.msra.mxu0 %v3148
    %3271 = vmatpush.msra.mxu0 %v3146
    %3272 = vmatpush.msra.mxu0 %v3144
    %3273 = vmatpush.msra.mxu0 %v3142
    %3274 = vmatmul.f32.gmra.mxu0 %v2973
    %v3275 = vpop.f32.mrf.mxu0
    %v3276 = vadd.f32 %v3209, %v3275
    %3277 = vmatmul.f32.gmra.mxu0 %v3083
    %v3278 = vpop.f32.mrf.mxu0
    %v3279 = vadd.f32 %v3209, %v3278
    %3280 = vdwg.mxu0
    %3281 = vmatpush.msra.mxu0 %v3204
    %3282 = vmatpush.msra.mxu0 %v3202
    %3283 = vmatpush.msra.mxu0 %v3200
    %3284 = vmatpush.msra.mxu0 %v3198
    %3285 = vmatpush.msra.mxu0 %v3196
    %3286 = vmatpush.msra.mxu0 %v3194
    %3287 = vmatpush.msra.mxu0 %v3192
    %3288 = vmatpush.msra.mxu0 %v3190
    %3289 = vmatpush.msra.mxu0 %v3188
    %3290 = vmatpush.msra.mxu0 %v3186
    %3291 = vmatpush.msra.mxu0 %v3184
    %3292 = vmatpush.msra.mxu0 %v3182
    %3293 = vmatpush.msra.mxu0 %v3180
    %3294 = vmatpush.msra.mxu0 %v3178
    %3295 = vmatpush.msra.mxu0 %v3176
    %3296 = vmatpush.msra.mxu0 %v3174
    %3297 = vmatmul.f32.gmra.mxu0 %v3028
    %v3298 = vpop.f32.mrf.mxu0
    %v3299 = vadd.f32 %v3276, %v3298
    %3300 = vmatmul.f32.gmra.mxu0 %v3138
    %v3301 = vpop.f32.mrf.mxu0
    %v3302 = vadd.f32 %v3279, %v3301
    %3303 = vdwg.mxu0
    %v3304 = vadd.f32 %v3253, %v2432
    %v3305 = vadd.f32 %v3299, %v2433
    %v3306 = vadd.f32 %v3256, %v2434
    %v3307 = vadd.f32 %v3302, %v2435
    %s3308 = scalar_lea.vmem [#allocation14], 2
    %v3309 = vld [vmem:[%s3308] sm:$0x3]
    %s3310 = scalar_lea.vmem [#allocation16], 2
    %v3311 = vld [vmem:[%s3310] sm:$0x3]
    %v3312 = vadd.f32 %v3304, %v3305
    %3313 = vadd.xlane.f32.xlu0 %v3312
    %v3314 = vpop.xlane.xlu0 %3313
    %v3315 = vadd.f32 %v3306, %v3307
    %3316 = vadd.xlane.f32.xlu0 %v3315
    %v3317 = vpop.xlane.xlu0 %3316
    %v3318 = vmul.f32 %v3314, %v368
    %v3319 = vmul.f32 %v3317, %v368
    %v3320 = vsub.f32 %v3304, %v3318
    %v3321 = vsub.f32 %v3305, %v3318
    %v3322 = vsub.f32 %v3306, %v3319
    %v3323 = vsub.f32 %v3307, %v3319
    %v3324 = vmul.f32 %v3320, %v3320
    %v3325 = vmul.f32 %v3321, %v3321
    %v3326 = vmul.f32 %v3322, %v3322
    %v3327 = vmul.f32 %v3323, %v3323
    %v3328 = vadd.f32 %v3324, %v3325
    %3329 = vadd.xlane.f32.xlu0 %v3328
    %v3330 = vpop.xlane.xlu0 %3329
    %v3331 = vadd.f32 %v3326, %v3327
    %3332 = vadd.xlane.f32.xlu0 %v3331
    %v3333 = vpop.xlane.xlu0 %3332
    %v3334 = vmul.f32 %v3330, %v368
    %v3335 = vmul.f32 %v3333, %v368
    %v3336 = vadd.f32 %v3334, 1e-12
    %v3337 = vadd.f32 %v3335, 1e-12
    %v3338 = vrsqrt.pop %v3336
    %v3339 = vmul.f32 %v3338, %v3336
    %v3340 = vmul.f32 %v3339, %v3338
    %v3341 = vmul.f32 0.5, %v3340
    %v3342 = vsub.f32 1.5, %v3341
    %v3343 = vmul.f32 %v3338, %v3342
    %vm3344 = vweird.f32 %v3336
    %vm3345 = vweird.f32 %v3338
    %vm3346 = vmor %vm3344, %vm3345
    %v3347 = vsel %vm3346, %v3338, %v3343
    %v3348 = vrsqrt.pop %v3337
    %v3349 = vmul.f32 %v3348, %v3337
    %v3350 = vmul.f32 %v3349, %v3348
    %v3351 = vmul.f32 0.5, %v3350
    %v3352 = vsub.f32 1.5, %v3351
    %v3353 = vmul.f32 %v3348, %v3352
    %vm3354 = vweird.f32 %v3337
    %vm3355 = vweird.f32 %v3348
    %vm3356 = vmor %vm3354, %vm3355
    %v3357 = vsel %vm3356, %v3348, %v3353
    %v3358 = vmul.f32 %v3320, %v3347
    %v3359 = vmul.f32 %v3321, %v3347
    %v3360 = vmul.f32 %v3322, %v3357
    %v3361 = vmul.f32 %v3323, %v3357
    %v3363 = vperm.slane %v3309, 0
    %v3364 = vperm.slane %v3309, 1
    %v3367 = vmul.f32 %v3358, %v3363
    %v3368 = vmul.f32 %v3359, %v3364
    %v3369 = vmul.f32 %v3360, %v3363
    %v3370 = vmul.f32 %v3361, %v3364
    %v3372 = vperm.slane %v3311, 0
    %v3373 = vperm.slane %v3311, 1
    %v3376 = vadd.f32 %v3367, %v3372
    %v3377 = vadd.f32 %v3368, %v3373
    %v3378 = vadd.f32 %v3369, %v3372
    %v3379 = vadd.f32 %v3370, %v3373
    %s3380 = scalar_lea.vmem [#allocation17], 1024
    %v3381 = vld [vmem:[%s3380] sm:$0xff]
    %v3382 = vld [vmem:[%s3380 + $0x8] sm:$0xff]
    %v3383 = vld [vmem:[%s3380 + $0x10] sm:$0xff]
    %v3384 = vld [vmem:[%s3380 + $0x18] sm:$0xff]
    %v3385 = vld [vmem:[%s3380 + $0x20] sm:$0xff]
    %v3386 = vld [vmem:[%s3380 + $0x28] sm:$0xff]
    %v3387 = vld [vmem:[%s3380 + $0x30] sm:$0xff]
    %v3388 = vld [vmem:[%s3380 + $0x38] sm:$0xff]
    %v3389 = vld [vmem:[%s3380 + $0x40] sm:$0xff]
    %v3390 = vld [vmem:[%s3380 + $0x48] sm:$0xff]
    %v3391 = vld [vmem:[%s3380 + $0x50] sm:$0xff]
    %v3392 = vld [vmem:[%s3380 + $0x58] sm:$0xff]
    %v3393 = vld [vmem:[%s3380 + $0x60] sm:$0xff]
    %v3394 = vld [vmem:[%s3380 + $0x68] sm:$0xff]
    %v3395 = vld [vmem:[%s3380 + $0x70] sm:$0xff]
    %v3396 = vld [vmem:[%s3380 + $0x78] sm:$0xff]
    %v3397 = vld [vmem:[%s3380 + $0x80] sm:$0xff]
    %v3398 = vld [vmem:[%s3380 + $0x88] sm:$0xff]
    %v3399 = vld [vmem:[%s3380 + $0x90] sm:$0xff]
    %v3400 = vld [vmem:[%s3380 + $0x98] sm:$0xff]
    %v3401 = vld [vmem:[%s3380 + $0xa0] sm:$0xff]
    %v3402 = vld [vmem:[%s3380 + $0xa8] sm:$0xff]
    %v3403 = vld [vmem:[%s3380 + $0xb0] sm:$0xff]
    %v3404 = vld [vmem:[%s3380 + $0xb8] sm:$0xff]
    %v3405 = vld [vmem:[%s3380 + $0xc0] sm:$0xff]
    %v3406 = vld [vmem:[%s3380 + $0xc8] sm:$0xff]
    %v3407 = vld [vmem:[%s3380 + $0xd0] sm:$0xff]
    %v3408 = vld [vmem:[%s3380 + $0xd8] sm:$0xff]
    %v3409 = vld [vmem:[%s3380 + $0xe0] sm:$0xff]
    %v3410 = vld [vmem:[%s3380 + $0xe8] sm:$0xff]
    %v3411 = vld [vmem:[%s3380 + $0xf0] sm:$0xff]
    %v3412 = vld [vmem:[%s3380 + $0xf8] sm:$0xff]
    %v3413 = vld [vmem:[%s3380 + $0x100] sm:$0xff]
    %v3414 = vld [vmem:[%s3380 + $0x108] sm:$0xff]
    %v3415 = vld [vmem:[%s3380 + $0x110] sm:$0xff]
    %v3416 = vld [vmem:[%s3380 + $0x118] sm:$0xff]
    %v3417 = vld [vmem:[%s3380 + $0x120] sm:$0xff]
    %v3418 = vld [vmem:[%s3380 + $0x128] sm:$0xff]
    %v3419 = vld [vmem:[%s3380 + $0x130] sm:$0xff]
    %v3420 = vld [vmem:[%s3380 + $0x138] sm:$0xff]
    %v3421 = vld [vmem:[%s3380 + $0x140] sm:$0xff]
    %v3422 = vld [vmem:[%s3380 + $0x148] sm:$0xff]
    %v3423 = vld [vmem:[%s3380 + $0x150] sm:$0xff]
    %v3424 = vld [vmem:[%s3380 + $0x158] sm:$0xff]
    %v3425 = vld [vmem:[%s3380 + $0x160] sm:$0xff]
    %v3426 = vld [vmem:[%s3380 + $0x168] sm:$0xff]
    %v3427 = vld [vmem:[%s3380 + $0x170] sm:$0xff]
    %v3428 = vld [vmem:[%s3380 + $0x178] sm:$0xff]
    %v3429 = vld [vmem:[%s3380 + $0x180] sm:$0xff]
    %v3430 = vld [vmem:[%s3380 + $0x188] sm:$0xff]
    %v3431 = vld [vmem:[%s3380 + $0x190] sm:$0xff]
    %v3432 = vld [vmem:[%s3380 + $0x198] sm:$0xff]
    %v3433 = vld [vmem:[%s3380 + $0x1a0] sm:$0xff]
    %v3434 = vld [vmem:[%s3380 + $0x1a8] sm:$0xff]
    %v3435 = vld [vmem:[%s3380 + $0x1b0] sm:$0xff]
    %v3436 = vld [vmem:[%s3380 + $0x1b8] sm:$0xff]
    %v3437 = vld [vmem:[%s3380 + $0x1c0] sm:$0xff]
    %v3438 = vld [vmem:[%s3380 + $0x1c8] sm:$0xff]
    %v3439 = vld [vmem:[%s3380 + $0x1d0] sm:$0xff]
    %v3440 = vld [vmem:[%s3380 + $0x1d8] sm:$0xff]
    %v3441 = vld [vmem:[%s3380 + $0x1e0] sm:$0xff]
    %v3442 = vld [vmem:[%s3380 + $0x1e8] sm:$0xff]
    %v3443 = vld [vmem:[%s3380 + $0x1f0] sm:$0xff]
    %v3444 = vld [vmem:[%s3380 + $0x1f8] sm:$0xff]
    %v3445 = vld [vmem:[%s3380 + $0x200] sm:$0xff]
    %v3446 = vld [vmem:[%s3380 + $0x208] sm:$0xff]
    %v3447 = vld [vmem:[%s3380 + $0x210] sm:$0xff]
    %v3448 = vld [vmem:[%s3380 + $0x218] sm:$0xff]
    %v3449 = vld [vmem:[%s3380 + $0x220] sm:$0xff]
    %v3450 = vld [vmem:[%s3380 + $0x228] sm:$0xff]
    %v3451 = vld [vmem:[%s3380 + $0x230] sm:$0xff]
    %v3452 = vld [vmem:[%s3380 + $0x238] sm:$0xff]
    %v3453 = vld [vmem:[%s3380 + $0x240] sm:$0xff]
    %v3454 = vld [vmem:[%s3380 + $0x248] sm:$0xff]
    %v3455 = vld [vmem:[%s3380 + $0x250] sm:$0xff]
    %v3456 = vld [vmem:[%s3380 + $0x258] sm:$0xff]
    %v3457 = vld [vmem:[%s3380 + $0x260] sm:$0xff]
    %v3458 = vld [vmem:[%s3380 + $0x268] sm:$0xff]
    %v3459 = vld [vmem:[%s3380 + $0x270] sm:$0xff]
    %v3460 = vld [vmem:[%s3380 + $0x278] sm:$0xff]
    %v3461 = vld [vmem:[%s3380 + $0x280] sm:$0xff]
    %v3462 = vld [vmem:[%s3380 + $0x288] sm:$0xff]
    %v3463 = vld [vmem:[%s3380 + $0x290] sm:$0xff]
    %v3464 = vld [vmem:[%s3380 + $0x298] sm:$0xff]
    %v3465 = vld [vmem:[%s3380 + $0x2a0] sm:$0xff]
    %v3466 = vld [vmem:[%s3380 + $0x2a8] sm:$0xff]
    %v3467 = vld [vmem:[%s3380 + $0x2b0] sm:$0xff]
    %v3468 = vld [vmem:[%s3380 + $0x2b8] sm:$0xff]
    %v3469 = vld [vmem:[%s3380 + $0x2c0] sm:$0xff]
    %v3470 = vld [vmem:[%s3380 + $0x2c8] sm:$0xff]
    %v3471 = vld [vmem:[%s3380 + $0x2d0] sm:$0xff]
    %v3472 = vld [vmem:[%s3380 + $0x2d8] sm:$0xff]
    %v3473 = vld [vmem:[%s3380 + $0x2e0] sm:$0xff]
    %v3474 = vld [vmem:[%s3380 + $0x2e8] sm:$0xff]
    %v3475 = vld [vmem:[%s3380 + $0x2f0] sm:$0xff]
    %v3476 = vld [vmem:[%s3380 + $0x2f8] sm:$0xff]
    %v3477 = vld [vmem:[%s3380 + $0x300] sm:$0xff]
    %v3478 = vld [vmem:[%s3380 + $0x308] sm:$0xff]
    %v3479 = vld [vmem:[%s3380 + $0x310] sm:$0xff]
    %v3480 = vld [vmem:[%s3380 + $0x318] sm:$0xff]
    %v3481 = vld [vmem:[%s3380 + $0x320] sm:$0xff]
    %v3482 = vld [vmem:[%s3380 + $0x328] sm:$0xff]
    %v3483 = vld [vmem:[%s3380 + $0x330] sm:$0xff]
    %v3484 = vld [vmem:[%s3380 + $0x338] sm:$0xff]
    %v3485 = vld [vmem:[%s3380 + $0x340] sm:$0xff]
    %v3486 = vld [vmem:[%s3380 + $0x348] sm:$0xff]
    %v3487 = vld [vmem:[%s3380 + $0x350] sm:$0xff]
    %v3488 = vld [vmem:[%s3380 + $0x358] sm:$0xff]
    %v3489 = vld [vmem:[%s3380 + $0x360] sm:$0xff]
    %v3490 = vld [vmem:[%s3380 + $0x368] sm:$0xff]
    %v3491 = vld [vmem:[%s3380 + $0x370] sm:$0xff]
    %v3492 = vld [vmem:[%s3380 + $0x378] sm:$0xff]
    %v3493 = vld [vmem:[%s3380 + $0x380] sm:$0xff]
    %v3494 = vld [vmem:[%s3380 + $0x388] sm:$0xff]
    %v3495 = vld [vmem:[%s3380 + $0x390] sm:$0xff]
    %v3496 = vld [vmem:[%s3380 + $0x398] sm:$0xff]
    %v3497 = vld [vmem:[%s3380 + $0x3a0] sm:$0xff]
    %v3498 = vld [vmem:[%s3380 + $0x3a8] sm:$0xff]
    %v3499 = vld [vmem:[%s3380 + $0x3b0] sm:$0xff]
    %v3500 = vld [vmem:[%s3380 + $0x3b8] sm:$0xff]
    %v3501 = vld [vmem:[%s3380 + $0x3c0] sm:$0xff]
    %v3502 = vld [vmem:[%s3380 + $0x3c8] sm:$0xff]
    %v3503 = vld [vmem:[%s3380 + $0x3d0] sm:$0xff]
    %v3504 = vld [vmem:[%s3380 + $0x3d8] sm:$0xff]
    %v3505 = vld [vmem:[%s3380 + $0x3e0] sm:$0xff]
    %v3506 = vld [vmem:[%s3380 + $0x3e8] sm:$0xff]
    %v3507 = vld [vmem:[%s3380 + $0x3f0] sm:$0xff]
    %v3508 = vld [vmem:[%s3380 + $0x3f8] sm:$0xff]
    %s3509 = scalar_lea.vmem [#allocation19], 4
    %v3510 = vld [vmem:[%s3509] sm:$0xf]
    %v3512 = vperm.slane %v3510, 0
    %v3513 = vperm.slane %v3510, 1
    %v3514 = vperm.slane %v3510, 2
    %v3515 = vperm.slane %v3510, 3
    %3520 = vmatpush.msra.mxu0 %v3441
    %3521 = vmatpush.msra.mxu0 %v3437
    %3522 = vmatpush.msra.mxu0 %v3433
    %3523 = vmatpush.msra.mxu0 %v3429
    %3524 = vmatpush.msra.mxu0 %v3425
    %3525 = vmatpush.msra.mxu0 %v3421
    %3526 = vmatpush.msra.mxu0 %v3417
    %3527 = vmatpush.msra.mxu0 %v3413
    %3528 = vmatpush.msra.mxu0 %v3409
    %3529 = vmatpush.msra.mxu0 %v3405
    %3530 = vmatpush.msra.mxu0 %v3401
    %3531 = vmatpush.msra.mxu0 %v3397
    %3532 = vmatpush.msra.mxu0 %v3393
    %3533 = vmatpush.msra.mxu0 %v3389
    %3534 = vmatpush.msra.mxu0 %v3385
    %3535 = vmatpush.msra.mxu0 %v3381
    %3536 = vmatmul.f32.gmra.mxu0 %v3376
    %v3537 = vpop.f32.mrf.mxu0
    %v3538 = vadd.f32 %v3512, %v3537
    %3539 = vmatmul.f32.gmra.mxu0 %v3378
    %v3540 = vpop.f32.mrf.mxu0
    %v3541 = vadd.f32 %v3512, %v3540
    %3542 = vdwg.mxu0
    %3543 = vmatpush.msra.mxu0 %v3505
    %3544 = vmatpush.msra.mxu0 %v3501
    %3545 = vmatpush.msra.mxu0 %v3497
    %3546 = vmatpush.msra.mxu0 %v3493
    %3547 = vmatpush.msra.mxu0 %v3489
    %3548 = vmatpush.msra.mxu0 %v3485
    %3549 = vmatpush.msra.mxu0 %v3481
    %3550 = vmatpush.msra.mxu0 %v3477
    %3551 = vmatpush.msra.mxu0 %v3473
    %3552 = vmatpush.msra.mxu0 %v3469
    %3553 = vmatpush.msra.mxu0 %v3465
    %3554 = vmatpush.msra.mxu0 %v3461
    %3555 = vmatpush.msra.mxu0 %v3457
    %3556 = vmatpush.msra.mxu0 %v3453
    %3557 = vmatpush.msra.mxu0 %v3449
    %3558 = vmatpush.msra.mxu0 %v3445
    %3559 = vmatmul.f32.gmra.mxu0 %v3377
    %v3560 = vpop.f32.mrf.mxu0
    %v3561 = vadd.f32 %v3538, %v3560
    %3562 = vmatmul.f32.gmra.mxu0 %v3379
    %v3563 = vpop.f32.mrf.mxu0
    %v3564 = vadd.f32 %v3541, %v3563
    %3565 = vdwg.mxu0
    %3566 = vmatpush.msra.mxu0 %v3442
    %3567 = vmatpush.msra.mxu0 %v3438
    %3568 = vmatpush.msra.mxu0 %v3434
    %3569 = vmatpush.msra.mxu0 %v3430
    %3570 = vmatpush.msra.mxu0 %v3426
    %3571 = vmatpush.msra.mxu0 %v3422
    %3572 = vmatpush.msra.mxu0 %v3418
    %3573 = vmatpush.msra.mxu0 %v3414
    %3574 = vmatpush.msra.mxu0 %v3410
    %3575 = vmatpush.msra.mxu0 %v3406
    %3576 = vmatpush.msra.mxu0 %v3402
    %3577 = vmatpush.msra.mxu0 %v3398
    %3578 = vmatpush.msra.mxu0 %v3394
    %3579 = vmatpush.msra.mxu0 %v3390
    %3580 = vmatpush.msra.mxu0 %v3386
    %3581 = vmatpush.msra.mxu0 %v3382
    %3582 = vmatmul.f32.gmra.mxu0 %v3376
    %v3583 = vpop.f32.mrf.mxu0
    %v3584 = vadd.f32 %v3513, %v3583
    %3585 = vmatmul.f32.gmra.mxu0 %v3378
    %v3586 = vpop.f32.mrf.mxu0
    %v3587 = vadd.f32 %v3513, %v3586
    %3588 = vdwg.mxu0
    %3589 = vmatpush.msra.mxu0 %v3506
    %3590 = vmatpush.msra.mxu0 %v3502
    %3591 = vmatpush.msra.mxu0 %v3498
    %3592 = vmatpush.msra.mxu0 %v3494
    %3593 = vmatpush.msra.mxu0 %v3490
    %3594 = vmatpush.msra.mxu0 %v3486
    %3595 = vmatpush.msra.mxu0 %v3482
    %3596 = vmatpush.msra.mxu0 %v3478
    %3597 = vmatpush.msra.mxu0 %v3474
    %3598 = vmatpush.msra.mxu0 %v3470
    %3599 = vmatpush.msra.mxu0 %v3466
    %3600 = vmatpush.msra.mxu0 %v3462
    %3601 = vmatpush.msra.mxu0 %v3458
    %3602 = vmatpush.msra.mxu0 %v3454
    %3603 = vmatpush.msra.mxu0 %v3450
    %3604 = vmatpush.msra.mxu0 %v3446
    %3605 = vmatmul.f32.gmra.mxu0 %v3377
    %v3606 = vpop.f32.mrf.mxu0
    %v3607 = vadd.f32 %v3584, %v3606
    %3608 = vmatmul.f32.gmra.mxu0 %v3379
    %v3609 = vpop.f32.mrf.mxu0
    %v3610 = vadd.f32 %v3587, %v3609
    %3611 = vdwg.mxu0
    %3612 = vmatpush.msra.mxu0 %v3443
    %3613 = vmatpush.msra.mxu0 %v3439
    %3614 = vmatpush.msra.mxu0 %v3435
    %3615 = vmatpush.msra.mxu0 %v3431
    %3616 = vmatpush.msra.mxu0 %v3427
    %3617 = vmatpush.msra.mxu0 %v3423
    %3618 = vmatpush.msra.mxu0 %v3419
    %3619 = vmatpush.msra.mxu0 %v3415
    %3620 = vmatpush.msra.mxu0 %v3411
    %3621 = vmatpush.msra.mxu0 %v3407
    %3622 = vmatpush.msra.mxu0 %v3403
    %3623 = vmatpush.msra.mxu0 %v3399
    %3624 = vmatpush.msra.mxu0 %v3395
    %3625 = vmatpush.msra.mxu0 %v3391
    %3626 = vmatpush.msra.mxu0 %v3387
    %3627 = vmatpush.msra.mxu0 %v3383
    %3628 = vmatmul.f32.gmra.mxu0 %v3376
    %v3629 = vpop.f32.mrf.mxu0
    %v3630 = vadd.f32 %v3514, %v3629
    %3631 = vmatmul.f32.gmra.mxu0 %v3378
    %v3632 = vpop.f32.mrf.mxu0
    %v3633 = vadd.f32 %v3514, %v3632
    %3634 = vdwg.mxu0
    %3635 = vmatpush.msra.mxu0 %v3507
    %3636 = vmatpush.msra.mxu0 %v3503
    %3637 = vmatpush.msra.mxu0 %v3499
    %3638 = vmatpush.msra.mxu0 %v3495
    %3639 = vmatpush.msra.mxu0 %v3491
    %3640 = vmatpush.msra.mxu0 %v3487
    %3641 = vmatpush.msra.mxu0 %v3483
    %3642 = vmatpush.msra.mxu0 %v3479
    %3643 = vmatpush.msra.mxu0 %v3475
    %3644 = vmatpush.msra.mxu0 %v3471
    %3645 = vmatpush.msra.mxu0 %v3467
    %3646 = vmatpush.msra.mxu0 %v3463
    %3647 = vmatpush.msra.mxu0 %v3459
    %3648 = vmatpush.msra.mxu0 %v3455
    %3649 = vmatpush.msra.mxu0 %v3451
    %3650 = vmatpush.msra.mxu0 %v3447
    %3651 = vmatmul.f32.gmra.mxu0 %v3377
    %v3652 = vpop.f32.mrf.mxu0
    %v3653 = vadd.f32 %v3630, %v3652
    %3654 = vmatmul.f32.gmra.mxu0 %v3379
    %v3655 = vpop.f32.mrf.mxu0
    %v3656 = vadd.f32 %v3633, %v3655
    %3657 = vdwg.mxu0
    %3658 = vmatpush.msra.mxu0 %v3444
    %3659 = vmatpush.msra.mxu0 %v3440
    %3660 = vmatpush.msra.mxu0 %v3436
    %3661 = vmatpush.msra.mxu0 %v3432
    %3662 = vmatpush.msra.mxu0 %v3428
    %3663 = vmatpush.msra.mxu0 %v3424
    %3664 = vmatpush.msra.mxu0 %v3420
    %3665 = vmatpush.msra.mxu0 %v3416
    %3666 = vmatpush.msra.mxu0 %v3412
    %3667 = vmatpush.msra.mxu0 %v3408
    %3668 = vmatpush.msra.mxu0 %v3404
    %3669 = vmatpush.msra.mxu0 %v3400
    %3670 = vmatpush.msra.mxu0 %v3396
    %3671 = vmatpush.msra.mxu0 %v3392
    %3672 = vmatpush.msra.mxu0 %v3388
    %3673 = vmatpush.msra.mxu0 %v3384
    %3674 = vmatmul.f32.gmra.mxu0 %v3376
    %v3675 = vpop.f32.mrf.mxu0
    %v3676 = vadd.f32 %v3515, %v3675
    %3677 = vmatmul.f32.gmra.mxu0 %v3378
    %v3678 = vpop.f32.mrf.mxu0
    %v3679 = vadd.f32 %v3515, %v3678
    %3680 = vdwg.mxu0
    %3681 = vmatpush.msra.mxu0 %v3508
    %3682 = vmatpush.msra.mxu0 %v3504
    %3683 = vmatpush.msra.mxu0 %v3500
    %3684 = vmatpush.msra.mxu0 %v3496
    %3685 = vmatpush.msra.mxu0 %v3492
    %3686 = vmatpush.msra.mxu0 %v3488
    %3687 = vmatpush.msra.mxu0 %v3484
    %3688 = vmatpush.msra.mxu0 %v3480
    %3689 = vmatpush.msra.mxu0 %v3476
    %3690 = vmatpush.msra.mxu0 %v3472
    %3691 = vmatpush.msra.mxu0 %v3468
    %3692 = vmatpush.msra.mxu0 %v3464
    %3693 = vmatpush.msra.mxu0 %v3460
    %3694 = vmatpush.msra.mxu0 %v3456
    %3695 = vmatpush.msra.mxu0 %v3452
    %3696 = vmatpush.msra.mxu0 %v3448
    %3697 = vmatmul.f32.gmra.mxu0 %v3377
    %v3698 = vpop.f32.mrf.mxu0
    %v3699 = vadd.f32 %v3676, %v3698
    %3700 = vmatmul.f32.gmra.mxu0 %v3379
    %v3701 = vpop.f32.mrf.mxu0
    %v3702 = vadd.f32 %v3679, %v3701
    %3703 = vdwg.mxu0
    %v3704 = vmul.f32 %v3561, 0.5
    %v3705 = vmul.f32 %v3607, 0.5
    %v3706 = vmul.f32 %v3653, 0.5
    %v3707 = vmul.f32 %v3699, 0.5
    %v3708 = vmul.f32 %v3564, 0.5
    %v3709 = vmul.f32 %v3610, 0.5
    %v3710 = vmul.f32 %v3656, 0.5
    %v3711 = vmul.f32 %v3702, 0.5
    %v3712 = vmul.f32 %v3561, 0.70710677
    %v3713 = vmul.f32 %v3607, 0.70710677
    %v3714 = vmul.f32 %v3653, 0.70710677
    %v3715 = vmul.f32 %v3699, 0.70710677
    %v3716 = vmul.f32 %v3564, 0.70710677
    %v3717 = vmul.f32 %v3610, 0.70710677
    %v3718 = vmul.f32 %v3656, 0.70710677
    %v3719 = vmul.f32 %v3702, 0.70710677
    %v3720 = vmul.f32 %v3712, %v3712
    %v3721 = vmin.f32 16.0, %v3720
    %v3722 = vmul.f32 %v3721, 2.1237322e-06
    %v3723 = vadd.f32 %v3722, 0.00028619796
    %v3724 = vmul.f32 %v3721, %v3723
    %v3725 = vadd.f32 %v3724, 0.0036580483
    %v3726 = vmul.f32 %v3721, %v3725
    %v3727 = vadd.f32 %v3726, 0.05243302
    %v3728 = vmul.f32 %v3721, %v3727
    %v3729 = vadd.f32 %v3728, 0.18741608
    %v3730 = vmul.f32 %v3721, %v3729
    %v3731 = vadd.f32 %v3730, 1.1283791
    %v3732 = vmul.f32 %v3712, %v3731
    %v3733 = vmul.f32 %v3721, 3.8918573e-05
    %v3734 = vadd.f32 %v3733, 0.001143296
    %v3735 = vmul.f32 %v3721, %v3734
    %v3736 = vadd.f32 %v3735, 0.014752088
    %v3737 = vmul.f32 %v3721, %v3736
    %v3738 = vadd.f32 %v3737, 0.112945676
    %v3739 = vmul.f32 %v3721, %v3738
    %v3740 = vadd.f32 %v3739, 0.4994258
    %v3741 = vmul.f32 %v3721, %v3740
    %v3742 = vadd.f32 %v3741, 1.0
    %v3743 = vrcp.pop %v3742
    %v3744 = vmul.f32 %v3742, %v3743
    %v3745 = vsub.f32 1.0, %v3744
    %v3746 = vmul.f32 %v3743, %v3745
    %v3747 = vadd.f32 %v3743, %v3746
    %vm3748 = vweird.f32 %v3742
    %vm3749 = vweird.f32 %v3743
    %vm3750 = vmor %vm3748, %vm3749
    %v3751 = vsel %vm3750, %v3743, %v3747
    %v3752 = vand.u32 2147483647, %v3742
    %vm3753 = vcmp.eq.f32.partialorder %v3752, 8.507059e+37
    %v3754 = vand.u32 %v3742, 2147483648
    %v3755 = vor.u32 1.1754944e-38, %v3754
    %v3756 = vsel %vm3753, %v3755, %v3751
    %v3757 = vmul.f32 %v3732, %v3756
    %v3758 = vmin.f32 %v3757, 1.0
    %v3759 = vmax.f32 %v3758, -1.0
    %v3760 = vmul.f32 %v3713, %v3713
    %v3761 = vmin.f32 16.0, %v3760
    %v3762 = vmul.f32 %v3761, 2.1237322e-06
    %v3763 = vadd.f32 %v3762, 0.00028619796
    %v3764 = vmul.f32 %v3761, %v3763
    %v3765 = vadd.f32 %v3764, 0.0036580483
    %v3766 = vmul.f32 %v3761, %v3765
    %v3767 = vadd.f32 %v3766, 0.05243302
    %v3768 = vmul.f32 %v3761, %v3767
    %v3769 = vadd.f32 %v3768, 0.18741608
    %v3770 = vmul.f32 %v3761, %v3769
    %v3771 = vadd.f32 %v3770, 1.1283791
    %v3772 = vmul.f32 %v3713, %v3771
    %v3773 = vmul.f32 %v3761, 3.8918573e-05
    %v3774 = vadd.f32 %v3773, 0.001143296
    %v3775 = vmul.f32 %v3761, %v3774
    %v3776 = vadd.f32 %v3775, 0.014752088
    %v3777 = vmul.f32 %v3761, %v3776
    %v3778 = vadd.f32 %v3777, 0.112945676
    %v3779 = vmul.f32 %v3761, %v3778
    %v3780 = vadd.f32 %v3779, 0.4994258
    %v3781 = vmul.f32 %v3761, %v3780
    %v3782 = vadd.f32 %v3781, 1.0
    %v3783 = vrcp.pop %v3782
    %v3784 = vmul.f32 %v3782, %v3783
    %v3785 = vsub.f32 1.0, %v3784
    %v3786 = vmul.f32 %v3783, %v3785
    %v3787 = vadd.f32 %v3783, %v3786
    %vm3788 = vweird.f32 %v3782
    %vm3789 = vweird.f32 %v3783
    %vm3790 = vmor %vm3788, %vm3789
    %v3791 = vsel %vm3790, %v3783, %v3787
    %v3792 = vand.u32 2147483647, %v3782
    %vm3793 = vcmp.eq.f32.partialorder %v3792, 8.507059e+37
    %v3794 = vand.u32 %v3782, 2147483648
    %v3795 = vor.u32 1.1754944e-38, %v3794
    %v3796 = vsel %vm3793, %v3795, %v3791
    %v3797 = vmul.f32 %v3772, %v3796
    %v3798 = vmin.f32 %v3797, 1.0
    %v3799 = vmax.f32 %v3798, -1.0
    %v3800 = vmul.f32 %v3714, %v3714
    %v3801 = vmin.f32 16.0, %v3800
    %v3802 = vmul.f32 %v3801, 2.1237322e-06
    %v3803 = vadd.f32 %v3802, 0.00028619796
    %v3804 = vmul.f32 %v3801, %v3803
    %v3805 = vadd.f32 %v3804, 0.0036580483
    %v3806 = vmul.f32 %v3801, %v3805
    %v3807 = vadd.f32 %v3806, 0.05243302
    %v3808 = vmul.f32 %v3801, %v3807
    %v3809 = vadd.f32 %v3808, 0.18741608
    %v3810 = vmul.f32 %v3801, %v3809
    %v3811 = vadd.f32 %v3810, 1.1283791
    %v3812 = vmul.f32 %v3714, %v3811
    %v3813 = vmul.f32 %v3801, 3.8918573e-05
    %v3814 = vadd.f32 %v3813, 0.001143296
    %v3815 = vmul.f32 %v3801, %v3814
    %v3816 = vadd.f32 %v3815, 0.014752088
    %v3817 = vmul.f32 %v3801, %v3816
    %v3818 = vadd.f32 %v3817, 0.112945676
    %v3819 = vmul.f32 %v3801, %v3818
    %v3820 = vadd.f32 %v3819, 0.4994258
    %v3821 = vmul.f32 %v3801, %v3820
    %v3822 = vadd.f32 %v3821, 1.0
    %v3823 = vrcp.pop %v3822
    %v3824 = vmul.f32 %v3822, %v3823
    %v3825 = vsub.f32 1.0, %v3824
    %v3826 = vmul.f32 %v3823, %v3825
    %v3827 = vadd.f32 %v3823, %v3826
    %vm3828 = vweird.f32 %v3822
    %vm3829 = vweird.f32 %v3823
    %vm3830 = vmor %vm3828, %vm3829
    %v3831 = vsel %vm3830, %v3823, %v3827
    %v3832 = vand.u32 2147483647, %v3822
    %vm3833 = vcmp.eq.f32.partialorder %v3832, 8.507059e+37
    %v3834 = vand.u32 %v3822, 2147483648
    %v3835 = vor.u32 1.1754944e-38, %v3834
    %v3836 = vsel %vm3833, %v3835, %v3831
    %v3837 = vmul.f32 %v3812, %v3836
    %v3838 = vmin.f32 %v3837, 1.0
    %v3839 = vmax.f32 %v3838, -1.0
    %v3840 = vmul.f32 %v3715, %v3715
    %v3841 = vmin.f32 16.0, %v3840
    %v3842 = vmul.f32 %v3841, 2.1237322e-06
    %v3843 = vadd.f32 %v3842, 0.00028619796
    %v3844 = vmul.f32 %v3841, %v3843
    %v3845 = vadd.f32 %v3844, 0.0036580483
    %v3846 = vmul.f32 %v3841, %v3845
    %v3847 = vadd.f32 %v3846, 0.05243302
    %v3848 = vmul.f32 %v3841, %v3847
    %v3849 = vadd.f32 %v3848, 0.18741608
    %v3850 = vmul.f32 %v3841, %v3849
    %v3851 = vadd.f32 %v3850, 1.1283791
    %v3852 = vmul.f32 %v3715, %v3851
    %v3853 = vmul.f32 %v3841, 3.8918573e-05
    %v3854 = vadd.f32 %v3853, 0.001143296
    %v3855 = vmul.f32 %v3841, %v3854
    %v3856 = vadd.f32 %v3855, 0.014752088
    %v3857 = vmul.f32 %v3841, %v3856
    %v3858 = vadd.f32 %v3857, 0.112945676
    %v3859 = vmul.f32 %v3841, %v3858
    %v3860 = vadd.f32 %v3859, 0.4994258
    %v3861 = vmul.f32 %v3841, %v3860
    %v3862 = vadd.f32 %v3861, 1.0
    %v3863 = vrcp.pop %v3862
    %v3864 = vmul.f32 %v3862, %v3863
    %v3865 = vsub.f32 1.0, %v3864
    %v3866 = vmul.f32 %v3863, %v3865
    %v3867 = vadd.f32 %v3863, %v3866
    %vm3868 = vweird.f32 %v3862
    %vm3869 = vweird.f32 %v3863
    %vm3870 = vmor %vm3868, %vm3869
    %v3871 = vsel %vm3870, %v3863, %v3867
    %v3872 = vand.u32 2147483647, %v3862
    %vm3873 = vcmp.eq.f32.partialorder %v3872, 8.507059e+37
    %v3874 = vand.u32 %v3862, 2147483648
    %v3875 = vor.u32 1.1754944e-38, %v3874
    %v3876 = vsel %vm3873, %v3875, %v3871
    %v3877 = vmul.f32 %v3852, %v3876
    %v3878 = vmin.f32 %v3877, 1.0
    %v3879 = vmax.f32 %v3878, -1.0
    %v3880 = vmul.f32 %v3716, %v3716
    %v3881 = vmin.f32 16.0, %v3880
    %v3882 = vmul.f32 %v3881, 2.1237322e-06
    %v3883 = vadd.f32 %v3882, 0.00028619796
    %v3884 = vmul.f32 %v3881, %v3883
    %v3885 = vadd.f32 %v3884, 0.0036580483
    %v3886 = vmul.f32 %v3881, %v3885
    %v3887 = vadd.f32 %v3886, 0.05243302
    %v3888 = vmul.f32 %v3881, %v3887
    %v3889 = vadd.f32 %v3888, 0.18741608
    %v3890 = vmul.f32 %v3881, %v3889
    %v3891 = vadd.f32 %v3890, 1.1283791
    %v3892 = vmul.f32 %v3716, %v3891
    %v3893 = vmul.f32 %v3881, 3.8918573e-05
    %v3894 = vadd.f32 %v3893, 0.001143296
    %v3895 = vmul.f32 %v3881, %v3894
    %v3896 = vadd.f32 %v3895, 0.014752088
    %v3897 = vmul.f32 %v3881, %v3896
    %v3898 = vadd.f32 %v3897, 0.112945676
    %v3899 = vmul.f32 %v3881, %v3898
    %v3900 = vadd.f32 %v3899, 0.4994258
    %v3901 = vmul.f32 %v3881, %v3900
    %v3902 = vadd.f32 %v3901, 1.0
    %v3903 = vrcp.pop %v3902
    %v3904 = vmul.f32 %v3902, %v3903
    %v3905 = vsub.f32 1.0, %v3904
    %v3906 = vmul.f32 %v3903, %v3905
    %v3907 = vadd.f32 %v3903, %v3906
    %vm3908 = vweird.f32 %v3902
    %vm3909 = vweird.f32 %v3903
    %vm3910 = vmor %vm3908, %vm3909
    %v3911 = vsel %vm3910, %v3903, %v3907
    %v3912 = vand.u32 2147483647, %v3902
    %vm3913 = vcmp.eq.f32.partialorder %v3912, 8.507059e+37
    %v3914 = vand.u32 %v3902, 2147483648
    %v3915 = vor.u32 1.1754944e-38, %v3914
    %v3916 = vsel %vm3913, %v3915, %v3911
    %v3917 = vmul.f32 %v3892, %v3916
    %v3918 = vmin.f32 %v3917, 1.0
    %v3919 = vmax.f32 %v3918, -1.0
    %v3920 = vmul.f32 %v3717, %v3717
    %v3921 = vmin.f32 16.0, %v3920
    %v3922 = vmul.f32 %v3921, 2.1237322e-06
    %v3923 = vadd.f32 %v3922, 0.00028619796
    %v3924 = vmul.f32 %v3921, %v3923
    %v3925 = vadd.f32 %v3924, 0.0036580483
    %v3926 = vmul.f32 %v3921, %v3925
    %v3927 = vadd.f32 %v3926, 0.05243302
    %v3928 = vmul.f32 %v3921, %v3927
    %v3929 = vadd.f32 %v3928, 0.18741608
    %v3930 = vmul.f32 %v3921, %v3929
    %v3931 = vadd.f32 %v3930, 1.1283791
    %v3932 = vmul.f32 %v3717, %v3931
    %v3933 = vmul.f32 %v3921, 3.8918573e-05
    %v3934 = vadd.f32 %v3933, 0.001143296
    %v3935 = vmul.f32 %v3921, %v3934
    %v3936 = vadd.f32 %v3935, 0.014752088
    %v3937 = vmul.f32 %v3921, %v3936
    %v3938 = vadd.f32 %v3937, 0.112945676
    %v3939 = vmul.f32 %v3921, %v3938
    %v3940 = vadd.f32 %v3939, 0.4994258
    %v3941 = vmul.f32 %v3921, %v3940
    %v3942 = vadd.f32 %v3941, 1.0
    %v3943 = vrcp.pop %v3942
    %v3944 = vmul.f32 %v3942, %v3943
    %v3945 = vsub.f32 1.0, %v3944
    %v3946 = vmul.f32 %v3943, %v3945
    %v3947 = vadd.f32 %v3943, %v3946
    %vm3948 = vweird.f32 %v3942
    %vm3949 = vweird.f32 %v3943
    %vm3950 = vmor %vm3948, %vm3949
    %v3951 = vsel %vm3950, %v3943, %v3947
    %v3952 = vand.u32 2147483647, %v3942
    %vm3953 = vcmp.eq.f32.partialorder %v3952, 8.507059e+37
    %v3954 = vand.u32 %v3942, 2147483648
    %v3955 = vor.u32 1.1754944e-38, %v3954
    %v3956 = vsel %vm3953, %v3955, %v3951
    %v3957 = vmul.f32 %v3932, %v3956
    %v3958 = vmin.f32 %v3957, 1.0
    %v3959 = vmax.f32 %v3958, -1.0
    %v3960 = vmul.f32 %v3718, %v3718
    %v3961 = vmin.f32 16.0, %v3960
    %v3962 = vmul.f32 %v3961, 2.1237322e-06
    %v3963 = vadd.f32 %v3962, 0.00028619796
    %v3964 = vmul.f32 %v3961, %v3963
    %v3965 = vadd.f32 %v3964, 0.0036580483
    %v3966 = vmul.f32 %v3961, %v3965
    %v3967 = vadd.f32 %v3966, 0.05243302
    %v3968 = vmul.f32 %v3961, %v3967
    %v3969 = vadd.f32 %v3968, 0.18741608
    %v3970 = vmul.f32 %v3961, %v3969
    %v3971 = vadd.f32 %v3970, 1.1283791
    %v3972 = vmul.f32 %v3718, %v3971
    %v3973 = vmul.f32 %v3961, 3.8918573e-05
    %v3974 = vadd.f32 %v3973, 0.001143296
    %v3975 = vmul.f32 %v3961, %v3974
    %v3976 = vadd.f32 %v3975, 0.014752088
    %v3977 = vmul.f32 %v3961, %v3976
    %v3978 = vadd.f32 %v3977, 0.112945676
    %v3979 = vmul.f32 %v3961, %v3978
    %v3980 = vadd.f32 %v3979, 0.4994258
    %v3981 = vmul.f32 %v3961, %v3980
    %v3982 = vadd.f32 %v3981, 1.0
    %v3983 = vrcp.pop %v3982
    %v3984 = vmul.f32 %v3982, %v3983
    %v3985 = vsub.f32 1.0, %v3984
    %v3986 = vmul.f32 %v3983, %v3985
    %v3987 = vadd.f32 %v3983, %v3986
    %vm3988 = vweird.f32 %v3982
    %vm3989 = vweird.f32 %v3983
    %vm3990 = vmor %vm3988, %vm3989
    %v3991 = vsel %vm3990, %v3983, %v3987
    %v3992 = vand.u32 2147483647, %v3982
    %vm3993 = vcmp.eq.f32.partialorder %v3992, 8.507059e+37
    %v3994 = vand.u32 %v3982, 2147483648
    %v3995 = vor.u32 1.1754944e-38, %v3994
    %v3996 = vsel %vm3993, %v3995, %v3991
    %v3997 = vmul.f32 %v3972, %v3996
    %v3998 = vmin.f32 %v3997, 1.0
    %v3999 = vmax.f32 %v3998, -1.0
    %v4000 = vmul.f32 %v3719, %v3719
    %v4001 = vmin.f32 16.0, %v4000
    %v4002 = vmul.f32 %v4001, 2.1237322e-06
    %v4003 = vadd.f32 %v4002, 0.00028619796
    %v4004 = vmul.f32 %v4001, %v4003
    %v4005 = vadd.f32 %v4004, 0.0036580483
    %v4006 = vmul.f32 %v4001, %v4005
    %v4007 = vadd.f32 %v4006, 0.05243302
    %v4008 = vmul.f32 %v4001, %v4007
    %v4009 = vadd.f32 %v4008, 0.18741608
    %v4010 = vmul.f32 %v4001, %v4009
    %v4011 = vadd.f32 %v4010, 1.1283791
    %v4012 = vmul.f32 %v3719, %v4011
    %v4013 = vmul.f32 %v4001, 3.8918573e-05
    %v4014 = vadd.f32 %v4013, 0.001143296
    %v4015 = vmul.f32 %v4001, %v4014
    %v4016 = vadd.f32 %v4015, 0.014752088
    %v4017 = vmul.f32 %v4001, %v4016
    %v4018 = vadd.f32 %v4017, 0.112945676
    %v4019 = vmul.f32 %v4001, %v4018
    %v4020 = vadd.f32 %v4019, 0.4994258
    %v4021 = vmul.f32 %v4001, %v4020
    %v4022 = vadd.f32 %v4021, 1.0
    %v4023 = vrcp.pop %v4022
    %v4024 = vmul.f32 %v4022, %v4023
    %v4025 = vsub.f32 1.0, %v4024
    %v4026 = vmul.f32 %v4023, %v4025
    %v4027 = vadd.f32 %v4023, %v4026
    %vm4028 = vweird.f32 %v4022
    %vm4029 = vweird.f32 %v4023
    %vm4030 = vmor %vm4028, %vm4029
    %v4031 = vsel %vm4030, %v4023, %v4027
    %v4032 = vand.u32 2147483647, %v4022
    %vm4033 = vcmp.eq.f32.partialorder %v4032, 8.507059e+37
    %v4034 = vand.u32 %v4022, 2147483648
    %v4035 = vor.u32 1.1754944e-38, %v4034
    %v4036 = vsel %vm4033, %v4035, %v4031
    %v4037 = vmul.f32 %v4012, %v4036
    %v4038 = vmin.f32 %v4037, 1.0
    %v4039 = vmax.f32 %v4038, -1.0
    %v4040 = vadd.f32 %v3759, 1.0
    %v4041 = vadd.f32 %v3799, 1.0
    %v4042 = vadd.f32 %v3839, 1.0
    %v4043 = vadd.f32 %v3879, 1.0
    %v4044 = vadd.f32 %v3919, 1.0
    %v4045 = vadd.f32 %v3959, 1.0
    %v4046 = vadd.f32 %v3999, 1.0
    %v4047 = vadd.f32 %v4039, 1.0
    %v4048 = vmul.f32 %v3704, %v4040
    %v4049 = vmul.f32 %v3705, %v4041
    %v4050 = vmul.f32 %v3706, %v4042
    %v4051 = vmul.f32 %v3707, %v4043
    %v4052 = vmul.f32 %v3708, %v4044
    %v4053 = vmul.f32 %v3709, %v4045
    %v4054 = vmul.f32 %v3710, %v4046
    %v4055 = vmul.f32 %v3711, %v4047
    %s4056 = scalar_lea.vmem [#allocation20], 1024
    %v4057 = vld [vmem:[%s4056] sm:$0xff]
    %v4058 = vld [vmem:[%s4056 + $0x8] sm:$0xff]
    %v4059 = vld [vmem:[%s4056 + $0x10] sm:$0xff]
    %v4060 = vld [vmem:[%s4056 + $0x18] sm:$0xff]
    %v4061 = vld [vmem:[%s4056 + $0x20] sm:$0xff]
    %v4062 = vld [vmem:[%s4056 + $0x28] sm:$0xff]
    %v4063 = vld [vmem:[%s4056 + $0x30] sm:$0xff]
    %v4064 = vld [vmem:[%s4056 + $0x38] sm:$0xff]
    %v4065 = vld [vmem:[%s4056 + $0x40] sm:$0xff]
    %v4066 = vld [vmem:[%s4056 + $0x48] sm:$0xff]
    %v4067 = vld [vmem:[%s4056 + $0x50] sm:$0xff]
    %v4068 = vld [vmem:[%s4056 + $0x58] sm:$0xff]
    %v4069 = vld [vmem:[%s4056 + $0x60] sm:$0xff]
    %v4070 = vld [vmem:[%s4056 + $0x68] sm:$0xff]
    %v4071 = vld [vmem:[%s4056 + $0x70] sm:$0xff]
    %v4072 = vld [vmem:[%s4056 + $0x78] sm:$0xff]
    %v4073 = vld [vmem:[%s4056 + $0x80] sm:$0xff]
    %v4074 = vld [vmem:[%s4056 + $0x88] sm:$0xff]
    %v4075 = vld [vmem:[%s4056 + $0x90] sm:$0xff]
    %v4076 = vld [vmem:[%s4056 + $0x98] sm:$0xff]
    %v4077 = vld [vmem:[%s4056 + $0xa0] sm:$0xff]
    %v4078 = vld [vmem:[%s4056 + $0xa8] sm:$0xff]
    %v4079 = vld [vmem:[%s4056 + $0xb0] sm:$0xff]
    %v4080 = vld [vmem:[%s4056 + $0xb8] sm:$0xff]
    %v4081 = vld [vmem:[%s4056 + $0xc0] sm:$0xff]
    %v4082 = vld [vmem:[%s4056 + $0xc8] sm:$0xff]
    %v4083 = vld [vmem:[%s4056 + $0xd0] sm:$0xff]
    %v4084 = vld [vmem:[%s4056 + $0xd8] sm:$0xff]
    %v4085 = vld [vmem:[%s4056 + $0xe0] sm:$0xff]
    %v4086 = vld [vmem:[%s4056 + $0xe8] sm:$0xff]
    %v4087 = vld [vmem:[%s4056 + $0xf0] sm:$0xff]
    %v4088 = vld [vmem:[%s4056 + $0xf8] sm:$0xff]
    %v4089 = vld [vmem:[%s4056 + $0x100] sm:$0xff]
    %v4090 = vld [vmem:[%s4056 + $0x108] sm:$0xff]
    %v4091 = vld [vmem:[%s4056 + $0x110] sm:$0xff]
    %v4092 = vld [vmem:[%s4056 + $0x118] sm:$0xff]
    %v4093 = vld [vmem:[%s4056 + $0x120] sm:$0xff]
    %v4094 = vld [vmem:[%s4056 + $0x128] sm:$0xff]
    %v4095 = vld [vmem:[%s4056 + $0x130] sm:$0xff]
    %v4096 = vld [vmem:[%s4056 + $0x138] sm:$0xff]
    %v4097 = vld [vmem:[%s4056 + $0x140] sm:$0xff]
    %v4098 = vld [vmem:[%s4056 + $0x148] sm:$0xff]
    %v4099 = vld [vmem:[%s4056 + $0x150] sm:$0xff]
    %v4100 = vld [vmem:[%s4056 + $0x158] sm:$0xff]
    %v4101 = vld [vmem:[%s4056 + $0x160] sm:$0xff]
    %v4102 = vld [vmem:[%s4056 + $0x168] sm:$0xff]
    %v4103 = vld [vmem:[%s4056 + $0x170] sm:$0xff]
    %v4104 = vld [vmem:[%s4056 + $0x178] sm:$0xff]
    %v4105 = vld [vmem:[%s4056 + $0x180] sm:$0xff]
    %v4106 = vld [vmem:[%s4056 + $0x188] sm:$0xff]
    %v4107 = vld [vmem:[%s4056 + $0x190] sm:$0xff]
    %v4108 = vld [vmem:[%s4056 + $0x198] sm:$0xff]
    %v4109 = vld [vmem:[%s4056 + $0x1a0] sm:$0xff]
    %v4110 = vld [vmem:[%s4056 + $0x1a8] sm:$0xff]
    %v4111 = vld [vmem:[%s4056 + $0x1b0] sm:$0xff]
    %v4112 = vld [vmem:[%s4056 + $0x1b8] sm:$0xff]
    %v4113 = vld [vmem:[%s4056 + $0x1c0] sm:$0xff]
    %v4114 = vld [vmem:[%s4056 + $0x1c8] sm:$0xff]
    %v4115 = vld [vmem:[%s4056 + $0x1d0] sm:$0xff]
    %v4116 = vld [vmem:[%s4056 + $0x1d8] sm:$0xff]
    %v4117 = vld [vmem:[%s4056 + $0x1e0] sm:$0xff]
    %v4118 = vld [vmem:[%s4056 + $0x1e8] sm:$0xff]
    %v4119 = vld [vmem:[%s4056 + $0x1f0] sm:$0xff]
    %v4120 = vld [vmem:[%s4056 + $0x1f8] sm:$0xff]
    %v4121 = vld [vmem:[%s4056 + $0x200] sm:$0xff]
    %v4122 = vld [vmem:[%s4056 + $0x208] sm:$0xff]
    %v4123 = vld [vmem:[%s4056 + $0x210] sm:$0xff]
    %v4124 = vld [vmem:[%s4056 + $0x218] sm:$0xff]
    %v4125 = vld [vmem:[%s4056 + $0x220] sm:$0xff]
    %v4126 = vld [vmem:[%s4056 + $0x228] sm:$0xff]
    %v4127 = vld [vmem:[%s4056 + $0x230] sm:$0xff]
    %v4128 = vld [vmem:[%s4056 + $0x238] sm:$0xff]
    %v4129 = vld [vmem:[%s4056 + $0x240] sm:$0xff]
    %v4130 = vld [vmem:[%s4056 + $0x248] sm:$0xff]
    %v4131 = vld [vmem:[%s4056 + $0x250] sm:$0xff]
    %v4132 = vld [vmem:[%s4056 + $0x258] sm:$0xff]
    %v4133 = vld [vmem:[%s4056 + $0x260] sm:$0xff]
    %v4134 = vld [vmem:[%s4056 + $0x268] sm:$0xff]
    %v4135 = vld [vmem:[%s4056 + $0x270] sm:$0xff]
    %v4136 = vld [vmem:[%s4056 + $0x278] sm:$0xff]
    %v4137 = vld [vmem:[%s4056 + $0x280] sm:$0xff]
    %v4138 = vld [vmem:[%s4056 + $0x288] sm:$0xff]
    %v4139 = vld [vmem:[%s4056 + $0x290] sm:$0xff]
    %v4140 = vld [vmem:[%s4056 + $0x298] sm:$0xff]
    %v4141 = vld [vmem:[%s4056 + $0x2a0] sm:$0xff]
    %v4142 = vld [vmem:[%s4056 + $0x2a8] sm:$0xff]
    %v4143 = vld [vmem:[%s4056 + $0x2b0] sm:$0xff]
    %v4144 = vld [vmem:[%s4056 + $0x2b8] sm:$0xff]
    %v4145 = vld [vmem:[%s4056 + $0x2c0] sm:$0xff]
    %v4146 = vld [vmem:[%s4056 + $0x2c8] sm:$0xff]
    %v4147 = vld [vmem:[%s4056 + $0x2d0] sm:$0xff]
    %v4148 = vld [vmem:[%s4056 + $0x2d8] sm:$0xff]
    %v4149 = vld [vmem:[%s4056 + $0x2e0] sm:$0xff]
    %v4150 = vld [vmem:[%s4056 + $0x2e8] sm:$0xff]
    %v4151 = vld [vmem:[%s4056 + $0x2f0] sm:$0xff]
    %v4152 = vld [vmem:[%s4056 + $0x2f8] sm:$0xff]
    %v4153 = vld [vmem:[%s4056 + $0x300] sm:$0xff]
    %v4154 = vld [vmem:[%s4056 + $0x308] sm:$0xff]
    %v4155 = vld [vmem:[%s4056 + $0x310] sm:$0xff]
    %v4156 = vld [vmem:[%s4056 + $0x318] sm:$0xff]
    %v4157 = vld [vmem:[%s4056 + $0x320] sm:$0xff]
    %v4158 = vld [vmem:[%s4056 + $0x328] sm:$0xff]
    %v4159 = vld [vmem:[%s4056 + $0x330] sm:$0xff]
    %v4160 = vld [vmem:[%s4056 + $0x338] sm:$0xff]
    %v4161 = vld [vmem:[%s4056 + $0x340] sm:$0xff]
    %v4162 = vld [vmem:[%s4056 + $0x348] sm:$0xff]
    %v4163 = vld [vmem:[%s4056 + $0x350] sm:$0xff]
    %v4164 = vld [vmem:[%s4056 + $0x358] sm:$0xff]
    %v4165 = vld [vmem:[%s4056 + $0x360] sm:$0xff]
    %v4166 = vld [vmem:[%s4056 + $0x368] sm:$0xff]
    %v4167 = vld [vmem:[%s4056 + $0x370] sm:$0xff]
    %v4168 = vld [vmem:[%s4056 + $0x378] sm:$0xff]
    %v4169 = vld [vmem:[%s4056 + $0x380] sm:$0xff]
    %v4170 = vld [vmem:[%s4056 + $0x388] sm:$0xff]
    %v4171 = vld [vmem:[%s4056 + $0x390] sm:$0xff]
    %v4172 = vld [vmem:[%s4056 + $0x398] sm:$0xff]
    %v4173 = vld [vmem:[%s4056 + $0x3a0] sm:$0xff]
    %v4174 = vld [vmem:[%s4056 + $0x3a8] sm:$0xff]
    %v4175 = vld [vmem:[%s4056 + $0x3b0] sm:$0xff]
    %v4176 = vld [vmem:[%s4056 + $0x3b8] sm:$0xff]
    %v4177 = vld [vmem:[%s4056 + $0x3c0] sm:$0xff]
    %v4178 = vld [vmem:[%s4056 + $0x3c8] sm:$0xff]
    %v4179 = vld [vmem:[%s4056 + $0x3d0] sm:$0xff]
    %v4180 = vld [vmem:[%s4056 + $0x3d8] sm:$0xff]
    %v4181 = vld [vmem:[%s4056 + $0x3e0] sm:$0xff]
    %v4182 = vld [vmem:[%s4056 + $0x3e8] sm:$0xff]
    %v4183 = vld [vmem:[%s4056 + $0x3f0] sm:$0xff]
    %v4184 = vld [vmem:[%s4056 + $0x3f8] sm:$0xff]
    %s4185 = scalar_lea.vmem [#allocation22], 2
    %v4186 = vld [vmem:[%s4185] sm:$0x3]
    %v4188 = vperm.slane %v4186, 0
    %v4189 = vperm.slane %v4186, 1
    %4192 = vmatpush.msra.mxu0 %v4087
    %4193 = vmatpush.msra.mxu0 %v4085
    %4194 = vmatpush.msra.mxu0 %v4083
    %4195 = vmatpush.msra.mxu0 %v4081
    %4196 = vmatpush.msra.mxu0 %v4079
    %4197 = vmatpush.msra.mxu0 %v4077
    %4198 = vmatpush.msra.mxu0 %v4075
    %4199 = vmatpush.msra.mxu0 %v4073
    %4200 = vmatpush.msra.mxu0 %v4071
    %4201 = vmatpush.msra.mxu0 %v4069
    %4202 = vmatpush.msra.mxu0 %v4067
    %4203 = vmatpush.msra.mxu0 %v4065
    %4204 = vmatpush.msra.mxu0 %v4063
    %4205 = vmatpush.msra.mxu0 %v4061
    %4206 = vmatpush.msra.mxu0 %v4059
    %4207 = vmatpush.msra.mxu0 %v4057
    %4208 = vmatmul.f32.gmra.mxu0 %v4048
    %v4209 = vpop.f32.mrf.mxu0
    %v4210 = vadd.f32 %v4188, %v4209
    %4211 = vmatmul.f32.gmra.mxu0 %v4052
    %v4212 = vpop.f32.mrf.mxu0
    %v4213 = vadd.f32 %v4188, %v4212
    %4214 = vdwg.mxu0
    %4215 = vmatpush.msra.mxu0 %v4119
    %4216 = vmatpush.msra.mxu0 %v4117
    %4217 = vmatpush.msra.mxu0 %v4115
    %4218 = vmatpush.msra.mxu0 %v4113
    %4219 = vmatpush.msra.mxu0 %v4111
    %4220 = vmatpush.msra.mxu0 %v4109
    %4221 = vmatpush.msra.mxu0 %v4107
    %4222 = vmatpush.msra.mxu0 %v4105
    %4223 = vmatpush.msra.mxu0 %v4103
    %4224 = vmatpush.msra.mxu0 %v4101
    %4225 = vmatpush.msra.mxu0 %v4099
    %4226 = vmatpush.msra.mxu0 %v4097
    %4227 = vmatpush.msra.mxu0 %v4095
    %4228 = vmatpush.msra.mxu0 %v4093
    %4229 = vmatpush.msra.mxu0 %v4091
    %4230 = vmatpush.msra.mxu0 %v4089
    %4231 = vmatmul.f32.gmra.mxu0 %v4049
    %v4232 = vpop.f32.mrf.mxu0
    %v4233 = vadd.f32 %v4210, %v4232
    %4234 = vmatmul.f32.gmra.mxu0 %v4053
    %v4235 = vpop.f32.mrf.mxu0
    %v4236 = vadd.f32 %v4213, %v4235
    %4237 = vdwg.mxu0
    %4238 = vmatpush.msra.mxu0 %v4151
    %4239 = vmatpush.msra.mxu0 %v4149
    %4240 = vmatpush.msra.mxu0 %v4147
    %4241 = vmatpush.msra.mxu0 %v4145
    %4242 = vmatpush.msra.mxu0 %v4143
    %4243 = vmatpush.msra.mxu0 %v4141
    %4244 = vmatpush.msra.mxu0 %v4139
    %4245 = vmatpush.msra.mxu0 %v4137
    %4246 = vmatpush.msra.mxu0 %v4135
    %4247 = vmatpush.msra.mxu0 %v4133
    %4248 = vmatpush.msra.mxu0 %v4131
    %4249 = vmatpush.msra.mxu0 %v4129
    %4250 = vmatpush.msra.mxu0 %v4127
    %4251 = vmatpush.msra.mxu0 %v4125
    %4252 = vmatpush.msra.mxu0 %v4123
    %4253 = vmatpush.msra.mxu0 %v4121
    %4254 = vmatmul.f32.gmra.mxu0 %v4050
    %v4255 = vpop.f32.mrf.mxu0
    %v4256 = vadd.f32 %v4233, %v4255
    %4257 = vmatmul.f32.gmra.mxu0 %v4054
    %v4258 = vpop.f32.mrf.mxu0
    %v4259 = vadd.f32 %v4236, %v4258
    %4260 = vdwg.mxu0
    %4261 = vmatpush.msra.mxu0 %v4183
    %4262 = vmatpush.msra.mxu0 %v4181
    %4263 = vmatpush.msra.mxu0 %v4179
    %4264 = vmatpush.msra.mxu0 %v4177
    %4265 = vmatpush.msra.mxu0 %v4175
    %4266 = vmatpush.msra.mxu0 %v4173
    %4267 = vmatpush.msra.mxu0 %v4171
    %4268 = vmatpush.msra.mxu0 %v4169
    %4269 = vmatpush.msra.mxu0 %v4167
    %4270 = vmatpush.msra.mxu0 %v4165
    %4271 = vmatpush.msra.mxu0 %v4163
    %4272 = vmatpush.msra.mxu0 %v4161
    %4273 = vmatpush.msra.mxu0 %v4159
    %4274 = vmatpush.msra.mxu0 %v4157
    %4275 = vmatpush.msra.mxu0 %v4155
    %4276 = vmatpush.msra.mxu0 %v4153
    %4277 = vmatmul.f32.gmra.mxu0 %v4051
    %v4278 = vpop.f32.mrf.mxu0
    %v4279 = vadd.f32 %v4256, %v4278
    %4280 = vmatmul.f32.gmra.mxu0 %v4055
    %v4281 = vpop.f32.mrf.mxu0
    %v4282 = vadd.f32 %v4259, %v4281
    %4283 = vdwg.mxu0
    %4284 = vmatpush.msra.mxu0 %v4088
    %4285 = vmatpush.msra.mxu0 %v4086
    %4286 = vmatpush.msra.mxu0 %v4084
    %4287 = vmatpush.msra.mxu0 %v4082
    %4288 = vmatpush.msra.mxu0 %v4080
    %4289 = vmatpush.msra.mxu0 %v4078
    %4290 = vmatpush.msra.mxu0 %v4076
    %4291 = vmatpush.msra.mxu0 %v4074
    %4292 = vmatpush.msra.mxu0 %v4072
    %4293 = vmatpush.msra.mxu0 %v4070
    %4294 = vmatpush.msra.mxu0 %v4068
    %4295 = vmatpush.msra.mxu0 %v4066
    %4296 = vmatpush.msra.mxu0 %v4064
    %4297 = vmatpush.msra.mxu0 %v4062
    %4298 = vmatpush.msra.mxu0 %v4060
    %4299 = vmatpush.msra.mxu0 %v4058
    %4300 = vmatmul.f32.gmra.mxu0 %v4048
    %v4301 = vpop.f32.mrf.mxu0
    %v4302 = vadd.f32 %v4189, %v4301
    %4303 = vmatmul.f32.gmra.mxu0 %v4052
    %v4304 = vpop.f32.mrf.mxu0
    %v4305 = vadd.f32 %v4189, %v4304
    %4306 = vdwg.mxu0
    %4307 = vmatpush.msra.mxu0 %v4120
    %4308 = vmatpush.msra.mxu0 %v4118
    %4309 = vmatpush.msra.mxu0 %v4116
    %4310 = vmatpush.msra.mxu0 %v4114
    %4311 = vmatpush.msra.mxu0 %v4112
    %4312 = vmatpush.msra.mxu0 %v4110
    %4313 = vmatpush.msra.mxu0 %v4108
    %4314 = vmatpush.msra.mxu0 %v4106
    %4315 = vmatpush.msra.mxu0 %v4104
    %4316 = vmatpush.msra.mxu0 %v4102
    %4317 = vmatpush.msra.mxu0 %v4100
    %4318 = vmatpush.msra.mxu0 %v4098
    %4319 = vmatpush.msra.mxu0 %v4096
    %4320 = vmatpush.msra.mxu0 %v4094
    %4321 = vmatpush.msra.mxu0 %v4092
    %4322 = vmatpush.msra.mxu0 %v4090
    %4323 = vmatmul.f32.gmra.mxu0 %v4049
    %v4324 = vpop.f32.mrf.mxu0
    %v4325 = vadd.f32 %v4302, %v4324
    %4326 = vmatmul.f32.gmra.mxu0 %v4053
    %v4327 = vpop.f32.mrf.mxu0
    %v4328 = vadd.f32 %v4305, %v4327
    %4329 = vdwg.mxu0
    %4330 = vmatpush.msra.mxu0 %v4152
    %4331 = vmatpush.msra.mxu0 %v4150
    %4332 = vmatpush.msra.mxu0 %v4148
    %4333 = vmatpush.msra.mxu0 %v4146
    %4334 = vmatpush.msra.mxu0 %v4144
    %4335 = vmatpush.msra.mxu0 %v4142
    %4336 = vmatpush.msra.mxu0 %v4140
    %4337 = vmatpush.msra.mxu0 %v4138
    %4338 = vmatpush.msra.mxu0 %v4136
    %4339 = vmatpush.msra.mxu0 %v4134
    %4340 = vmatpush.msra.mxu0 %v4132
    %4341 = vmatpush.msra.mxu0 %v4130
    %4342 = vmatpush.msra.mxu0 %v4128
    %4343 = vmatpush.msra.mxu0 %v4126
    %4344 = vmatpush.msra.mxu0 %v4124
    %4345 = vmatpush.msra.mxu0 %v4122
    %4346 = vmatmul.f32.gmra.mxu0 %v4050
    %v4347 = vpop.f32.mrf.mxu0
    %v4348 = vadd.f32 %v4325, %v4347
    %4349 = vmatmul.f32.gmra.mxu0 %v4054
    %v4350 = vpop.f32.mrf.mxu0
    %v4351 = vadd.f32 %v4328, %v4350
    %4352 = vdwg.mxu0
    %4353 = vmatpush.msra.mxu0 %v4184
    %4354 = vmatpush.msra.mxu0 %v4182
    %4355 = vmatpush.msra.mxu0 %v4180
    %4356 = vmatpush.msra.mxu0 %v4178
    %4357 = vmatpush.msra.mxu0 %v4176
    %4358 = vmatpush.msra.mxu0 %v4174
    %4359 = vmatpush.msra.mxu0 %v4172
    %4360 = vmatpush.msra.mxu0 %v4170
    %4361 = vmatpush.msra.mxu0 %v4168
    %4362 = vmatpush.msra.mxu0 %v4166
    %4363 = vmatpush.msra.mxu0 %v4164
    %4364 = vmatpush.msra.mxu0 %v4162
    %4365 = vmatpush.msra.mxu0 %v4160
    %4366 = vmatpush.msra.mxu0 %v4158
    %4367 = vmatpush.msra.mxu0 %v4156
    %4368 = vmatpush.msra.mxu0 %v4154
    %4369 = vmatmul.f32.gmra.mxu0 %v4051
    %v4370 = vpop.f32.mrf.mxu0
    %v4371 = vadd.f32 %v4348, %v4370
    %4372 = vmatmul.f32.gmra.mxu0 %v4055
    %v4373 = vpop.f32.mrf.mxu0
    %v4374 = vadd.f32 %v4351, %v4373
    %4375 = vdwg.mxu0
    %v4376 = vadd.f32 %v4279, %v3376
    %v4377 = vadd.f32 %v4371, %v3377
    %v4378 = vadd.f32 %v4282, %v3378
    %v4379 = vadd.f32 %v4374, %v3379
    %s4380 = scalar_lea.vmem [#allocation23], 2
    %v4381 = vld [vmem:[%s4380] sm:$0x3]
    %s4382 = scalar_lea.vmem [#allocation25], 2
    %v4383 = vld [vmem:[%s4382] sm:$0x3]
    %v4384 = vadd.f32 %v4376, %v4377
    %4385 = vadd.xlane.f32.xlu0 %v4384
    %v4386 = vpop.xlane.xlu0 %4385
    %v4387 = vadd.f32 %v4378, %v4379
    %4388 = vadd.xlane.f32.xlu0 %v4387
    %v4389 = vpop.xlane.xlu0 %4388
    %v4390 = vmul.f32 %v4386, %v368
    %v4391 = vmul.f32 %v4389, %v368
    %v4392 = vsub.f32 %v4376, %v4390
    %v4393 = vsub.f32 %v4377, %v4390
    %v4394 = vsub.f32 %v4378, %v4391
    %v4395 = vsub.f32 %v4379, %v4391
    %v4396 = vmul.f32 %v4392, %v4392
    %v4397 = vmul.f32 %v4393, %v4393
    %v4398 = vmul.f32 %v4394, %v4394
    %v4399 = vmul.f32 %v4395, %v4395
    %v4400 = vadd.f32 %v4396, %v4397
    %4401 = vadd.xlane.f32.xlu0 %v4400
    %v4402 = vpop.xlane.xlu0 %4401
    %v4403 = vadd.f32 %v4398, %v4399
    %4404 = vadd.xlane.f32.xlu0 %v4403
    %v4405 = vpop.xlane.xlu0 %4404
    %v4406 = vmul.f32 %v4402, %v368
    %v4407 = vmul.f32 %v4405, %v368
    %v4408 = vadd.f32 %v4406, 1e-12
    %v4409 = vadd.f32 %v4407, 1e-12
    %v4410 = vrsqrt.pop %v4408
    %v4411 = vmul.f32 %v4410, %v4408
    %v4412 = vmul.f32 %v4411, %v4410
    %v4413 = vmul.f32 0.5, %v4412
    %v4414 = vsub.f32 1.5, %v4413
    %v4415 = vmul.f32 %v4410, %v4414
    %vm4416 = vweird.f32 %v4408
    %vm4417 = vweird.f32 %v4410
    %vm4418 = vmor %vm4416, %vm4417
    %v4419 = vsel %vm4418, %v4410, %v4415
    %v4420 = vrsqrt.pop %v4409
    %v4421 = vmul.f32 %v4420, %v4409
    %v4422 = vmul.f32 %v4421, %v4420
    %v4423 = vmul.f32 0.5, %v4422
    %v4424 = vsub.f32 1.5, %v4423
    %v4425 = vmul.f32 %v4420, %v4424
    %vm4426 = vweird.f32 %v4409
    %vm4427 = vweird.f32 %v4420
    %vm4428 = vmor %vm4426, %vm4427
    %v4429 = vsel %vm4428, %v4420, %v4425
    %v4430 = vmul.f32 %v4392, %v4419
    %v4431 = vmul.f32 %v4393, %v4419
    %v4432 = vmul.f32 %v4394, %v4429
    %v4433 = vmul.f32 %v4395, %v4429
    %v4435 = vperm.slane %v4381, 0
    %v4436 = vperm.slane %v4381, 1
    %v4439 = vmul.f32 %v4430, %v4435
    %v4440 = vmul.f32 %v4431, %v4436
    %v4441 = vmul.f32 %v4432, %v4435
    %v4442 = vmul.f32 %v4433, %v4436
    %v4444 = vperm.slane %v4383, 0
    %v4445 = vperm.slane %v4383, 1
    %v4448 = vadd.f32 %v4439, %v4444
    %v4449 = vadd.f32 %v4440, %v4445
    %v4450 = vadd.f32 %v4441, %v4444
    %v4451 = vadd.f32 %v4442, %v4445
    %v4452 = vld [vmem:[#allocation26] sm:$0xff]
    %v4453 = vld [vmem:[#allocation26 + $0x8] sm:$0xff]
    %v4454 = vld [vmem:[#allocation26 + $0x10] sm:$0xff]
    %v4455 = vld [vmem:[#allocation26 + $0x18] sm:$0xff]
    %v4456 = vld [vmem:[#allocation26 + $0x20] sm:$0xff]
    %v4457 = vld [vmem:[#allocation26 + $0x28] sm:$0xff]
    %v4458 = vld [vmem:[#allocation26 + $0x30] sm:$0xff]
    %v4459 = vld [vmem:[#allocation26 + $0x38] sm:$0xff]
    %v4460 = vld [vmem:[#allocation26 + $0x40] sm:$0xff]
    %v4461 = vld [vmem:[#allocation26 + $0x48] sm:$0xff]
    %v4462 = vld [vmem:[#allocation26 + $0x50] sm:$0xff]
    %v4463 = vld [vmem:[#allocation26 + $0x58] sm:$0xff]
    %v4464 = vld [vmem:[#allocation26 + $0x60] sm:$0xff]
    %v4465 = vld [vmem:[#allocation26 + $0x68] sm:$0xff]
    %v4466 = vld [vmem:[#allocation26 + $0x70] sm:$0xff]
    %v4467 = vld [vmem:[#allocation26 + $0x78] sm:$0xff]
    %v4468 = vld [vmem:[#allocation26 + $0x80] sm:$0xff]
    %v4469 = vld [vmem:[#allocation26 + $0x88] sm:$0xff]
    %v4470 = vld [vmem:[#allocation26 + $0x90] sm:$0xff]
    %v4471 = vld [vmem:[#allocation26 + $0x98] sm:$0xff]
    %v4472 = vld [vmem:[#allocation26 + $0xa0] sm:$0xff]
    %v4473 = vld [vmem:[#allocation26 + $0xa8] sm:$0xff]
    %v4474 = vld [vmem:[#allocation26 + $0xb0] sm:$0xff]
    %v4475 = vld [vmem:[#allocation26 + $0xb8] sm:$0xff]
    %v4476 = vld [vmem:[#allocation26 + $0xc0] sm:$0xff]
    %v4477 = vld [vmem:[#allocation26 + $0xc8] sm:$0xff]
    %v4478 = vld [vmem:[#allocation26 + $0xd0] sm:$0xff]
    %v4479 = vld [vmem:[#allocation26 + $0xd8] sm:$0xff]
    %v4480 = vld [vmem:[#allocation26 + $0xe0] sm:$0xff]
    %v4481 = vld [vmem:[#allocation26 + $0xe8] sm:$0xff]
    %v4482 = vld [vmem:[#allocation26 + $0xf0] sm:$0xff]
    %v4483 = vld [vmem:[#allocation26 + $0xf8] sm:$0xff]
    %v4484 = vld [vmem:[#allocation26 + $0x100] sm:$0xff]
    %v4485 = vld [vmem:[#allocation26 + $0x108] sm:$0xff]
    %v4486 = vld [vmem:[#allocation26 + $0x110] sm:$0xff]
    %v4487 = vld [vmem:[#allocation26 + $0x118] sm:$0xff]
    %v4488 = vld [vmem:[#allocation26 + $0x120] sm:$0xff]
    %v4489 = vld [vmem:[#allocation26 + $0x128] sm:$0xff]
    %v4490 = vld [vmem:[#allocation26 + $0x130] sm:$0xff]
    %v4491 = vld [vmem:[#allocation26 + $0x138] sm:$0xff]
    %v4492 = vld [vmem:[#allocation26 + $0x140] sm:$0xff]
    %v4493 = vld [vmem:[#allocation26 + $0x148] sm:$0xff]
    %v4494 = vld [vmem:[#allocation26 + $0x150] sm:$0xff]
    %v4495 = vld [vmem:[#allocation26 + $0x158] sm:$0xff]
    %v4496 = vld [vmem:[#allocation26 + $0x160] sm:$0xff]
    %v4497 = vld [vmem:[#allocation26 + $0x168] sm:$0xff]
    %v4498 = vld [vmem:[#allocation26 + $0x170] sm:$0xff]
    %v4499 = vld [vmem:[#allocation26 + $0x178] sm:$0xff]
    %v4500 = vld [vmem:[#allocation26 + $0x180] sm:$0xff]
    %v4501 = vld [vmem:[#allocation26 + $0x188] sm:$0xff]
    %v4502 = vld [vmem:[#allocation26 + $0x190] sm:$0xff]
    %v4503 = vld [vmem:[#allocation26 + $0x198] sm:$0xff]
    %v4504 = vld [vmem:[#allocation26 + $0x1a0] sm:$0xff]
    %v4505 = vld [vmem:[#allocation26 + $0x1a8] sm:$0xff]
    %v4506 = vld [vmem:[#allocation26 + $0x1b0] sm:$0xff]
    %v4507 = vld [vmem:[#allocation26 + $0x1b8] sm:$0xff]
    %v4508 = vld [vmem:[#allocation26 + $0x1c0] sm:$0xff]
    %v4509 = vld [vmem:[#allocation26 + $0x1c8] sm:$0xff]
    %v4510 = vld [vmem:[#allocation26 + $0x1d0] sm:$0xff]
    %v4511 = vld [vmem:[#allocation26 + $0x1d8] sm:$0xff]
    %v4512 = vld [vmem:[#allocation26 + $0x1e0] sm:$0xff]
    %v4513 = vld [vmem:[#allocation26 + $0x1e8] sm:$0xff]
    %v4514 = vld [vmem:[#allocation26 + $0x1f0] sm:$0xff]
    %v4515 = vld [vmem:[#allocation26 + $0x1f8] sm:$0xff]
    %v4516 = vld [vmem:[#allocation28] sm:$0x3]
    %v4518 = vperm.slane %v4516, 0
    %v4519 = vperm.slane %v4516, 1
    %4522 = vmatpush.msra.mxu0 %v4482
    %4523 = vmatpush.msra.mxu0 %v4480
    %4524 = vmatpush.msra.mxu0 %v4478
    %4525 = vmatpush.msra.mxu0 %v4476
    %4526 = vmatpush.msra.mxu0 %v4474
    %4527 = vmatpush.msra.mxu0 %v4472
    %4528 = vmatpush.msra.mxu0 %v4470
    %4529 = vmatpush.msra.mxu0 %v4468
    %4530 = vmatpush.msra.mxu0 %v4466
    %4531 = vmatpush.msra.mxu0 %v4464
    %4532 = vmatpush.msra.mxu0 %v4462
    %4533 = vmatpush.msra.mxu0 %v4460
    %4534 = vmatpush.msra.mxu0 %v4458
    %4535 = vmatpush.msra.mxu0 %v4456
    %4536 = vmatpush.msra.mxu0 %v4454
    %4537 = vmatpush.msra.mxu0 %v4452
    %4538 = vmatmul.f32.gmra.mxu0 %v4448
    %v4539 = vpop.f32.mrf.mxu0
    %v4540 = vadd.f32 %v4518, %v4539
    %4541 = vmatmul.f32.gmra.mxu0 %v4450
    %v4542 = vpop.f32.mrf.mxu0
    %v4543 = vadd.f32 %v4518, %v4542
    %4544 = vdwg.mxu0
    %4545 = vmatpush.msra.mxu0 %v4514
    %4546 = vmatpush.msra.mxu0 %v4512
    %4547 = vmatpush.msra.mxu0 %v4510
    %4548 = vmatpush.msra.mxu0 %v4508
    %4549 = vmatpush.msra.mxu0 %v4506
    %4550 = vmatpush.msra.mxu0 %v4504
    %4551 = vmatpush.msra.mxu0 %v4502
    %4552 = vmatpush.msra.mxu0 %v4500
    %4553 = vmatpush.msra.mxu0 %v4498
    %4554 = vmatpush.msra.mxu0 %v4496
    %4555 = vmatpush.msra.mxu0 %v4494
    %4556 = vmatpush.msra.mxu0 %v4492
    %4557 = vmatpush.msra.mxu0 %v4490
    %4558 = vmatpush.msra.mxu0 %v4488
    %4559 = vmatpush.msra.mxu0 %v4486
    %4560 = vmatpush.msra.mxu0 %v4484
    %4561 = vmatmul.f32.gmra.mxu0 %v4449
    %v4562 = vpop.f32.mrf.mxu0
    %v4563 = vadd.f32 %v4540, %v4562
    %4564 = vmatmul.f32.gmra.mxu0 %v4451
    %v4565 = vpop.f32.mrf.mxu0
    %v4566 = vadd.f32 %v4543, %v4565
    %4567 = vdwg.mxu0
    %4568 = vmatpush.msra.mxu0 %v4483
    %4569 = vmatpush.msra.mxu0 %v4481
    %4570 = vmatpush.msra.mxu0 %v4479
    %4571 = vmatpush.msra.mxu0 %v4477
    %4572 = vmatpush.msra.mxu0 %v4475
    %4573 = vmatpush.msra.mxu0 %v4473
    %4574 = vmatpush.msra.mxu0 %v4471
    %4575 = vmatpush.msra.mxu0 %v4469
    %4576 = vmatpush.msra.mxu0 %v4467
    %4577 = vmatpush.msra.mxu0 %v4465
    %4578 = vmatpush.msra.mxu0 %v4463
    %4579 = vmatpush.msra.mxu0 %v4461
    %4580 = vmatpush.msra.mxu0 %v4459
    %4581 = vmatpush.msra.mxu0 %v4457
    %4582 = vmatpush.msra.mxu0 %v4455
    %4583 = vmatpush.msra.mxu0 %v4453
    %4584 = vmatmul.f32.gmra.mxu0 %v4448
    %v4585 = vpop.f32.mrf.mxu0
    %v4586 = vadd.f32 %v4519, %v4585
    %4587 = vmatmul.f32.gmra.mxu0 %v4450
    %v4588 = vpop.f32.mrf.mxu0
    %v4589 = vadd.f32 %v4519, %v4588
    %4590 = vdwg.mxu0
    %4591 = vmatpush.msra.mxu0 %v4515
    %4592 = vmatpush.msra.mxu0 %v4513
    %4593 = vmatpush.msra.mxu0 %v4511
    %4594 = vmatpush.msra.mxu0 %v4509
    %4595 = vmatpush.msra.mxu0 %v4507
    %4596 = vmatpush.msra.mxu0 %v4505
    %4597 = vmatpush.msra.mxu0 %v4503
    %4598 = vmatpush.msra.mxu0 %v4501
    %4599 = vmatpush.msra.mxu0 %v4499
    %4600 = vmatpush.msra.mxu0 %v4497
    %4601 = vmatpush.msra.mxu0 %v4495
    %4602 = vmatpush.msra.mxu0 %v4493
    %4603 = vmatpush.msra.mxu0 %v4491
    %4604 = vmatpush.msra.mxu0 %v4489
    %4605 = vmatpush.msra.mxu0 %v4487
    %4606 = vmatpush.msra.mxu0 %v4485
    %4607 = vmatmul.f32.gmra.mxu0 %v4449
    %v4608 = vpop.f32.mrf.mxu0
    %v4609 = vadd.f32 %v4586, %v4608
    %4610 = vmatmul.f32.gmra.mxu0 %v4451
    %v4611 = vpop.f32.mrf.mxu0
    %v4612 = vadd.f32 %v4589, %v4611
    %4613 = vdwg.mxu0
    %v4614 = vtanh.pop %v4563
    %v4615 = vtanh.pop %v4609
    %v4616 = vtanh.pop %v4566
    %v4617 = vtanh.pop %v4612
    %v4618 = vld [vmem:[#allocation29] sm:$0xff]
    %v4619 = vld [vmem:[#allocation29 + $0x8] sm:$0xff]
    %v4620 = vld [vmem:[#allocation29 + $0x10] sm:$0xff]
    %v4621 = vld [vmem:[#allocation29 + $0x18] sm:$0xff]
    %v4622 = vld [vmem:[#allocation29 + $0x20] sm:$0xff]
    %v4623 = vld [vmem:[#allocation29 + $0x28] sm:$0xff]
    %v4624 = vld [vmem:[#allocation29 + $0x30] sm:$0xff]
    %v4625 = vld [vmem:[#allocation29 + $0x38] sm:$0xff]
    %v4626 = vld [vmem:[#allocation29 + $0x40] sm:$0xff]
    %v4627 = vld [vmem:[#allocation29 + $0x48] sm:$0xff]
    %v4628 = vld [vmem:[#allocation29 + $0x50] sm:$0xff]
    %v4629 = vld [vmem:[#allocation29 + $0x58] sm:$0xff]
    %v4630 = vld [vmem:[#allocation29 + $0x60] sm:$0xff]
    %v4631 = vld [vmem:[#allocation29 + $0x68] sm:$0xff]
    %v4632 = vld [vmem:[#allocation29 + $0x70] sm:$0xff]
    %v4633 = vld [vmem:[#allocation29 + $0x78] sm:$0xff]
    %v4634 = vld [vmem:[#allocation29 + $0x80] sm:$0xff]
    %v4635 = vld [vmem:[#allocation29 + $0x88] sm:$0xff]
    %v4636 = vld [vmem:[#allocation29 + $0x90] sm:$0xff]
    %v4637 = vld [vmem:[#allocation29 + $0x98] sm:$0xff]
    %v4638 = vld [vmem:[#allocation29 + $0xa0] sm:$0xff]
    %v4639 = vld [vmem:[#allocation29 + $0xa8] sm:$0xff]
    %v4640 = vld [vmem:[#allocation29 + $0xb0] sm:$0xff]
    %v4641 = vld [vmem:[#allocation29 + $0xb8] sm:$0xff]
    %v4642 = vld [vmem:[#allocation29 + $0xc0] sm:$0xff]
    %v4643 = vld [vmem:[#allocation29 + $0xc8] sm:$0xff]
    %v4644 = vld [vmem:[#allocation29 + $0xd0] sm:$0xff]
    %v4645 = vld [vmem:[#allocation29 + $0xd8] sm:$0xff]
    %v4646 = vld [vmem:[#allocation29 + $0xe0] sm:$0xff]
    %v4647 = vld [vmem:[#allocation29 + $0xe8] sm:$0xff]
    %v4648 = vld [vmem:[#allocation29 + $0xf0] sm:$0xff]
    %v4649 = vld [vmem:[#allocation29 + $0xf8] sm:$0xff]
    %v4650 = vld [vmem:[#allocation31] sm:$0x1]
    %v4652 = vperm.slane %v4650, 0
    %4654 = vmatpush.msra.mxu0 %v4633
    %4655 = vmatpush.msra.mxu0 %v4632
    %4656 = vmatpush.msra.mxu0 %v4631
    %4657 = vmatpush.msra.mxu0 %v4630
    %4658 = vmatpush.msra.mxu0 %v4629
    %4659 = vmatpush.msra.mxu0 %v4628
    %4660 = vmatpush.msra.mxu0 %v4627
    %4661 = vmatpush.msra.mxu0 %v4626
    %4662 = vmatpush.msra.mxu0 %v4625
    %4663 = vmatpush.msra.mxu0 %v4624
    %4664 = vmatpush.msra.mxu0 %v4623
    %4665 = vmatpush.msra.mxu0 %v4622
    %4666 = vmatpush.msra.mxu0 %v4621
    %4667 = vmatpush.msra.mxu0 %v4620
    %4668 = vmatpush.msra.mxu0 %v4619
    %4669 = vmatpush.msra.mxu0 %v4618
    %4670 = vmatmul.f32.gmra.mxu0 %v4614
    %v4671 = vpop.f32.mrf.mxu0
    %v4672 = vadd.f32 %v4652, %v4671
    %4673 = vmatmul.f32.gmra.mxu0 %v4616
    %v4674 = vpop.f32.mrf.mxu0
    %v4675 = vadd.f32 %v4652, %v4674
    %4676 = vdwg.mxu0
    %4677 = vmatpush.msra.mxu0 %v4649
    %4678 = vmatpush.msra.mxu0 %v4648
    %4679 = vmatpush.msra.mxu0 %v4647
    %4680 = vmatpush.msra.mxu0 %v4646
    %4681 = vmatpush.msra.mxu0 %v4645
    %4682 = vmatpush.msra.mxu0 %v4644
    %4683 = vmatpush.msra.mxu0 %v4643
    %4684 = vmatpush.msra.mxu0 %v4642
    %4685 = vmatpush.msra.mxu0 %v4641
    %4686 = vmatpush.msra.mxu0 %v4640
    %4687 = vmatpush.msra.mxu0 %v4639
    %4688 = vmatpush.msra.mxu0 %v4638
    %4689 = vmatpush.msra.mxu0 %v4637
    %4690 = vmatpush.msra.mxu0 %v4636
    %4691 = vmatpush.msra.mxu0 %v4635
    %4692 = vmatpush.msra.mxu0 %v4634
    %4693 = vmatmul.f32.gmra.mxu0 %v4615
    %v4694 = vpop.f32.mrf.mxu0
    %v4695 = vadd.f32 %v4672, %v4694
    %4696 = vmatmul.f32.gmra.mxu0 %v4617
    %v4697 = vpop.f32.mrf.mxu0
    %v4698 = vadd.f32 %v4675, %v4697
    %4699 = vdwg.mxu0
    %4700 = vst [vmem:[#allocation32] sm:$0xff] %v4695
    %4701 = vst [vmem:[#allocation32 + $0x8] sm:$0xff] %v4698
    // Predicated region
    $region154: #{tpu_custom_call.1} parent=1 // pred_check
      _
    $region155: #{tpu_custom_call.1} parent=1 // pred_check_branch
      %4703 = sbr.rel (0) target = $region157
    $region156: #{tpu_custom_call.1} parent=1 // pred_region
      %4705 = vsyncadd [#allocation4], 0
      %s4706 = sshll.u32 [#allocation32], 4
      %s4707 = int_to_ptr.vmem [resolvable:$true] %s4706
      %s4708 = sshll.u32 %s19, 4
      %s4709 = int_to_ptr.hbm [resolvable:$true] %s4708
      %4714 = dma.vmem_to_hbm [thread:$0]  %s4707, 256, %s4709, [#allocation4], 128, 128, 8
    $region157: #{tpu_custom_call.1} parent=1 // pred_fallthru
      _
    // Predicated region
    $region158: #{tpu_custom_call.1} parent=1 // pred_check
      _
    $region159: #{tpu_custom_call.1} parent=1 // pred_check_branch
      %4716 = sbr.rel (0) target = $region161
    $region160: #{tpu_custom_call.1} parent=1 // pred_region
      %4718 = dma.done [#allocation4], 256
    $region161: #{tpu_custom_call.1} parent=1 // pred_fallthru
      _
    %4719 = vsyncpa [#allocation3], 1
    %4720 = vsyncpa [#allocation6], 1
    %4721 = vsyncpa [#allocation9], 1
    %4722 = vsyncpa [#allocation12], 1
    %4723 = vsyncpa [#allocation15], 1
    %4724 = vsyncpa [#allocation18], 1
    %4725 = vsyncpa [#allocation21], 1
    %4726 = vsyncpa [#allocation24], 1
    %4727 = vsyncpa [#allocation27], 1
    %4728 = vsyncpa [#allocation30], 1
    %4729 = vsyncpa [#allocation4], 1

</llo_original>
